<compile_context>
chip_gen: v7x
topology: tpu7x:2x2x1
jax: 0.10.0
libtpu: 0.0.40
codegen_flags: <defaults>
</compile_context>

<pallas_src>
import functools
import math

import jax
import jax.numpy as jnp
from jax.experimental import pallas as pl
from jax.experimental.pallas import tpu as pltpu  # noqa: F401  (TPU backend)

# --- model hyperparameters (consistent with the module __init__) ---
FEATURE_SIZE = 4
D_MODEL = 32
NHEAD = 4
NUM_LAYERS = 2
BATCH = 2
SEQ = 8
DFF = 4 * D_MODEL           # dim_feedforward = d_model * 4 (set explicitly in the module)
EPS = 1e-5                  # PyTorch nn.LayerNorm default

# Packed small-vector layout: one row of width 128 per vector.
#   per layer (8 rows):
#     0: in_b (3D)   1: lin1_b (DFF)  2: out_b (D)  3: ln1_g (D)
#     4: ln1_b (D)   5: lin2_b (D)    6: ln2_g (D)  7: ln2_b (D)
#   after all layers: row L*8 = head_w (D), row L*8+1 = head_b (1)
ROWS_PER_LAYER = 8
VEC_W = 128


# ----------------------------- kernel --------------------------------------
def _layer_norm(x, g, b, eps=EPS):
    mu = jnp.mean(x, axis=-1, keepdims=True)
    var = jnp.mean(jnp.square(x - mu), axis=-1, keepdims=True)
    return (x - mu) * jax.lax.rsqrt(var + eps) * g + b


def fused_transformer_kernel(x_ref, emb_w_ref, pe_ref, wd_ref, lin2_w_ref,
                             vec_ref, o_ref, *, batch, seq, nhead, num_layers):
    B, S, H = batch, seq, nhead
    BS = B * S
    D = emb_w_ref.shape[1]
    dff = lin2_w_ref.shape[1]
    hd = D // H
    scale = 1.0 / math.sqrt(hd)

    # ---- embedding + (positional encoding with emb bias pre-folded) ----
    h = jnp.dot(x_ref[...], emb_w_ref[...], preferred_element_type=jnp.float32)
    h = h + pe_ref[...]                                             # (B*S, D)

    # ---- encoder layers (static unroll; all weights resident in VMEM) ----
    for l in range(num_layers):
        wd = wd_ref[l]                                              # (D, 3D + D + DFF)
        in_w = wd[:, 0:3 * D]
        out_w = wd[:, 3 * D:4 * D]
        lin1_w = wd[:, 4 * D:4 * D + dff]
        lin2_w = lin2_w_ref[l]                                      # (DFF, D)

        r = l * ROWS_PER_LAYER
        in_b = vec_ref[r + 0:r + 1, 0:3 * D]
        lin1_b = vec_ref[r + 1:r + 2, 0:dff]
        out_b = vec_ref[r + 2:r + 3, 0:D]
        ln1_g = vec_ref[r + 3:r + 4, 0:D]
        ln1_b = vec_ref[r + 4:r + 5, 0:D]
        lin2_b = vec_ref[r + 5:r + 6, 0:D]
        ln2_g = vec_ref[r + 6:r + 7, 0:D]
        ln2_b = vec_ref[r + 7:r + 8, 0:D]

        # --- multi-head self-attention: one wide QKV matmul ---
        qkv = jnp.dot(h, in_w, preferred_element_type=jnp.float32) + in_b   # (BS, 3D)
        q = qkv[:, 0 * D:1 * D].reshape(B, S, D)
        k = qkv[:, 1 * D:2 * D].reshape(B, S, D)
        v = qkv[:, 2 * D:3 * D].reshape(B, S, D)
        kT = jnp.swapaxes(k, 1, 2)                  # (B, D, S): single hoisted transpose

        ctx_heads = []
        for hh in range(H):
            sl = slice(hh * hd, (hh + 1) * hd)
            s = jnp.einsum('bqd,bdk->bqk', q[:, :, sl], kT[:, sl, :],
                           preferred_element_type=jnp.float32) * scale      # (B, S, S)
            s = s - jnp.max(s, axis=-1, keepdims=True)
            p = jnp.exp(s)
            p = p / jnp.sum(p, axis=-1, keepdims=True)      # exact softmax (parity w/ torch)
            ctx_heads.append(jnp.einsum('bqk,bkd->bqd', p, v[:, :, sl],
                                        preferred_element_type=jnp.float32))  # (B, S, hd)
        # Cheap lane concat of the 4 heads (all within 32 lanes), then ONE
        # output-projection matmul per layer.
        ctx = jnp.concatenate(ctx_heads, axis=-1).reshape(BS, D)
        attn_out = jnp.dot(ctx, out_w, preferred_element_type=jnp.float32) + out_b

        h = _layer_norm(h + attn_out, ln1_g, ln1_b)                 # post-norm 1

        # --- feed-forward (ReLU) ---
        ff = jnp.dot(h, lin1_w, preferred_element_type=jnp.float32) + lin1_b
        ff = jnp.maximum(ff, 0.0)
        ff = jnp.dot(ff, lin2_w, preferred_element_type=jnp.float32) + lin2_b
        h = _layer_norm(h + ff, ln2_g, ln2_b)                       # post-norm 2

    # ---- last timestep per batch, picked directly from the (B*S, D) rows ----
    last_rows = [h[(b + 1) * S - 1:(b + 1) * S, :] for b in range(B)]
    x_last = jnp.concatenate(last_rows, axis=0)                     # (B, D)

    rhead = num_layers * ROWS_PER_LAYER
    head_w = vec_ref[rhead:rhead + 1, 0:D]                          # (1, D)
    head_b = vec_ref[rhead + 1:rhead + 2, 0:1]                      # (1, 1)
    # Tiny D->1 head as a VPU multiply + lane reduce (no N=1 MXU matmul).
    o_ref[...] = jnp.sum(x_last * head_w, axis=-1, keepdims=True) + head_b


# ----------------------------- wrapper --------------------------------------
@jax.jit
def transformer_forward(packed, src):
    B, S, F = src.shape
    kern = functools.partial(fused_transformer_kernel, batch=B, seq=S,
                             nhead=NHEAD, num_layers=NUM_LAYERS)
    # Gridless, no BlockSpecs: every operand is mapped whole into VMEM
    # (total resident footprint < 1 MiB, fine on v5e/v6e/v7x).
    # NOTE(v7x): for B <= 2 keep gridless; add a parallel grid over batch only
    # if the deployed batch grows enough to feed both TensorCores.
    return pl.pallas_call(
        kern,
        out_shape=jax.ShapeDtypeStruct((B, 1), jnp.float32),
        cost_estimate=pl.CostEstimate(
            flops=830_000, transcendentals=1_200, bytes_accessed=120_000),
    )(src.reshape(B * S, F),          # host-side flatten (free)
      packed['emb_w'], packed['pe_b'],
      packed['wd'], packed['lin2_w'], packed['vecs'])


# ----------------------------- parameters ----------------------------------
def _xavier(key, shape):
    fan_a, fan_b = shape
    limit = math.sqrt(6.0 / (fan_a + fan_b))
    return jax.random.uniform(key, shape, jnp.float32, -limit, limit)


def make_positional_encoding(S, D):
    pos = jnp.arange(S, dtype=jnp.float32)[:, None]
    div = jnp.exp(jnp.arange(0, D, 2, dtype=jnp.float32) * (-math.log(10000.0) / D))
    pe = jnp.zeros((S, D), jnp.float32)
    pe = pe.at[:, 0::2].set(jnp.sin(pos * div))
    pe = pe.at[:, 1::2].set(jnp.cos(pos * div))
    return pe


def _pad_row(v):
    v = jnp.asarray(v, jnp.float32).reshape(-1)
    return jnp.pad(v, (0, VEC_W - v.shape[0]))


def init_packed_params(key, feature_size, d_model, nhead, num_layers, seq, batch):
    D, L, dff = d_model, num_layers, 4 * d_model
    keys = jax.random.split(key, 2 + 4 * num_layers)

    emb_w = _xavier(keys[0], (feature_size, D))          # pre-transposed (in, out)
    emb_b = jnp.zeros((D,), jnp.float32)
    head_w = _xavier(keys[1], (1, D))                    # row-vector form of (D, 1)
    head_b = jnp.zeros((1,), jnp.float32)

    pe = make_positional_encoding(seq, D)                                   # (S, D)
    pe_b = jnp.tile(pe, (batch, 1)) + emb_b[None, :]     # pre-tiled + emb bias folded in

    wd_slabs, lin2_slabs, vec_rows = [], [], []
    for l in range(L):
        k = keys[2 + 4 * l: 2 + 4 * (l + 1)]
        in_w = _xavier(k[0], (D, 3 * D))                 # QKV projection, (in, out)
        out_w = _xavier(k[1], (D, D))
        lin1_w = _xavier(k[2], (D, dff))
        lin2_w = _xavier(k[3], (dff, D))
        wd_slabs.append(jnp.concatenate([in_w, out_w, lin1_w], axis=1))     # (D, 256)
        lin2_slabs.append(lin2_w)
        vec_rows += [
            _pad_row(jnp.zeros(3 * D)),   # in_b
            _pad_row(jnp.zeros(dff)),     # lin1_b
            _pad_row(jnp.zeros(D)),       # out_b
            _pad_row(jnp.ones(D)),        # ln1_g
            _pad_row(jnp.zeros(D)),       # ln1_b
            _pad_row(jnp.zeros(D)),       # lin2_b
            _pad_row(jnp.ones(D)),        # ln2_g
            _pad_row(jnp.zeros(D)),       # ln2_b
        ]
    vec_rows += [_pad_row(head_w), _pad_row(head_b)]

    return {
        'emb_w': emb_w,                      # (F, D)
        'pe_b': pe_b,                        # (B*S, D)
        'wd': jnp.stack(wd_slabs),           # (L, D, 3D + D + DFF)
        'lin2_w': jnp.stack(lin2_slabs),     # (L, DFF, D)
        'vecs': jnp.stack(vec_rows),         # (L*8 + 2, 128)
    }


# ----------------------------- main -----------------------------------------
if __name__ == "__main__":
    key = jax.random.PRNGKey(0)
    k_x, k_p = jax.random.split(key)
    src = jax.random.normal(k_x, (BATCH, SEQ, FEATURE_SIZE), jnp.float32)
    packed = init_packed_params(k_p, FEATURE_SIZE, D_MODEL, NHEAD,
                                NUM_LAYERS, SEQ, BATCH)

    out = jax.block_until_ready(transformer_forward(packed, src))
    assert out.shape == (BATCH, 1), out.shape
    print("KERNEL_OK")
</pallas_src>

<mosaic_0001>
module attributes {stable_mosaic.version = 11 : i64} {
  func.func @fused_transformer_kernel(%arg0: memref<16x4xf32, #tpu.memory_space<vmem>>, %arg1: memref<4x32xf32, #tpu.memory_space<vmem>>, %arg2: memref<16x32xf32, #tpu.memory_space<vmem>>, %arg3: memref<2x32x256xf32, #tpu.memory_space<vmem>>, %arg4: memref<2x128x32xf32, #tpu.memory_space<vmem>>, %arg5: memref<18x128xf32, #tpu.memory_space<vmem>>, %arg6: memref<2x1xf32, #tpu.memory_space<vmem>>) attributes {dimension_semantics = [], scalar_prefetch = 0 : i64, scratch_operands = 0 : i64, tpu.core_type = #tpu.core_type<tc>} {
    %c0 = arith.constant 0 : index
    %c0_0 = arith.constant 0 : index
    %0 = vector.load %arg0[%c0, %c0_0] : memref<16x4xf32, #tpu.memory_space<vmem>>, vector<16x4xf32>
    %c0_1 = arith.constant 0 : index
    %c0_2 = arith.constant 0 : index
    %1 = vector.load %arg1[%c0_1, %c0_2] : memref<4x32xf32, #tpu.memory_space<vmem>>, vector<4x32xf32>
    %cst = arith.constant dense<0.000000e+00> : vector<16x32xf32>
    %2 = tpu.matmul %0, %1, %cst {dimension_numbers = #tpu.dot_dimension_numbers<[1], [0], [0], [1], [0, 0, 1, 1], [], []>} : vector<16x4xf32>, vector<4x32xf32>, vector<16x32xf32> -> vector<16x32xf32>
    %c0_3 = arith.constant 0 : index
    %c0_4 = arith.constant 0 : index
    %3 = vector.load %arg2[%c0_3, %c0_4] : memref<16x32xf32, #tpu.memory_space<vmem>>, vector<16x32xf32>
    %4 = arith.addf %2, %3 : vector<16x32xf32>
    %c0_5 = arith.constant 0 : index
    %c0_6 = arith.constant 0 : index
    %c0_7 = arith.constant 0 : index
    %5 = vector.load %arg3[%c0_5, %c0_6, %c0_7] : memref<2x32x256xf32, #tpu.memory_space<vmem>>, vector<1x32x256xf32>
    %6 = vector.shape_cast %5 : vector<1x32x256xf32> to vector<32x256xf32>
    %7 = vector.extract_strided_slice %6 {offsets = [0, 0], sizes = [32, 96], strides = [1, 1]} : vector<32x256xf32> to vector<32x96xf32>
    %8 = vector.extract_strided_slice %6 {offsets = [0, 96], sizes = [32, 32], strides = [1, 1]} : vector<32x256xf32> to vector<32x32xf32>
    %9 = vector.extract_strided_slice %6 {offsets = [0, 128], sizes = [32, 128], strides = [1, 1]} : vector<32x256xf32> to vector<32x128xf32>
    %c0_8 = arith.constant 0 : index
    %c0_9 = arith.constant 0 : index
    %c0_10 = arith.constant 0 : index
    %10 = vector.load %arg4[%c0_8, %c0_9, %c0_10] : memref<2x128x32xf32, #tpu.memory_space<vmem>>, vector<1x128x32xf32>
    %11 = vector.shape_cast %10 : vector<1x128x32xf32> to vector<128x32xf32>
    %c0_11 = arith.constant 0 : index
    %c0_12 = arith.constant 0 : index
    %12 = vector.load %arg5[%c0_11, %c0_12] : memref<18x128xf32, #tpu.memory_space<vmem>>, vector<1x96xf32>
    %c1 = arith.constant 1 : index
    %c0_13 = arith.constant 0 : index
    %13 = vector.load %arg5[%c1, %c0_13] : memref<18x128xf32, #tpu.memory_space<vmem>>, vector<1x128xf32>
    %c2 = arith.constant 2 : index
    %c0_14 = arith.constant 0 : index
    %14 = vector.load %arg5[%c2, %c0_14] : memref<18x128xf32, #tpu.memory_space<vmem>>, vector<1x32xf32>
    %c3 = arith.constant 3 : index
    %c0_15 = arith.constant 0 : index
    %15 = vector.load %arg5[%c3, %c0_15] : memref<18x128xf32, #tpu.memory_space<vmem>>, vector<1x32xf32>
    %c4 = arith.constant 4 : index
    %c0_16 = arith.constant 0 : index
    %16 = vector.load %arg5[%c4, %c0_16] : memref<18x128xf32, #tpu.memory_space<vmem>>, vector<1x32xf32>
    %c5 = arith.constant 5 : index
    %c0_17 = arith.constant 0 : index
    %17 = vector.load %arg5[%c5, %c0_17] : memref<18x128xf32, #tpu.memory_space<vmem>>, vector<1x32xf32>
    %c6 = arith.constant 6 : index
    %c0_18 = arith.constant 0 : index
    %18 = vector.load %arg5[%c6, %c0_18] : memref<18x128xf32, #tpu.memory_space<vmem>>, vector<1x32xf32>
    %c7 = arith.constant 7 : index
    %c0_19 = arith.constant 0 : index
    %19 = vector.load %arg5[%c7, %c0_19] : memref<18x128xf32, #tpu.memory_space<vmem>>, vector<1x32xf32>
    %cst_20 = arith.constant dense<0.000000e+00> : vector<16x96xf32>
    %20 = tpu.matmul %4, %7, %cst_20 {dimension_numbers = #tpu.dot_dimension_numbers<[1], [0], [0], [1], [0, 0, 1, 1], [], []>} : vector<16x32xf32>, vector<32x96xf32>, vector<16x96xf32> -> vector<16x96xf32>
    %21 = vector.broadcast %12 : vector<1x96xf32> to vector<16x96xf32>
    %22 = arith.addf %20, %21 : vector<16x96xf32>
    %23 = vector.extract_strided_slice %22 {offsets = [0, 0], sizes = [16, 32], strides = [1, 1]} : vector<16x96xf32> to vector<16x32xf32>
    %24 = vector.shape_cast %23 : vector<16x32xf32> to vector<2x8x32xf32>
    %25 = vector.extract_strided_slice %22 {offsets = [0, 32], sizes = [16, 32], strides = [1, 1]} : vector<16x96xf32> to vector<16x32xf32>
    %26 = vector.shape_cast %25 : vector<16x32xf32> to vector<2x8x32xf32>
    %27 = vector.extract_strided_slice %22 {offsets = [0, 64], sizes = [16, 32], strides = [1, 1]} : vector<16x96xf32> to vector<16x32xf32>
    %28 = vector.shape_cast %27 : vector<16x32xf32> to vector<2x8x32xf32>
    %29 = tpu.transpose %26, [0, 2, 1] : vector<2x8x32xf32> -> vector<2x32x8xf32>
    %30 = vector.extract_strided_slice %24 {offsets = [0, 0, 0], sizes = [2, 8, 8], strides = [1, 1, 1]} : vector<2x8x32xf32> to vector<2x8x8xf32>
    %31 = vector.extract_strided_slice %29 {offsets = [0, 0, 0], sizes = [2, 8, 8], strides = [1, 1, 1]} : vector<2x32x8xf32> to vector<2x8x8xf32>
    "tpu.trace_start"() <{level = 10 : i32, message = "bqd,bdk->bqk"}> : () -> ()
    %cst_21 = arith.constant dense<0.000000e+00> : vector<2x8x8xf32>
    %32 = tpu.matmul %30, %31, %cst_21 {dimension_numbers = #tpu.dot_dimension_numbers<[2], [1], [1], [2], [0, 0, 0, 1, 1, 2], [0], [0]>} : vector<2x8x8xf32>, vector<2x8x8xf32>, vector<2x8x8xf32> -> vector<2x8x8xf32>
    "tpu.trace_stop"() : () -> ()
    %cst_22 = arith.constant 0.353553385 : f32
    %33 = vector.broadcast %cst_22 : f32 to vector<2x8x8xf32>
    %34 = arith.mulf %32, %33 : vector<2x8x8xf32>
    %cst_23 = arith.constant dense<0xFF800000> : vector<2x8xf32>
    %35 = vector.multi_reduction <maximumf>, %34, %cst_23 [2] : vector<2x8x8xf32> to vector<2x8xf32>
    %36 = vector.shape_cast %35 : vector<2x8xf32> to vector<2x8x1xf32>
    %37 = vector.broadcast %36 : vector<2x8x1xf32> to vector<2x8x8xf32>
    %38 = arith.subf %34, %37 : vector<2x8x8xf32>
    %39 = math.exp %38 : vector<2x8x8xf32>
    %cst_24 = arith.constant dense<0.000000e+00> : vector<2x8xf32>
    %40 = vector.multi_reduction <add>, %39, %cst_24 [2] : vector<2x8x8xf32> to vector<2x8xf32>
    %41 = vector.shape_cast %40 : vector<2x8xf32> to vector<2x8x1xf32>
    %42 = vector.broadcast %41 : vector<2x8x1xf32> to vector<2x8x8xf32>
    %43 = arith.divf %39, %42 : vector<2x8x8xf32>
    %44 = vector.extract_strided_slice %28 {offsets = [0, 0, 0], sizes = [2, 8, 8], strides = [1, 1, 1]} : vector<2x8x32xf32> to vector<2x8x8xf32>
    "tpu.trace_start"() <{level = 10 : i32, message = "bqk,bkd->bqd"}> : () -> ()
    %cst_25 = arith.constant dense<0.000000e+00> : vector<2x8x8xf32>
    %45 = tpu.matmul %43, %44, %cst_25 {dimension_numbers = #tpu.dot_dimension_numbers<[2], [1], [1], [2], [0, 0, 0, 1, 1, 2], [0], [0]>} : vector<2x8x8xf32>, vector<2x8x8xf32>, vector<2x8x8xf32> -> vector<2x8x8xf32>
    "tpu.trace_stop"() : () -> ()
    %46 = vector.extract_strided_slice %24 {offsets = [0, 0, 8], sizes = [2, 8, 8], strides = [1, 1, 1]} : vector<2x8x32xf32> to vector<2x8x8xf32>
    %47 = vector.extract_strided_slice %29 {offsets = [0, 8, 0], sizes = [2, 8, 8], strides = [1, 1, 1]} : vector<2x32x8xf32> to vector<2x8x8xf32>
    "tpu.trace_start"() <{level = 10 : i32, message = "bqd,bdk->bqk"}> : () -> ()
    %cst_26 = arith.constant dense<0.000000e+00> : vector<2x8x8xf32>
    %48 = tpu.matmul %46, %47, %cst_26 {dimension_numbers = #tpu.dot_dimension_numbers<[2], [1], [1], [2], [0, 0, 0, 1, 1, 2], [0], [0]>} : vector<2x8x8xf32>, vector<2x8x8xf32>, vector<2x8x8xf32> -> vector<2x8x8xf32>
    "tpu.trace_stop"() : () -> ()
    %cst_27 = arith.constant 0.353553385 : f32
    %49 = vector.broadcast %cst_27 : f32 to vector<2x8x8xf32>
    %50 = arith.mulf %48, %49 : vector<2x8x8xf32>
    %cst_28 = arith.constant dense<0xFF800000> : vector<2x8xf32>
    %51 = vector.multi_reduction <maximumf>, %50, %cst_28 [2] : vector<2x8x8xf32> to vector<2x8xf32>
    %52 = vector.shape_cast %51 : vector<2x8xf32> to vector<2x8x1xf32>
    %53 = vector.broadcast %52 : vector<2x8x1xf32> to vector<2x8x8xf32>
    %54 = arith.subf %50, %53 : vector<2x8x8xf32>
    %55 = math.exp %54 : vector<2x8x8xf32>
    %cst_29 = arith.constant dense<0.000000e+00> : vector<2x8xf32>
    %56 = vector.multi_reduction <add>, %55, %cst_29 [2] : vector<2x8x8xf32> to vector<2x8xf32>
    %57 = vector.shape_cast %56 : vector<2x8xf32> to vector<2x8x1xf32>
    %58 = vector.broadcast %57 : vector<2x8x1xf32> to vector<2x8x8xf32>
    %59 = arith.divf %55, %58 : vector<2x8x8xf32>
    %60 = vector.extract_strided_slice %28 {offsets = [0, 0, 8], sizes = [2, 8, 8], strides = [1, 1, 1]} : vector<2x8x32xf32> to vector<2x8x8xf32>
    "tpu.trace_start"() <{level = 10 : i32, message = "bqk,bkd->bqd"}> : () -> ()
    %cst_30 = arith.constant dense<0.000000e+00> : vector<2x8x8xf32>
    %61 = tpu.matmul %59, %60, %cst_30 {dimension_numbers = #tpu.dot_dimension_numbers<[2], [1], [1], [2], [0, 0, 0, 1, 1, 2], [0], [0]>} : vector<2x8x8xf32>, vector<2x8x8xf32>, vector<2x8x8xf32> -> vector<2x8x8xf32>
    "tpu.trace_stop"() : () -> ()
    %62 = vector.extract_strided_slice %24 {offsets = [0, 0, 16], sizes = [2, 8, 8], strides = [1, 1, 1]} : vector<2x8x32xf32> to vector<2x8x8xf32>
    %63 = vector.extract_strided_slice %29 {offsets = [0, 16, 0], sizes = [2, 8, 8], strides = [1, 1, 1]} : vector<2x32x8xf32> to vector<2x8x8xf32>
    "tpu.trace_start"() <{level = 10 : i32, message = "bqd,bdk->bqk"}> : () -> ()
    %cst_31 = arith.constant dense<0.000000e+00> : vector<2x8x8xf32>
    %64 = tpu.matmul %62, %63, %cst_31 {dimension_numbers = #tpu.dot_dimension_numbers<[2], [1], [1], [2], [0, 0, 0, 1, 1, 2], [0], [0]>} : vector<2x8x8xf32>, vector<2x8x8xf32>, vector<2x8x8xf32> -> vector<2x8x8xf32>
    "tpu.trace_stop"() : () -> ()
    %cst_32 = arith.constant 0.353553385 : f32
    %65 = vector.broadcast %cst_32 : f32 to vector<2x8x8xf32>
    %66 = arith.mulf %64, %65 : vector<2x8x8xf32>
    %cst_33 = arith.constant dense<0xFF800000> : vector<2x8xf32>
    %67 = vector.multi_reduction <maximumf>, %66, %cst_33 [2] : vector<2x8x8xf32> to vector<2x8xf32>
    %68 = vector.shape_cast %67 : vector<2x8xf32> to vector<2x8x1xf32>
    %69 = vector.broadcast %68 : vector<2x8x1xf32> to vector<2x8x8xf32>
    %70 = arith.subf %66, %69 : vector<2x8x8xf32>
    %71 = math.exp %70 : vector<2x8x8xf32>
    %cst_34 = arith.constant dense<0.000000e+00> : vector<2x8xf32>
    %72 = vector.multi_reduction <add>, %71, %cst_34 [2] : vector<2x8x8xf32> to vector<2x8xf32>
    %73 = vector.shape_cast %72 : vector<2x8xf32> to vector<2x8x1xf32>
    %74 = vector.broadcast %73 : vector<2x8x1xf32> to vector<2x8x8xf32>
    %75 = arith.divf %71, %74 : vector<2x8x8xf32>
    %76 = vector.extract_strided_slice %28 {offsets = [0, 0, 16], sizes = [2, 8, 8], strides = [1, 1, 1]} : vector<2x8x32xf32> to vector<2x8x8xf32>
    "tpu.trace_start"() <{level = 10 : i32, message = "bqk,bkd->bqd"}> : () -> ()
    %cst_35 = arith.constant dense<0.000000e+00> : vector<2x8x8xf32>
    %77 = tpu.matmul %75, %76, %cst_35 {dimension_numbers = #tpu.dot_dimension_numbers<[2], [1], [1], [2], [0, 0, 0, 1, 1, 2], [0], [0]>} : vector<2x8x8xf32>, vector<2x8x8xf32>, vector<2x8x8xf32> -> vector<2x8x8xf32>
    "tpu.trace_stop"() : () -> ()
    %78 = vector.extract_strided_slice %24 {offsets = [0, 0, 24], sizes = [2, 8, 8], strides = [1, 1, 1]} : vector<2x8x32xf32> to vector<2x8x8xf32>
    %79 = vector.extract_strided_slice %29 {offsets = [0, 24, 0], sizes = [2, 8, 8], strides = [1, 1, 1]} : vector<2x32x8xf32> to vector<2x8x8xf32>
    "tpu.trace_start"() <{level = 10 : i32, message = "bqd,bdk->bqk"}> : () -> ()
    %cst_36 = arith.constant dense<0.000000e+00> : vector<2x8x8xf32>
    %80 = tpu.matmul %78, %79, %cst_36 {dimension_numbers = #tpu.dot_dimension_numbers<[2], [1], [1], [2], [0, 0, 0, 1, 1, 2], [0], [0]>} : vector<2x8x8xf32>, vector<2x8x8xf32>, vector<2x8x8xf32> -> vector<2x8x8xf32>
    "tpu.trace_stop"() : () -> ()
    %cst_37 = arith.constant 0.353553385 : f32
    %81 = vector.broadcast %cst_37 : f32 to vector<2x8x8xf32>
    %82 = arith.mulf %80, %81 : vector<2x8x8xf32>
    %cst_38 = arith.constant dense<0xFF800000> : vector<2x8xf32>
    %83 = vector.multi_reduction <maximumf>, %82, %cst_38 [2] : vector<2x8x8xf32> to vector<2x8xf32>
    %84 = vector.shape_cast %83 : vector<2x8xf32> to vector<2x8x1xf32>
    %85 = vector.broadcast %84 : vector<2x8x1xf32> to vector<2x8x8xf32>
    %86 = arith.subf %82, %85 : vector<2x8x8xf32>
    %87 = math.exp %86 : vector<2x8x8xf32>
    %cst_39 = arith.constant dense<0.000000e+00> : vector<2x8xf32>
    %88 = vector.multi_reduction <add>, %87, %cst_39 [2] : vector<2x8x8xf32> to vector<2x8xf32>
    %89 = vector.shape_cast %88 : vector<2x8xf32> to vector<2x8x1xf32>
    %90 = vector.broadcast %89 : vector<2x8x1xf32> to vector<2x8x8xf32>
    %91 = arith.divf %87, %90 : vector<2x8x8xf32>
    %92 = vector.extract_strided_slice %28 {offsets = [0, 0, 24], sizes = [2, 8, 8], strides = [1, 1, 1]} : vector<2x8x32xf32> to vector<2x8x8xf32>
    "tpu.trace_start"() <{level = 10 : i32, message = "bqk,bkd->bqd"}> : () -> ()
    %cst_40 = arith.constant dense<0.000000e+00> : vector<2x8x8xf32>
    %93 = tpu.matmul %91, %92, %cst_40 {dimension_numbers = #tpu.dot_dimension_numbers<[2], [1], [1], [2], [0, 0, 0, 1, 1, 2], [0], [0]>} : vector<2x8x8xf32>, vector<2x8x8xf32>, vector<2x8x8xf32> -> vector<2x8x8xf32>
    "tpu.trace_stop"() : () -> ()
    %94 = tpu.concatenate %45, %61, %77, %93 in 2 : vector<2x8x8xf32>, vector<2x8x8xf32>, vector<2x8x8xf32>, vector<2x8x8xf32> -> vector<2x8x32xf32>
    %95 = vector.shape_cast %94 : vector<2x8x32xf32> to vector<16x32xf32>
    %cst_41 = arith.constant dense<0.000000e+00> : vector<16x32xf32>
    %96 = tpu.matmul %95, %8, %cst_41 {dimension_numbers = #tpu.dot_dimension_numbers<[1], [0], [0], [1], [0, 0, 1, 1], [], []>} : vector<16x32xf32>, vector<32x32xf32>, vector<16x32xf32> -> vector<16x32xf32>
    %97 = vector.broadcast %14 : vector<1x32xf32> to vector<16x32xf32>
    %98 = arith.addf %96, %97 : vector<16x32xf32>
    %99 = arith.addf %4, %98 : vector<16x32xf32>
    %cst_42 = arith.constant dense<0.000000e+00> : vector<16xf32>
    %100 = vector.multi_reduction <add>, %99, %cst_42 [1] : vector<16x32xf32> to vector<16xf32>
    %101 = vector.shape_cast %100 : vector<16xf32> to vector<16x1xf32>
    %cst_43 = arith.constant 3.200000e+01 : f32
    %102 = vector.broadcast %cst_43 : f32 to vector<16x1xf32>
    %103 = arith.divf %101, %102 : vector<16x1xf32>
    %104 = vector.broadcast %103 : vector<16x1xf32> to vector<16x32xf32>
    %105 = arith.subf %99, %104 : vector<16x32xf32>
    %106 = arith.mulf %105, %105 : vector<16x32xf32>
    %cst_44 = arith.constant dense<0.000000e+00> : vector<16xf32>
    %107 = vector.multi_reduction <add>, %106, %cst_44 [1] : vector<16x32xf32> to vector<16xf32>
    %108 = vector.shape_cast %107 : vector<16xf32> to vector<16x1xf32>
    %cst_45 = arith.constant 3.200000e+01 : f32
    %109 = vector.broadcast %cst_45 : f32 to vector<16x1xf32>
    %110 = arith.divf %108, %109 : vector<16x1xf32>
    %111 = vector.broadcast %103 : vector<16x1xf32> to vector<16x32xf32>
    %112 = arith.subf %99, %111 : vector<16x32xf32>
    %cst_46 = arith.constant 9.99999974E-6 : f32
    %113 = vector.broadcast %cst_46 : f32 to vector<16x1xf32>
    %114 = arith.addf %110, %113 : vector<16x1xf32>
    %115 = math.rsqrt %114 : vector<16x1xf32>
    %116 = vector.broadcast %115 : vector<16x1xf32> to vector<16x32xf32>
    %117 = arith.mulf %112, %116 : vector<16x32xf32>
    %118 = vector.broadcast %15 : vector<1x32xf32> to vector<16x32xf32>
    %119 = arith.mulf %117, %118 : vector<16x32xf32>
    %120 = vector.broadcast %16 : vector<1x32xf32> to vector<16x32xf32>
    %121 = arith.addf %119, %120 : vector<16x32xf32>
    %cst_47 = arith.constant dense<0.000000e+00> : vector<16x128xf32>
    %122 = tpu.matmul %121, %9, %cst_47 {dimension_numbers = #tpu.dot_dimension_numbers<[1], [0], [0], [1], [0, 0, 1, 1], [], []>} : vector<16x32xf32>, vector<32x128xf32>, vector<16x128xf32> -> vector<16x128xf32>
    %123 = vector.broadcast %13 : vector<1x128xf32> to vector<16x128xf32>
    %124 = arith.addf %122, %123 : vector<16x128xf32>
    %cst_48 = arith.constant 0.000000e+00 : f32
    %125 = vector.broadcast %cst_48 : f32 to vector<16x128xf32>
    %126 = arith.maximumf %124, %125 : vector<16x128xf32>
    %cst_49 = arith.constant dense<0.000000e+00> : vector<16x32xf32>
    %127 = tpu.matmul %126, %11, %cst_49 {dimension_numbers = #tpu.dot_dimension_numbers<[1], [0], [0], [1], [0, 0, 1, 1], [], []>} : vector<16x128xf32>, vector<128x32xf32>, vector<16x32xf32> -> vector<16x32xf32>
    %128 = vector.broadcast %17 : vector<1x32xf32> to vector<16x32xf32>
    %129 = arith.addf %127, %128 : vector<16x32xf32>
    %130 = arith.addf %121, %129 : vector<16x32xf32>
    %cst_50 = arith.constant dense<0.000000e+00> : vector<16xf32>
    %131 = vector.multi_reduction <add>, %130, %cst_50 [1] : vector<16x32xf32> to vector<16xf32>
    %132 = vector.shape_cast %131 : vector<16xf32> to vector<16x1xf32>
    %cst_51 = arith.constant 3.200000e+01 : f32
    %133 = vector.broadcast %cst_51 : f32 to vector<16x1xf32>
    %134 = arith.divf %132, %133 : vector<16x1xf32>
    %135 = vector.broadcast %134 : vector<16x1xf32> to vector<16x32xf32>
    %136 = arith.subf %130, %135 : vector<16x32xf32>
    %137 = arith.mulf %136, %136 : vector<16x32xf32>
    %cst_52 = arith.constant dense<0.000000e+00> : vector<16xf32>
    %138 = vector.multi_reduction <add>, %137, %cst_52 [1] : vector<16x32xf32> to vector<16xf32>
    %139 = vector.shape_cast %138 : vector<16xf32> to vector<16x1xf32>
    %cst_53 = arith.constant 3.200000e+01 : f32
    %140 = vector.broadcast %cst_53 : f32 to vector<16x1xf32>
    %141 = arith.divf %139, %140 : vector<16x1xf32>
    %142 = vector.broadcast %134 : vector<16x1xf32> to vector<16x32xf32>
    %143 = arith.subf %130, %142 : vector<16x32xf32>
    %cst_54 = arith.constant 9.99999974E-6 : f32
    %144 = vector.broadcast %cst_54 : f32 to vector<16x1xf32>
    %145 = arith.addf %141, %144 : vector<16x1xf32>
    %146 = math.rsqrt %145 : vector<16x1xf32>
    %147 = vector.broadcast %146 : vector<16x1xf32> to vector<16x32xf32>
    %148 = arith.mulf %143, %147 : vector<16x32xf32>
    %149 = vector.broadcast %18 : vector<1x32xf32> to vector<16x32xf32>
    %150 = arith.mulf %148, %149 : vector<16x32xf32>
    %151 = vector.broadcast %19 : vector<1x32xf32> to vector<16x32xf32>
    %152 = arith.addf %150, %151 : vector<16x32xf32>
    %c1_55 = arith.constant 1 : index
    %c0_56 = arith.constant 0 : index
    %c0_57 = arith.constant 0 : index
    %153 = vector.load %arg3[%c1_55, %c0_56, %c0_57] : memref<2x32x256xf32, #tpu.memory_space<vmem>>, vector<1x32x256xf32>
    %154 = vector.shape_cast %153 : vector<1x32x256xf32> to vector<32x256xf32>
    %155 = vector.extract_strided_slice %154 {offsets = [0, 0], sizes = [32, 96], strides = [1, 1]} : vector<32x256xf32> to vector<32x96xf32>
    %156 = vector.extract_strided_slice %154 {offsets = [0, 96], sizes = [32, 32], strides = [1, 1]} : vector<32x256xf32> to vector<32x32xf32>
    %157 = vector.extract_strided_slice %154 {offsets = [0, 128], sizes = [32, 128], strides = [1, 1]} : vector<32x256xf32> to vector<32x128xf32>
    %c1_58 = arith.constant 1 : index
    %c0_59 = arith.constant 0 : index
    %c0_60 = arith.constant 0 : index
    %158 = vector.load %arg4[%c1_58, %c0_59, %c0_60] : memref<2x128x32xf32, #tpu.memory_space<vmem>>, vector<1x128x32xf32>
    %159 = vector.shape_cast %158 : vector<1x128x32xf32> to vector<128x32xf32>
    %c8 = arith.constant 8 : index
    %c0_61 = arith.constant 0 : index
    %160 = vector.load %arg5[%c8, %c0_61] : memref<18x128xf32, #tpu.memory_space<vmem>>, vector<1x96xf32>
    %c9 = arith.constant 9 : index
    %c0_62 = arith.constant 0 : index
    %161 = vector.load %arg5[%c9, %c0_62] : memref<18x128xf32, #tpu.memory_space<vmem>>, vector<1x128xf32>
    %c10 = arith.constant 10 : index
    %c0_63 = arith.constant 0 : index
    %162 = vector.load %arg5[%c10, %c0_63] : memref<18x128xf32, #tpu.memory_space<vmem>>, vector<1x32xf32>
    %c11 = arith.constant 11 : index
    %c0_64 = arith.constant 0 : index
    %163 = vector.load %arg5[%c11, %c0_64] : memref<18x128xf32, #tpu.memory_space<vmem>>, vector<1x32xf32>
    %c12 = arith.constant 12 : index
    %c0_65 = arith.constant 0 : index
    %164 = vector.load %arg5[%c12, %c0_65] : memref<18x128xf32, #tpu.memory_space<vmem>>, vector<1x32xf32>
    %c13 = arith.constant 13 : index
    %c0_66 = arith.constant 0 : index
    %165 = vector.load %arg5[%c13, %c0_66] : memref<18x128xf32, #tpu.memory_space<vmem>>, vector<1x32xf32>
    %c14 = arith.constant 14 : index
    %c0_67 = arith.constant 0 : index
    %166 = vector.load %arg5[%c14, %c0_67] : memref<18x128xf32, #tpu.memory_space<vmem>>, vector<1x32xf32>
    %c15 = arith.constant 15 : index
    %c0_68 = arith.constant 0 : index
    %167 = vector.load %arg5[%c15, %c0_68] : memref<18x128xf32, #tpu.memory_space<vmem>>, vector<1x32xf32>
    %cst_69 = arith.constant dense<0.000000e+00> : vector<16x96xf32>
    %168 = tpu.matmul %152, %155, %cst_69 {dimension_numbers = #tpu.dot_dimension_numbers<[1], [0], [0], [1], [0, 0, 1, 1], [], []>} : vector<16x32xf32>, vector<32x96xf32>, vector<16x96xf32> -> vector<16x96xf32>
    %169 = vector.broadcast %160 : vector<1x96xf32> to vector<16x96xf32>
    %170 = arith.addf %168, %169 : vector<16x96xf32>
    %171 = vector.extract_strided_slice %170 {offsets = [0, 0], sizes = [16, 32], strides = [1, 1]} : vector<16x96xf32> to vector<16x32xf32>
    %172 = vector.shape_cast %171 : vector<16x32xf32> to vector<2x8x32xf32>
    %173 = vector.extract_strided_slice %170 {offsets = [0, 32], sizes = [16, 32], strides = [1, 1]} : vector<16x96xf32> to vector<16x32xf32>
    %174 = vector.shape_cast %173 : vector<16x32xf32> to vector<2x8x32xf32>
    %175 = vector.extract_strided_slice %170 {offsets = [0, 64], sizes = [16, 32], strides = [1, 1]} : vector<16x96xf32> to vector<16x32xf32>
    %176 = vector.shape_cast %175 : vector<16x32xf32> to vector<2x8x32xf32>
    %177 = tpu.transpose %174, [0, 2, 1] : vector<2x8x32xf32> -> vector<2x32x8xf32>
    %178 = vector.extract_strided_slice %172 {offsets = [0, 0, 0], sizes = [2, 8, 8], strides = [1, 1, 1]} : vector<2x8x32xf32> to vector<2x8x8xf32>
    %179 = vector.extract_strided_slice %177 {offsets = [0, 0, 0], sizes = [2, 8, 8], strides = [1, 1, 1]} : vector<2x32x8xf32> to vector<2x8x8xf32>
    "tpu.trace_start"() <{level = 10 : i32, message = "bqd,bdk->bqk"}> : () -> ()
    %cst_70 = arith.constant dense<0.000000e+00> : vector<2x8x8xf32>
    %180 = tpu.matmul %178, %179, %cst_70 {dimension_numbers = #tpu.dot_dimension_numbers<[2], [1], [1], [2], [0, 0, 0, 1, 1, 2], [0], [0]>} : vector<2x8x8xf32>, vector<2x8x8xf32>, vector<2x8x8xf32> -> vector<2x8x8xf32>
    "tpu.trace_stop"() : () -> ()
    %cst_71 = arith.constant 0.353553385 : f32
    %181 = vector.broadcast %cst_71 : f32 to vector<2x8x8xf32>
    %182 = arith.mulf %180, %181 : vector<2x8x8xf32>
    %cst_72 = arith.constant dense<0xFF800000> : vector<2x8xf32>
    %183 = vector.multi_reduction <maximumf>, %182, %cst_72 [2] : vector<2x8x8xf32> to vector<2x8xf32>
    %184 = vector.shape_cast %183 : vector<2x8xf32> to vector<2x8x1xf32>
    %185 = vector.broadcast %184 : vector<2x8x1xf32> to vector<2x8x8xf32>
    %186 = arith.subf %182, %185 : vector<2x8x8xf32>
    %187 = math.exp %186 : vector<2x8x8xf32>
    %cst_73 = arith.constant dense<0.000000e+00> : vector<2x8xf32>
    %188 = vector.multi_reduction <add>, %187, %cst_73 [2] : vector<2x8x8xf32> to vector<2x8xf32>
    %189 = vector.shape_cast %188 : vector<2x8xf32> to vector<2x8x1xf32>
    %190 = vector.broadcast %189 : vector<2x8x1xf32> to vector<2x8x8xf32>
    %191 = arith.divf %187, %190 : vector<2x8x8xf32>
    %192 = vector.extract_strided_slice %176 {offsets = [0, 0, 0], sizes = [2, 8, 8], strides = [1, 1, 1]} : vector<2x8x32xf32> to vector<2x8x8xf32>
    "tpu.trace_start"() <{level = 10 : i32, message = "bqk,bkd->bqd"}> : () -> ()
    %cst_74 = arith.constant dense<0.000000e+00> : vector<2x8x8xf32>
    %193 = tpu.matmul %191, %192, %cst_74 {dimension_numbers = #tpu.dot_dimension_numbers<[2], [1], [1], [2], [0, 0, 0, 1, 1, 2], [0], [0]>} : vector<2x8x8xf32>, vector<2x8x8xf32>, vector<2x8x8xf32> -> vector<2x8x8xf32>
    "tpu.trace_stop"() : () -> ()
    %194 = vector.extract_strided_slice %172 {offsets = [0, 0, 8], sizes = [2, 8, 8], strides = [1, 1, 1]} : vector<2x8x32xf32> to vector<2x8x8xf32>
    %195 = vector.extract_strided_slice %177 {offsets = [0, 8, 0], sizes = [2, 8, 8], strides = [1, 1, 1]} : vector<2x32x8xf32> to vector<2x8x8xf32>
    "tpu.trace_start"() <{level = 10 : i32, message = "bqd,bdk->bqk"}> : () -> ()
    %cst_75 = arith.constant dense<0.000000e+00> : vector<2x8x8xf32>
    %196 = tpu.matmul %194, %195, %cst_75 {dimension_numbers = #tpu.dot_dimension_numbers<[2], [1], [1], [2], [0, 0, 0, 1, 1, 2], [0], [0]>} : vector<2x8x8xf32>, vector<2x8x8xf32>, vector<2x8x8xf32> -> vector<2x8x8xf32>
    "tpu.trace_stop"() : () -> ()
    %cst_76 = arith.constant 0.353553385 : f32
    %197 = vector.broadcast %cst_76 : f32 to vector<2x8x8xf32>
    %198 = arith.mulf %196, %197 : vector<2x8x8xf32>
    %cst_77 = arith.constant dense<0xFF800000> : vector<2x8xf32>
    %199 = vector.multi_reduction <maximumf>, %198, %cst_77 [2] : vector<2x8x8xf32> to vector<2x8xf32>
    %200 = vector.shape_cast %199 : vector<2x8xf32> to vector<2x8x1xf32>
    %201 = vector.broadcast %200 : vector<2x8x1xf32> to vector<2x8x8xf32>
    %202 = arith.subf %198, %201 : vector<2x8x8xf32>
    %203 = math.exp %202 : vector<2x8x8xf32>
    %cst_78 = arith.constant dense<0.000000e+00> : vector<2x8xf32>
    %204 = vector.multi_reduction <add>, %203, %cst_78 [2] : vector<2x8x8xf32> to vector<2x8xf32>
    %205 = vector.shape_cast %204 : vector<2x8xf32> to vector<2x8x1xf32>
    %206 = vector.broadcast %205 : vector<2x8x1xf32> to vector<2x8x8xf32>
    %207 = arith.divf %203, %206 : vector<2x8x8xf32>
    %208 = vector.extract_strided_slice %176 {offsets = [0, 0, 8], sizes = [2, 8, 8], strides = [1, 1, 1]} : vector<2x8x32xf32> to vector<2x8x8xf32>
    "tpu.trace_start"() <{level = 10 : i32, message = "bqk,bkd->bqd"}> : () -> ()
    %cst_79 = arith.constant dense<0.000000e+00> : vector<2x8x8xf32>
    %209 = tpu.matmul %207, %208, %cst_79 {dimension_numbers = #tpu.dot_dimension_numbers<[2], [1], [1], [2], [0, 0, 0, 1, 1, 2], [0], [0]>} : vector<2x8x8xf32>, vector<2x8x8xf32>, vector<2x8x8xf32> -> vector<2x8x8xf32>
    "tpu.trace_stop"() : () -> ()
    %210 = vector.extract_strided_slice %172 {offsets = [0, 0, 16], sizes = [2, 8, 8], strides = [1, 1, 1]} : vector<2x8x32xf32> to vector<2x8x8xf32>
    %211 = vector.extract_strided_slice %177 {offsets = [0, 16, 0], sizes = [2, 8, 8], strides = [1, 1, 1]} : vector<2x32x8xf32> to vector<2x8x8xf32>
    "tpu.trace_start"() <{level = 10 : i32, message = "bqd,bdk->bqk"}> : () -> ()
    %cst_80 = arith.constant dense<0.000000e+00> : vector<2x8x8xf32>
    %212 = tpu.matmul %210, %211, %cst_80 {dimension_numbers = #tpu.dot_dimension_numbers<[2], [1], [1], [2], [0, 0, 0, 1, 1, 2], [0], [0]>} : vector<2x8x8xf32>, vector<2x8x8xf32>, vector<2x8x8xf32> -> vector<2x8x8xf32>
    "tpu.trace_stop"() : () -> ()
    %cst_81 = arith.constant 0.353553385 : f32
    %213 = vector.broadcast %cst_81 : f32 to vector<2x8x8xf32>
    %214 = arith.mulf %212, %213 : vector<2x8x8xf32>
    %cst_82 = arith.constant dense<0xFF800000> : vector<2x8xf32>
    %215 = vector.multi_reduction <maximumf>, %214, %cst_82 [2] : vector<2x8x8xf32> to vector<2x8xf32>
    %216 = vector.shape_cast %215 : vector<2x8xf32> to vector<2x8x1xf32>
    %217 = vector.broadcast %216 : vector<2x8x1xf32> to vector<2x8x8xf32>
    %218 = arith.subf %214, %217 : vector<2x8x8xf32>
    %219 = math.exp %218 : vector<2x8x8xf32>
    %cst_83 = arith.constant dense<0.000000e+00> : vector<2x8xf32>
    %220 = vector.multi_reduction <add>, %219, %cst_83 [2] : vector<2x8x8xf32> to vector<2x8xf32>
    %221 = vector.shape_cast %220 : vector<2x8xf32> to vector<2x8x1xf32>
    %222 = vector.broadcast %221 : vector<2x8x1xf32> to vector<2x8x8xf32>
    %223 = arith.divf %219, %222 : vector<2x8x8xf32>
    %224 = vector.extract_strided_slice %176 {offsets = [0, 0, 16], sizes = [2, 8, 8], strides = [1, 1, 1]} : vector<2x8x32xf32> to vector<2x8x8xf32>
    "tpu.trace_start"() <{level = 10 : i32, message = "bqk,bkd->bqd"}> : () -> ()
    %cst_84 = arith.constant dense<0.000000e+00> : vector<2x8x8xf32>
    %225 = tpu.matmul %223, %224, %cst_84 {dimension_numbers = #tpu.dot_dimension_numbers<[2], [1], [1], [2], [0, 0, 0, 1, 1, 2], [0], [0]>} : vector<2x8x8xf32>, vector<2x8x8xf32>, vector<2x8x8xf32> -> vector<2x8x8xf32>
    "tpu.trace_stop"() : () -> ()
    %226 = vector.extract_strided_slice %172 {offsets = [0, 0, 24], sizes = [2, 8, 8], strides = [1, 1, 1]} : vector<2x8x32xf32> to vector<2x8x8xf32>
    %227 = vector.extract_strided_slice %177 {offsets = [0, 24, 0], sizes = [2, 8, 8], strides = [1, 1, 1]} : vector<2x32x8xf32> to vector<2x8x8xf32>
    "tpu.trace_start"() <{level = 10 : i32, message = "bqd,bdk->bqk"}> : () -> ()
    %cst_85 = arith.constant dense<0.000000e+00> : vector<2x8x8xf32>
    %228 = tpu.matmul %226, %227, %cst_85 {dimension_numbers = #tpu.dot_dimension_numbers<[2], [1], [1], [2], [0, 0, 0, 1, 1, 2], [0], [0]>} : vector<2x8x8xf32>, vector<2x8x8xf32>, vector<2x8x8xf32> -> vector<2x8x8xf32>
    "tpu.trace_stop"() : () -> ()
    %cst_86 = arith.constant 0.353553385 : f32
    %229 = vector.broadcast %cst_86 : f32 to vector<2x8x8xf32>
    %230 = arith.mulf %228, %229 : vector<2x8x8xf32>
    %cst_87 = arith.constant dense<0xFF800000> : vector<2x8xf32>
    %231 = vector.multi_reduction <maximumf>, %230, %cst_87 [2] : vector<2x8x8xf32> to vector<2x8xf32>
    %232 = vector.shape_cast %231 : vector<2x8xf32> to vector<2x8x1xf32>
    %233 = vector.broadcast %232 : vector<2x8x1xf32> to vector<2x8x8xf32>
    %234 = arith.subf %230, %233 : vector<2x8x8xf32>
    %235 = math.exp %234 : vector<2x8x8xf32>
    %cst_88 = arith.constant dense<0.000000e+00> : vector<2x8xf32>
    %236 = vector.multi_reduction <add>, %235, %cst_88 [2] : vector<2x8x8xf32> to vector<2x8xf32>
    %237 = vector.shape_cast %236 : vector<2x8xf32> to vector<2x8x1xf32>
    %238 = vector.broadcast %237 : vector<2x8x1xf32> to vector<2x8x8xf32>
    %239 = arith.divf %235, %238 : vector<2x8x8xf32>
    %240 = vector.extract_strided_slice %176 {offsets = [0, 0, 24], sizes = [2, 8, 8], strides = [1, 1, 1]} : vector<2x8x32xf32> to vector<2x8x8xf32>
    "tpu.trace_start"() <{level = 10 : i32, message = "bqk,bkd->bqd"}> : () -> ()
    %cst_89 = arith.constant dense<0.000000e+00> : vector<2x8x8xf32>
    %241 = tpu.matmul %239, %240, %cst_89 {dimension_numbers = #tpu.dot_dimension_numbers<[2], [1], [1], [2], [0, 0, 0, 1, 1, 2], [0], [0]>} : vector<2x8x8xf32>, vector<2x8x8xf32>, vector<2x8x8xf32> -> vector<2x8x8xf32>
    "tpu.trace_stop"() : () -> ()
    %242 = tpu.concatenate %193, %209, %225, %241 in 2 : vector<2x8x8xf32>, vector<2x8x8xf32>, vector<2x8x8xf32>, vector<2x8x8xf32> -> vector<2x8x32xf32>
    %243 = vector.shape_cast %242 : vector<2x8x32xf32> to vector<16x32xf32>
    %cst_90 = arith.constant dense<0.000000e+00> : vector<16x32xf32>
    %244 = tpu.matmul %243, %156, %cst_90 {dimension_numbers = #tpu.dot_dimension_numbers<[1], [0], [0], [1], [0, 0, 1, 1], [], []>} : vector<16x32xf32>, vector<32x32xf32>, vector<16x32xf32> -> vector<16x32xf32>
    %245 = vector.broadcast %162 : vector<1x32xf32> to vector<16x32xf32>
    %246 = arith.addf %244, %245 : vector<16x32xf32>
    %247 = arith.addf %152, %246 : vector<16x32xf32>
    %cst_91 = arith.constant dense<0.000000e+00> : vector<16xf32>
    %248 = vector.multi_reduction <add>, %247, %cst_91 [1] : vector<16x32xf32> to vector<16xf32>
    %249 = vector.shape_cast %248 : vector<16xf32> to vector<16x1xf32>
    %cst_92 = arith.constant 3.200000e+01 : f32
    %250 = vector.broadcast %cst_92 : f32 to vector<16x1xf32>
    %251 = arith.divf %249, %250 : vector<16x1xf32>
    %252 = vector.broadcast %251 : vector<16x1xf32> to vector<16x32xf32>
    %253 = arith.subf %247, %252 : vector<16x32xf32>
    %254 = arith.mulf %253, %253 : vector<16x32xf32>
    %cst_93 = arith.constant dense<0.000000e+00> : vector<16xf32>
    %255 = vector.multi_reduction <add>, %254, %cst_93 [1] : vector<16x32xf32> to vector<16xf32>
    %256 = vector.shape_cast %255 : vector<16xf32> to vector<16x1xf32>
    %cst_94 = arith.constant 3.200000e+01 : f32
    %257 = vector.broadcast %cst_94 : f32 to vector<16x1xf32>
    %258 = arith.divf %256, %257 : vector<16x1xf32>
    %259 = vector.broadcast %251 : vector<16x1xf32> to vector<16x32xf32>
    %260 = arith.subf %247, %259 : vector<16x32xf32>
    %cst_95 = arith.constant 9.99999974E-6 : f32
    %261 = vector.broadcast %cst_95 : f32 to vector<16x1xf32>
    %262 = arith.addf %258, %261 : vector<16x1xf32>
    %263 = math.rsqrt %262 : vector<16x1xf32>
    %264 = vector.broadcast %263 : vector<16x1xf32> to vector<16x32xf32>
    %265 = arith.mulf %260, %264 : vector<16x32xf32>
    %266 = vector.broadcast %163 : vector<1x32xf32> to vector<16x32xf32>
    %267 = arith.mulf %265, %266 : vector<16x32xf32>
    %268 = vector.broadcast %164 : vector<1x32xf32> to vector<16x32xf32>
    %269 = arith.addf %267, %268 : vector<16x32xf32>
    %cst_96 = arith.constant dense<0.000000e+00> : vector<16x128xf32>
    %270 = tpu.matmul %269, %157, %cst_96 {dimension_numbers = #tpu.dot_dimension_numbers<[1], [0], [0], [1], [0, 0, 1, 1], [], []>} : vector<16x32xf32>, vector<32x128xf32>, vector<16x128xf32> -> vector<16x128xf32>
    %271 = vector.broadcast %161 : vector<1x128xf32> to vector<16x128xf32>
    %272 = arith.addf %270, %271 : vector<16x128xf32>
    %cst_97 = arith.constant 0.000000e+00 : f32
    %273 = vector.broadcast %cst_97 : f32 to vector<16x128xf32>
    %274 = arith.maximumf %272, %273 : vector<16x128xf32>
    %cst_98 = arith.constant dense<0.000000e+00> : vector<16x32xf32>
    %275 = tpu.matmul %274, %159, %cst_98 {dimension_numbers = #tpu.dot_dimension_numbers<[1], [0], [0], [1], [0, 0, 1, 1], [], []>} : vector<16x128xf32>, vector<128x32xf32>, vector<16x32xf32> -> vector<16x32xf32>
    %276 = vector.broadcast %165 : vector<1x32xf32> to vector<16x32xf32>
    %277 = arith.addf %275, %276 : vector<16x32xf32>
    %278 = arith.addf %269, %277 : vector<16x32xf32>
    %cst_99 = arith.constant dense<0.000000e+00> : vector<16xf32>
    %279 = vector.multi_reduction <add>, %278, %cst_99 [1] : vector<16x32xf32> to vector<16xf32>
    %280 = vector.shape_cast %279 : vector<16xf32> to vector<16x1xf32>
    %cst_100 = arith.constant 3.200000e+01 : f32
    %281 = vector.broadcast %cst_100 : f32 to vector<16x1xf32>
    %282 = arith.divf %280, %281 : vector<16x1xf32>
    %283 = vector.broadcast %282 : vector<16x1xf32> to vector<16x32xf32>
    %284 = arith.subf %278, %283 : vector<16x32xf32>
    %285 = arith.mulf %284, %284 : vector<16x32xf32>
    %cst_101 = arith.constant dense<0.000000e+00> : vector<16xf32>
    %286 = vector.multi_reduction <add>, %285, %cst_101 [1] : vector<16x32xf32> to vector<16xf32>
    %287 = vector.shape_cast %286 : vector<16xf32> to vector<16x1xf32>
    %cst_102 = arith.constant 3.200000e+01 : f32
    %288 = vector.broadcast %cst_102 : f32 to vector<16x1xf32>
    %289 = arith.divf %287, %288 : vector<16x1xf32>
    %290 = vector.broadcast %282 : vector<16x1xf32> to vector<16x32xf32>
    %291 = arith.subf %278, %290 : vector<16x32xf32>
    %cst_103 = arith.constant 9.99999974E-6 : f32
    %292 = vector.broadcast %cst_103 : f32 to vector<16x1xf32>
    %293 = arith.addf %289, %292 : vector<16x1xf32>
    %294 = math.rsqrt %293 : vector<16x1xf32>
    %295 = vector.broadcast %294 : vector<16x1xf32> to vector<16x32xf32>
    %296 = arith.mulf %291, %295 : vector<16x32xf32>
    %297 = vector.broadcast %166 : vector<1x32xf32> to vector<16x32xf32>
    %298 = arith.mulf %296, %297 : vector<16x32xf32>
    %299 = vector.broadcast %167 : vector<1x32xf32> to vector<16x32xf32>
    %300 = arith.addf %298, %299 : vector<16x32xf32>
    %301 = vector.extract_strided_slice %300 {offsets = [7, 0], sizes = [1, 32], strides = [1, 1]} : vector<16x32xf32> to vector<1x32xf32>
    %302 = vector.extract_strided_slice %300 {offsets = [15, 0], sizes = [1, 32], strides = [1, 1]} : vector<16x32xf32> to vector<1x32xf32>
    %303 = tpu.concatenate %301, %302 in 0 : vector<1x32xf32>, vector<1x32xf32> -> vector<2x32xf32>
    %c16 = arith.constant 16 : index
    %c0_104 = arith.constant 0 : index
    %304 = vector.load %arg5[%c16, %c0_104] : memref<18x128xf32, #tpu.memory_space<vmem>>, vector<1x32xf32>
    %c17 = arith.constant 17 : index
    %c0_105 = arith.constant 0 : index
    %305 = vector.load %arg5[%c17, %c0_105] : memref<18x128xf32, #tpu.memory_space<vmem>>, vector<1x1xf32>
    %306 = vector.broadcast %304 : vector<1x32xf32> to vector<2x32xf32>
    %307 = arith.mulf %303, %306 : vector<2x32xf32>
    %cst_106 = arith.constant dense<0.000000e+00> : vector<2xf32>
    %308 = vector.multi_reduction <add>, %307, %cst_106 [1] : vector<2x32xf32> to vector<2xf32>
    %309 = vector.shape_cast %308 : vector<2xf32> to vector<2x1xf32>
    %310 = vector.broadcast %305 : vector<1x1xf32> to vector<2x1xf32>
    %311 = arith.addf %309, %310 : vector<2x1xf32>
    %c0_107 = arith.constant 0 : index
    %c0_108 = arith.constant 0 : index
    %312 = vector.load %arg6[%c0_107, %c0_108] : memref<2x1xf32, #tpu.memory_space<vmem>>, vector<2x1xf32>
    tpu.vector_store %arg6[%c0_107, %c0_108], %311 {strides = array<i32>} : memref<2x1xf32, #tpu.memory_space<vmem>>, vector<2x1xf32>,
    return
  }
}

</mosaic_0001>

<llo_original>
// kernel: transformer_forward.1
$region0: #{transformer_forward.1}
  #allocation0 [shape = 'u32[]', space=smem, size = 0x4, offset = 0x4, fixed_abs, tag = 'smem constant byte address 0x4 - core index']
  #allocation1 [shape = 'u32[144,128]{1,0:T(1,128)}', space=vmem, size = 0x12000, scoped, tag = 'internal scratch']
  %s0 = inlined_call_operand.vmem [shape: f32[16,4], index: 0, kind: input, shape index: {}]
  %s1 = inlined_call_operand.vmem [shape: f32[4,32], index: 1, kind: input, shape index: {}]
  %s2 = inlined_call_operand.vmem [shape: f32[16,32], index: 2, kind: input, shape index: {}]
  %s3 = inlined_call_operand.vmem [shape: f32[2,32,256], index: 3, kind: input, shape index: {}]
  %s4 = inlined_call_operand.vmem [shape: f32[2,128,32], index: 4, kind: input, shape index: {}]
  %s5 = inlined_call_operand.vmem [shape: f32[18,128], index: 5, kind: input, shape index: {}]
  %s6 = inlined_call_operand.vmem [shape: f32[2,1], index: 6, kind: output, shape index: {}]
  %s7 = sld [smem:[#allocation0]]
  $region34: #{transformer_forward.1} parent=0
    _
  %s9 = ssub.s32 1, %s7
  %s10 = scalar_select 0, %s9, %s7
  // Predicated region
  $region2: #{transformer_forward.1} parent=0 // pred_check
    _
  $region3: #{transformer_forward.1} parent=0 // pred_check_branch
    %12 = sbr.rel (0) target = $region5
  $region4: #{transformer_forward.1} parent=0 // pred_region
    _
  $region5: #{transformer_forward.1} parent=0 // pred_fallthru
    _
  // Predicated region
  $region6: #{transformer_forward.1} parent=0 // pred_check
    _
  $region7: #{transformer_forward.1} parent=0 // pred_check_branch
    %14 = sbr.rel (0) target = $region9
  $region8: #{transformer_forward.1} parent=0 // pred_region
    _
  $region9: #{transformer_forward.1} parent=0 // pred_fallthru
    _
  // Predicated region
  $region10: #{transformer_forward.1} parent=0 // pred_check
    _
  $region11: #{transformer_forward.1} parent=0 // pred_check_branch
    %16 = sbr.rel (0) target = $region13
  $region12: #{transformer_forward.1} parent=0 // pred_region
    _
  $region13: #{transformer_forward.1} parent=0 // pred_fallthru
    _
  // Predicated region
  $region14: #{transformer_forward.1} parent=0 // pred_check
    _
  $region15: #{transformer_forward.1} parent=0 // pred_check_branch
    %18 = sbr.rel (0) target = $region17
  $region16: #{transformer_forward.1} parent=0 // pred_region
    _
  $region17: #{transformer_forward.1} parent=0 // pred_fallthru
    _
  // Predicated region
  $region18: #{transformer_forward.1} parent=0 // pred_check
    _
  $region19: #{transformer_forward.1} parent=0 // pred_check_branch
    %20 = sbr.rel (0) target = $region21
  $region20: #{transformer_forward.1} parent=0 // pred_region
    _
  $region21: #{transformer_forward.1} parent=0 // pred_fallthru
    _
  // Predicated region
  $region22: #{transformer_forward.1} parent=0 // pred_check
    _
  $region23: #{transformer_forward.1} parent=0 // pred_check_branch
    %22 = sbr.rel (0) target = $region25
  $region24: #{transformer_forward.1} parent=0 // pred_region
    _
  $region25: #{transformer_forward.1} parent=0 // pred_fallthru
    _
  %v23 = vld [vmem:[%s0] sm:$0xff]
  %v24 = vld [vmem:[%s0 + $0x8] sm:$0xff]
  %v25 = vld [vmem:[%s1] sm:$0xf]
  %v26 = vld [vmem:[%s2] sm:$0xff]
  %v27 = vld [vmem:[%s2 + $0x8] sm:$0xff]
  %vm28 = vcmask 31744
  %v30 = vsel %vm28, %v23, 0
  %v33 = vsel %vm28, %v24, 0
  %vm35 = vcmask 1043456
  %v37 = vsel %vm35, %v25, 0
  %39 = vmatprep.subr.mxu0 0.0
  %40 = vmatpush1.msra.mxu0 %v37
  %41 = vmatprep.subr.mxu0 0.0
  %42 = vmatpush1.msra.mxu0 0.0
  %43 = vmatprep.subr.mxu0 0.0
  %44 = vmatpush1.msra.mxu0 0.0
  %45 = vmatprep.subr.mxu0 0.0
  %46 = vmatpush1.msra.mxu0 0.0
  %47 = vmatprep.subr.mxu0 0.0
  %48 = vmatpush1.msra.mxu0 0.0
  %49 = vmatprep.subr.mxu0 0.0
  %50 = vmatpush1.msra.mxu0 0.0
  %51 = vmatprep.subr.mxu0 0.0
  %52 = vmatpush1.msra.mxu0 0.0
  %53 = vmatprep.subr.mxu0 0.0
  %54 = vmatpush1.msra.mxu0 0.0
  %55 = vmatprep.subr.mxu0 0.0
  %56 = vmatpush1.msra.mxu0 0.0
  %57 = vmatprep.subr.mxu0 0.0
  %58 = vmatpush1.msra.mxu0 0.0
  %59 = vmatprep.subr.mxu0 0.0
  %60 = vmatpush1.msra.mxu0 0.0
  %61 = vmatprep.subr.mxu0 0.0
  %62 = vmatpush1.msra.mxu0 0.0
  %63 = vmatprep.subr.mxu0 0.0
  %64 = vmatpush1.msra.mxu0 0.0
  %65 = vmatprep.subr.mxu0 0.0
  %66 = vmatpush1.msra.mxu0 0.0
  %67 = vmatprep.subr.mxu0 0.0
  %68 = vmatpush1.msra.mxu0 0.0
  %69 = vmatprep.subr.mxu0 0.0
  %70 = vmatpush1.msra.mxu0 0.0
  %71 = vmatprep.subr.mxu0 0.0
  %72 = vmatpush1.msra.mxu0 0.0
  %73 = vmatprep.subr.mxu0 0.0
  %74 = vmatpush1.msra.mxu0 0.0
  %75 = vmatprep.subr.mxu0 0.0
  %76 = vmatpush1.msra.mxu0 0.0
  %77 = vmatprep.subr.mxu0 0.0
  %78 = vmatpush1.msra.mxu0 0.0
  %79 = vmatprep.subr.mxu0 0.0
  %80 = vmatpush1.msra.mxu0 0.0
  %81 = vmatprep.subr.mxu0 0.0
  %82 = vmatpush1.msra.mxu0 0.0
  %83 = vmatprep.subr.mxu0 0.0
  %84 = vmatpush1.msra.mxu0 0.0
  %85 = vmatprep.subr.mxu0 0.0
  %86 = vmatpush1.msra.mxu0 0.0
  %87 = vmatprep.subr.mxu0 0.0
  %88 = vmatpush1.msra.mxu0 0.0
  %89 = vmatprep.subr.mxu0 0.0
  %90 = vmatpush1.msra.mxu0 0.0
  %91 = vmatprep.subr.mxu0 0.0
  %92 = vmatpush1.msra.mxu0 0.0
  %93 = vmatprep.subr.mxu0 0.0
  %94 = vmatpush1.msra.mxu0 0.0
  %95 = vmatprep.subr.mxu0 0.0
  %96 = vmatpush1.msra.mxu0 0.0
  %97 = vmatprep.subr.mxu0 0.0
  %98 = vmatpush1.msra.mxu0 0.0
  %99 = vmatprep.subr.mxu0 0.0
  %100 = vmatpush1.msra.mxu0 0.0
  %101 = vmatprep.subr.mxu0 0.0
  %102 = vmatpush1.msra.mxu0 0.0
  %103 = vmatprep.mubr.f32.mxu0 0.0
  %104 = vmatmul.mubr.f32.gmra.mrb[0].mxu0 %v30
  %v105 = vpop.f32.mrb[0].mxu0
  %v106 = vadd.f32 %v26, %v105
  %v107 = vpop.f32.mrb[0].mxu0
  %108 = vmatprep.mubr.f32.mxu0 0.0
  %109 = vmatmul.mubr.f32.gmra.mrb[0].mxu0 %v33
  %v110 = vpop.f32.mrb[0].mxu0
  %v111 = vadd.f32 %v27, %v110
  %v112 = vpop.f32.mrb[0].mxu0
  %113 = vdwg.mxu0
  %v114 = vld [vmem:[%s3] sm:$0xff]
  %v115 = vld [vmem:[%s3 + $0x8] sm:$0xff]
  %v116 = vld [vmem:[%s3 + $0x10] sm:$0xff]
  %v117 = vld [vmem:[%s3 + $0x18] sm:$0xff]
  %v118 = vld [vmem:[%s3 + $0x20] sm:$0xff]
  %v119 = vld [vmem:[%s3 + $0x28] sm:$0xff]
  %v120 = vld [vmem:[%s3 + $0x30] sm:$0xff]
  %v121 = vld [vmem:[%s3 + $0x38] sm:$0xff]
  %v122 = vld [vmem:[%s4] sm:$0xff]
  %v123 = vld [vmem:[%s4 + $0x8] sm:$0xff]
  %v124 = vld [vmem:[%s4 + $0x10] sm:$0xff]
  %v125 = vld [vmem:[%s4 + $0x18] sm:$0xff]
  %v126 = vld [vmem:[%s4 + $0x20] sm:$0xff]
  %v127 = vld [vmem:[%s4 + $0x28] sm:$0xff]
  %v128 = vld [vmem:[%s4 + $0x30] sm:$0xff]
  %v129 = vld [vmem:[%s4 + $0x38] sm:$0xff]
  %v130 = vld [vmem:[%s4 + $0x40] sm:$0xff]
  %v131 = vld [vmem:[%s4 + $0x48] sm:$0xff]
  %v132 = vld [vmem:[%s4 + $0x50] sm:$0xff]
  %v133 = vld [vmem:[%s4 + $0x58] sm:$0xff]
  %v134 = vld [vmem:[%s4 + $0x60] sm:$0xff]
  %v135 = vld [vmem:[%s4 + $0x68] sm:$0xff]
  %v136 = vld [vmem:[%s4 + $0x70] sm:$0xff]
  %v137 = vld [vmem:[%s4 + $0x78] sm:$0xff]
  %v138 = vld [vmem:[%s5] sm:$0x1]
  %v139 = vld [vmem:[%s5 + $0x1] sm:$0x1]
  %v140 = vld [vmem:[%s5 + $0x2] sm:$0x1]
  %v141 = vld [vmem:[%s5 + $0x3] sm:$0x1]
  %v142 = vld [vmem:[%s5 + $0x4] sm:$0x1]
  %v143 = vld [vmem:[%s5 + $0x5] sm:$0x1]
  %v144 = vld [vmem:[%s5 + $0x6] sm:$0x1]
  %v145 = vld [vmem:[%s5 + $0x7] sm:$0x1]
  %v146 = vlaneseq
  %v147 = vshrl.u32 %v146, 7
  %v148 = vsub.s32 0, %v147
  %v149 = vrot.slane %v138, %v148
  %vm150 = vcmask 261120
  %v152 = vsel %vm150, %v106, 0
  %v155 = vsel %vm150, %v111, 0
  %157 = vmatprep.subr.mxu0 0.0
  %158 = vmatpush1.msra.mxu0 %v114
  %159 = vmatprep.subr.mxu0 0.0
  %160 = vmatpush1.msra.mxu0 %v116
  %161 = vmatprep.subr.mxu0 0.0
  %162 = vmatpush1.msra.mxu0 %v118
  %163 = vmatprep.subr.mxu0 0.0
  %164 = vmatpush1.msra.mxu0 %v120
  %165 = vmatprep.subr.mxu0 0.0
  %166 = vmatpush1.msra.mxu0 0.0
  %167 = vmatprep.subr.mxu0 0.0
  %168 = vmatpush1.msra.mxu0 0.0
  %169 = vmatprep.subr.mxu0 0.0
  %170 = vmatpush1.msra.mxu0 0.0
  %171 = vmatprep.subr.mxu0 0.0
  %172 = vmatpush1.msra.mxu0 0.0
  %173 = vmatprep.subr.mxu0 0.0
  %174 = vmatpush1.msra.mxu0 0.0
  %175 = vmatprep.subr.mxu0 0.0
  %176 = vmatpush1.msra.mxu0 0.0
  %177 = vmatprep.subr.mxu0 0.0
  %178 = vmatpush1.msra.mxu0 0.0
  %179 = vmatprep.subr.mxu0 0.0
  %180 = vmatpush1.msra.mxu0 0.0
  %181 = vmatprep.subr.mxu0 0.0
  %182 = vmatpush1.msra.mxu0 0.0
  %183 = vmatprep.subr.mxu0 0.0
  %184 = vmatpush1.msra.mxu0 0.0
  %185 = vmatprep.subr.mxu0 0.0
  %186 = vmatpush1.msra.mxu0 0.0
  %187 = vmatprep.subr.mxu0 0.0
  %188 = vmatpush1.msra.mxu0 0.0
  %189 = vmatprep.subr.mxu0 0.0
  %190 = vmatpush1.msra.mxu0 0.0
  %191 = vmatprep.subr.mxu0 0.0
  %192 = vmatpush1.msra.mxu0 0.0
  %193 = vmatprep.subr.mxu0 0.0
  %194 = vmatpush1.msra.mxu0 0.0
  %195 = vmatprep.subr.mxu0 0.0
  %196 = vmatpush1.msra.mxu0 0.0
  %197 = vmatprep.subr.mxu0 0.0
  %198 = vmatpush1.msra.mxu0 0.0
  %199 = vmatprep.subr.mxu0 0.0
  %200 = vmatpush1.msra.mxu0 0.0
  %201 = vmatprep.subr.mxu0 0.0
  %202 = vmatpush1.msra.mxu0 0.0
  %203 = vmatprep.subr.mxu0 0.0
  %204 = vmatpush1.msra.mxu0 0.0
  %205 = vmatprep.subr.mxu0 0.0
  %206 = vmatpush1.msra.mxu0 0.0
  %207 = vmatprep.subr.mxu0 0.0
  %208 = vmatpush1.msra.mxu0 0.0
  %209 = vmatprep.subr.mxu0 0.0
  %210 = vmatpush1.msra.mxu0 0.0
  %211 = vmatprep.subr.mxu0 0.0
  %212 = vmatpush1.msra.mxu0 0.0
  %213 = vmatprep.subr.mxu0 0.0
  %214 = vmatpush1.msra.mxu0 0.0
  %215 = vmatprep.subr.mxu0 0.0
  %216 = vmatpush1.msra.mxu0 0.0
  %217 = vmatprep.subr.mxu0 0.0
  %218 = vmatpush1.msra.mxu0 0.0
  %219 = vmatprep.subr.mxu0 0.0
  %220 = vmatpush1.msra.mxu0 0.0
  %221 = vmatprep.mubr.f32.mxu0 0.0
  %222 = vmatmul.mubr.f32.gmra.mrb[0].mxu0 %v152
  %v223 = vpop.f32.mrb[0].mxu0
  %v224 = vadd.f32 %v149, %v223
  %v225 = vpop.f32.mrb[0].mxu0
  %226 = vmatprep.mubr.f32.mxu0 0.0
  %227 = vmatmul.mubr.f32.gmra.mrb[0].mxu0 %v155
  %v228 = vpop.f32.mrb[0].mxu0
  %v229 = vadd.f32 %v149, %v228
  %v230 = vpop.f32.mrb[0].mxu0
  %231 = vdwg.mxu0
  %233 = vrot.lane.b32.xlu0 %v224, 96
  %v234 = vpop.permute.xlu0 %233
  %vm235 = vcmask 64512
  %v236 = vsel %vm235, %v224, 0
  %v238 = vsel %vm235, %v234, 0
  %240 = vmatprep.subr.mxu0 0.0
  %241 = vmatpush1.xpose.msra.mxu0 %v238
  %242 = vmatprep.subr.mxu0 0.0
  %243 = vmatpush1.xpose.msra.mxu0 0.0
  %244 = vmatprep.subr.mxu0 0.0
  %245 = vmatpush1.xpose.msra.mxu0 0.0
  %246 = vmatprep.subr.mxu0 0.0
  %247 = vmatpush1.xpose.msra.mxu0 0.0
  %248 = vmatprep.subr.mxu0 0.0
  %249 = vmatpush1.xpose.msra.mxu0 0.0
  %250 = vmatprep.subr.mxu0 0.0
  %251 = vmatpush1.xpose.msra.mxu0 0.0
  %252 = vmatprep.subr.mxu0 0.0
  %253 = vmatpush1.xpose.msra.mxu0 0.0
  %254 = vmatprep.subr.mxu0 0.0
  %255 = vmatpush1.xpose.msra.mxu0 0.0
  %256 = vmatprep.subr.mxu0 0.0
  %257 = vmatpush1.xpose.msra.mxu0 0.0
  %258 = vmatprep.subr.mxu0 0.0
  %259 = vmatpush1.xpose.msra.mxu0 0.0
  %260 = vmatprep.subr.mxu0 0.0
  %261 = vmatpush1.xpose.msra.mxu0 0.0
  %262 = vmatprep.subr.mxu0 0.0
  %263 = vmatpush1.xpose.msra.mxu0 0.0
  %264 = vmatprep.subr.mxu0 0.0
  %265 = vmatpush1.xpose.msra.mxu0 0.0
  %266 = vmatprep.subr.mxu0 0.0
  %267 = vmatpush1.xpose.msra.mxu0 0.0
  %268 = vmatprep.subr.mxu0 0.0
  %269 = vmatpush1.xpose.msra.mxu0 0.0
  %270 = vmatprep.subr.mxu0 0.0
  %271 = vmatpush1.xpose.msra.mxu0 0.0
  %272 = vmatprep.subr.mxu0 0.0
  %273 = vmatpush1.xpose.msra.mxu0 0.0
  %274 = vmatprep.subr.mxu0 0.0
  %275 = vmatpush1.xpose.msra.mxu0 0.0
  %276 = vmatprep.subr.mxu0 0.0
  %277 = vmatpush1.xpose.msra.mxu0 0.0
  %278 = vmatprep.subr.mxu0 0.0
  %279 = vmatpush1.xpose.msra.mxu0 0.0
  %280 = vmatprep.subr.mxu0 0.0
  %281 = vmatpush1.xpose.msra.mxu0 0.0
  %282 = vmatprep.subr.mxu0 0.0
  %283 = vmatpush1.xpose.msra.mxu0 0.0
  %284 = vmatprep.subr.mxu0 0.0
  %285 = vmatpush1.xpose.msra.mxu0 0.0
  %286 = vmatprep.subr.mxu0 0.0
  %287 = vmatpush1.xpose.msra.mxu0 0.0
  %288 = vmatprep.subr.mxu0 0.0
  %289 = vmatpush1.xpose.msra.mxu0 0.0
  %290 = vmatprep.subr.mxu0 0.0
  %291 = vmatpush1.xpose.msra.mxu0 0.0
  %292 = vmatprep.subr.mxu0 0.0
  %293 = vmatpush1.xpose.msra.mxu0 0.0
  %294 = vmatprep.subr.mxu0 0.0
  %295 = vmatpush1.xpose.msra.mxu0 0.0
  %296 = vmatprep.subr.mxu0 0.0
  %297 = vmatpush1.xpose.msra.mxu0 0.0
  %298 = vmatprep.subr.mxu0 0.0
  %299 = vmatpush1.xpose.msra.mxu0 0.0
  %300 = vmatprep.subr.mxu0 0.0
  %301 = vmatpush1.xpose.msra.mxu0 0.0
  %302 = vmatprep.subr.mxu0 0.0
  %303 = vmatpush1.xpose.msra.mxu0 0.0
  %304 = vmatprep.mubr.f32.mxu0 0.0
  %305 = vmatmul.mubr.f32.gmra.mrb[0].mxu0 %v236
  %v306 = vpop.f32.mrb[0].mxu0
  %v307 = vadd.f32 0.0, %v306
  %v308 = vpop.f32.mrb[0].mxu0
  %309 = vdwg.mxu0
  %311 = vrot.lane.b32.xlu0 %v229, 96
  %v312 = vpop.permute.xlu0 %311
  %v313 = vsel %vm235, %v229, 0
  %v315 = vsel %vm235, %v312, 0
  %317 = vmatprep.subr.mxu0 0.0
  %318 = vmatpush1.xpose.msra.mxu0 %v315
  %319 = vmatprep.subr.mxu0 0.0
  %320 = vmatpush1.xpose.msra.mxu0 0.0
  %321 = vmatprep.subr.mxu0 0.0
  %322 = vmatpush1.xpose.msra.mxu0 0.0
  %323 = vmatprep.subr.mxu0 0.0
  %324 = vmatpush1.xpose.msra.mxu0 0.0
  %325 = vmatprep.subr.mxu0 0.0
  %326 = vmatpush1.xpose.msra.mxu0 0.0
  %327 = vmatprep.subr.mxu0 0.0
  %328 = vmatpush1.xpose.msra.mxu0 0.0
  %329 = vmatprep.subr.mxu0 0.0
  %330 = vmatpush1.xpose.msra.mxu0 0.0
  %331 = vmatprep.subr.mxu0 0.0
  %332 = vmatpush1.xpose.msra.mxu0 0.0
  %333 = vmatprep.subr.mxu0 0.0
  %334 = vmatpush1.xpose.msra.mxu0 0.0
  %335 = vmatprep.subr.mxu0 0.0
  %336 = vmatpush1.xpose.msra.mxu0 0.0
  %337 = vmatprep.subr.mxu0 0.0
  %338 = vmatpush1.xpose.msra.mxu0 0.0
  %339 = vmatprep.subr.mxu0 0.0
  %340 = vmatpush1.xpose.msra.mxu0 0.0
  %341 = vmatprep.subr.mxu0 0.0
  %342 = vmatpush1.xpose.msra.mxu0 0.0
  %343 = vmatprep.subr.mxu0 0.0
  %344 = vmatpush1.xpose.msra.mxu0 0.0
  %345 = vmatprep.subr.mxu0 0.0
  %346 = vmatpush1.xpose.msra.mxu0 0.0
  %347 = vmatprep.subr.mxu0 0.0
  %348 = vmatpush1.xpose.msra.mxu0 0.0
  %349 = vmatprep.subr.mxu0 0.0
  %350 = vmatpush1.xpose.msra.mxu0 0.0
  %351 = vmatprep.subr.mxu0 0.0
  %352 = vmatpush1.xpose.msra.mxu0 0.0
  %353 = vmatprep.subr.mxu0 0.0
  %354 = vmatpush1.xpose.msra.mxu0 0.0
  %355 = vmatprep.subr.mxu0 0.0
  %356 = vmatpush1.xpose.msra.mxu0 0.0
  %357 = vmatprep.subr.mxu0 0.0
  %358 = vmatpush1.xpose.msra.mxu0 0.0
  %359 = vmatprep.subr.mxu0 0.0
  %360 = vmatpush1.xpose.msra.mxu0 0.0
  %361 = vmatprep.subr.mxu0 0.0
  %362 = vmatpush1.xpose.msra.mxu0 0.0
  %363 = vmatprep.subr.mxu0 0.0
  %364 = vmatpush1.xpose.msra.mxu0 0.0
  %365 = vmatprep.subr.mxu0 0.0
  %366 = vmatpush1.xpose.msra.mxu0 0.0
  %367 = vmatprep.subr.mxu0 0.0
  %368 = vmatpush1.xpose.msra.mxu0 0.0
  %369 = vmatprep.subr.mxu0 0.0
  %370 = vmatpush1.xpose.msra.mxu0 0.0
  %371 = vmatprep.subr.mxu0 0.0
  %372 = vmatpush1.xpose.msra.mxu0 0.0
  %373 = vmatprep.subr.mxu0 0.0
  %374 = vmatpush1.xpose.msra.mxu0 0.0
  %375 = vmatprep.subr.mxu0 0.0
  %376 = vmatpush1.xpose.msra.mxu0 0.0
  %377 = vmatprep.subr.mxu0 0.0
  %378 = vmatpush1.xpose.msra.mxu0 0.0
  %379 = vmatprep.subr.mxu0 0.0
  %380 = vmatpush1.xpose.msra.mxu0 0.0
  %381 = vmatprep.mubr.f32.mxu0 0.0
  %382 = vmatmul.mubr.f32.gmra.mrb[0].mxu0 %v313
  %v383 = vpop.f32.mrb[0].mxu0
  %v384 = vadd.f32 0.0, %v383
  %v385 = vpop.f32.mrb[0].mxu0
  %386 = vdwg.mxu0
  %v387 = vmul.f32 %v307, 0.35355338
  %v388 = vmul.f32 %v384, 0.35355338
  %v389 = vsel %vm235, %v387, -inf
  %390 = vmax.xlane.f32.xlu0 %v389
  %v391 = vpop.xlane.xlu0 %390
  %v392 = vsel %vm235, %v388, -inf
  %393 = vmax.xlane.f32.xlu0 %v392
  %v394 = vpop.xlane.xlu0 %393
  %v395 = vsub.f32 %v387, %v391
  %v396 = vsub.f32 %v388, %v394
  %v397 = vmul.f32 %v395, 1.442695
  %v398 = vpow.pop %v397
  %v399 = vmul.f32 %v396, 1.442695
  %v400 = vpow.pop %v399
  %v401 = vsel %vm235, %v398, 0.0
  %402 = vadd.xlane.f32.xlu0 %v401
  %v403 = vpop.xlane.xlu0 %402
  %v404 = vsel %vm235, %v400, 0.0
  %405 = vadd.xlane.f32.xlu0 %v404
  %v406 = vpop.xlane.xlu0 %405
  %v407 = vrcp.pop %v403
  %v408 = vmul.f32 %v398, %v407
  %v409 = vrcp.pop %v406
  %v410 = vmul.f32 %v400, %v409
  %411 = vrot.lane.b32.xlu0 %v224, 64
  %v412 = vpop.permute.xlu0 %411
  %v415 = vsel %vm235, %v408, 0
  %417 = vmatprep.subr.mxu0 0.0
  %418 = vmatpush1.msra.mxu0 %v412
  %419 = vmatprep.subr.mxu0 0.0
  %420 = vmatpush1.msra.mxu0 0.0
  %421 = vmatprep.subr.mxu0 0.0
  %422 = vmatpush1.msra.mxu0 0.0
  %423 = vmatprep.subr.mxu0 0.0
  %424 = vmatpush1.msra.mxu0 0.0
  %425 = vmatprep.subr.mxu0 0.0
  %426 = vmatpush1.msra.mxu0 0.0
  %427 = vmatprep.subr.mxu0 0.0
  %428 = vmatpush1.msra.mxu0 0.0
  %429 = vmatprep.subr.mxu0 0.0
  %430 = vmatpush1.msra.mxu0 0.0
  %431 = vmatprep.subr.mxu0 0.0
  %432 = vmatpush1.msra.mxu0 0.0
  %433 = vmatprep.subr.mxu0 0.0
  %434 = vmatpush1.msra.mxu0 0.0
  %435 = vmatprep.subr.mxu0 0.0
  %436 = vmatpush1.msra.mxu0 0.0
  %437 = vmatprep.subr.mxu0 0.0
  %438 = vmatpush1.msra.mxu0 0.0
  %439 = vmatprep.subr.mxu0 0.0
  %440 = vmatpush1.msra.mxu0 0.0
  %441 = vmatprep.subr.mxu0 0.0
  %442 = vmatpush1.msra.mxu0 0.0
  %443 = vmatprep.subr.mxu0 0.0
  %444 = vmatpush1.msra.mxu0 0.0
  %445 = vmatprep.subr.mxu0 0.0
  %446 = vmatpush1.msra.mxu0 0.0
  %447 = vmatprep.subr.mxu0 0.0
  %448 = vmatpush1.msra.mxu0 0.0
  %449 = vmatprep.subr.mxu0 0.0
  %450 = vmatpush1.msra.mxu0 0.0
  %451 = vmatprep.subr.mxu0 0.0
  %452 = vmatpush1.msra.mxu0 0.0
  %453 = vmatprep.subr.mxu0 0.0
  %454 = vmatpush1.msra.mxu0 0.0
  %455 = vmatprep.subr.mxu0 0.0
  %456 = vmatpush1.msra.mxu0 0.0
  %457 = vmatprep.subr.mxu0 0.0
  %458 = vmatpush1.msra.mxu0 0.0
  %459 = vmatprep.subr.mxu0 0.0
  %460 = vmatpush1.msra.mxu0 0.0
  %461 = vmatprep.subr.mxu0 0.0
  %462 = vmatpush1.msra.mxu0 0.0
  %463 = vmatprep.subr.mxu0 0.0
  %464 = vmatpush1.msra.mxu0 0.0
  %465 = vmatprep.subr.mxu0 0.0
  %466 = vmatpush1.msra.mxu0 0.0
  %467 = vmatprep.subr.mxu0 0.0
  %468 = vmatpush1.msra.mxu0 0.0
  %469 = vmatprep.subr.mxu0 0.0
  %470 = vmatpush1.msra.mxu0 0.0
  %471 = vmatprep.subr.mxu0 0.0
  %472 = vmatpush1.msra.mxu0 0.0
  %473 = vmatprep.subr.mxu0 0.0
  %474 = vmatpush1.msra.mxu0 0.0
  %475 = vmatprep.subr.mxu0 0.0
  %476 = vmatpush1.msra.mxu0 0.0
  %477 = vmatprep.subr.mxu0 0.0
  %478 = vmatpush1.msra.mxu0 0.0
  %479 = vmatprep.subr.mxu0 0.0
  %480 = vmatpush1.msra.mxu0 0.0
  %481 = vmatprep.mubr.f32.mxu0 0.0
  %482 = vmatmul.mubr.f32.gmra.mrb[0].mxu0 %v415
  %v483 = vpop.f32.mrb[0].mxu0
  %v484 = vadd.f32 0.0, %v483
  %v485 = vpop.f32.mrb[0].mxu0
  %486 = vdwg.mxu0
  %487 = vrot.lane.b32.xlu0 %v229, 64
  %v488 = vpop.permute.xlu0 %487
  %v491 = vsel %vm235, %v410, 0
  %493 = vmatprep.subr.mxu0 0.0
  %494 = vmatpush1.msra.mxu0 %v488
  %495 = vmatprep.subr.mxu0 0.0
  %496 = vmatpush1.msra.mxu0 0.0
  %497 = vmatprep.subr.mxu0 0.0
  %498 = vmatpush1.msra.mxu0 0.0
  %499 = vmatprep.subr.mxu0 0.0
  %500 = vmatpush1.msra.mxu0 0.0
  %501 = vmatprep.subr.mxu0 0.0
  %502 = vmatpush1.msra.mxu0 0.0
  %503 = vmatprep.subr.mxu0 0.0
  %504 = vmatpush1.msra.mxu0 0.0
  %505 = vmatprep.subr.mxu0 0.0
  %506 = vmatpush1.msra.mxu0 0.0
  %507 = vmatprep.subr.mxu0 0.0
  %508 = vmatpush1.msra.mxu0 0.0
  %509 = vmatprep.subr.mxu0 0.0
  %510 = vmatpush1.msra.mxu0 0.0
  %511 = vmatprep.subr.mxu0 0.0
  %512 = vmatpush1.msra.mxu0 0.0
  %513 = vmatprep.subr.mxu0 0.0
  %514 = vmatpush1.msra.mxu0 0.0
  %515 = vmatprep.subr.mxu0 0.0
  %516 = vmatpush1.msra.mxu0 0.0
  %517 = vmatprep.subr.mxu0 0.0
  %518 = vmatpush1.msra.mxu0 0.0
  %519 = vmatprep.subr.mxu0 0.0
  %520 = vmatpush1.msra.mxu0 0.0
  %521 = vmatprep.subr.mxu0 0.0
  %522 = vmatpush1.msra.mxu0 0.0
  %523 = vmatprep.subr.mxu0 0.0
  %524 = vmatpush1.msra.mxu0 0.0
  %525 = vmatprep.subr.mxu0 0.0
  %526 = vmatpush1.msra.mxu0 0.0
  %527 = vmatprep.subr.mxu0 0.0
  %528 = vmatpush1.msra.mxu0 0.0
  %529 = vmatprep.subr.mxu0 0.0
  %530 = vmatpush1.msra.mxu0 0.0
  %531 = vmatprep.subr.mxu0 0.0
  %532 = vmatpush1.msra.mxu0 0.0
  %533 = vmatprep.subr.mxu0 0.0
  %534 = vmatpush1.msra.mxu0 0.0
  %535 = vmatprep.subr.mxu0 0.0
  %536 = vmatpush1.msra.mxu0 0.0
  %537 = vmatprep.subr.mxu0 0.0
  %538 = vmatpush1.msra.mxu0 0.0
  %539 = vmatprep.subr.mxu0 0.0
  %540 = vmatpush1.msra.mxu0 0.0
  %541 = vmatprep.subr.mxu0 0.0
  %542 = vmatpush1.msra.mxu0 0.0
  %543 = vmatprep.subr.mxu0 0.0
  %544 = vmatpush1.msra.mxu0 0.0
  %545 = vmatprep.subr.mxu0 0.0
  %546 = vmatpush1.msra.mxu0 0.0
  %547 = vmatprep.subr.mxu0 0.0
  %548 = vmatpush1.msra.mxu0 0.0
  %549 = vmatprep.subr.mxu0 0.0
  %550 = vmatpush1.msra.mxu0 0.0
  %551 = vmatprep.subr.mxu0 0.0
  %552 = vmatpush1.msra.mxu0 0.0
  %553 = vmatprep.subr.mxu0 0.0
  %554 = vmatpush1.msra.mxu0 0.0
  %555 = vmatprep.subr.mxu0 0.0
  %556 = vmatpush1.msra.mxu0 0.0
  %557 = vmatprep.mubr.f32.mxu0 0.0
  %558 = vmatmul.mubr.f32.gmra.mrb[0].mxu0 %v491
  %v559 = vpop.f32.mrb[0].mxu0
  %v560 = vadd.f32 0.0, %v559
  %v561 = vpop.f32.mrb[0].mxu0
  %562 = vdwg.mxu0
  %563 = vrot.lane.b32.xlu0 %v224, 120
  %v564 = vpop.permute.xlu0 %563
  %565 = vrot.lane.b32.xlu0 %v224, 88
  %v566 = vpop.permute.xlu0 %565
  %v567 = vsel %vm235, %v564, 0
  %v569 = vsel %vm235, %v566, 0
  %571 = vmatprep.subr.mxu0 0.0
  %572 = vmatpush1.xpose.msra.mxu0 %v569
  %573 = vmatprep.subr.mxu0 0.0
  %574 = vmatpush1.xpose.msra.mxu0 0.0
  %575 = vmatprep.subr.mxu0 0.0
  %576 = vmatpush1.xpose.msra.mxu0 0.0
  %577 = vmatprep.subr.mxu0 0.0
  %578 = vmatpush1.xpose.msra.mxu0 0.0
  %579 = vmatprep.subr.mxu0 0.0
  %580 = vmatpush1.xpose.msra.mxu0 0.0
  %581 = vmatprep.subr.mxu0 0.0
  %582 = vmatpush1.xpose.msra.mxu0 0.0
  %583 = vmatprep.subr.mxu0 0.0
  %584 = vmatpush1.xpose.msra.mxu0 0.0
  %585 = vmatprep.subr.mxu0 0.0
  %586 = vmatpush1.xpose.msra.mxu0 0.0
  %587 = vmatprep.subr.mxu0 0.0
  %588 = vmatpush1.xpose.msra.mxu0 0.0
  %589 = vmatprep.subr.mxu0 0.0
  %590 = vmatpush1.xpose.msra.mxu0 0.0
  %591 = vmatprep.subr.mxu0 0.0
  %592 = vmatpush1.xpose.msra.mxu0 0.0
  %593 = vmatprep.subr.mxu0 0.0
  %594 = vmatpush1.xpose.msra.mxu0 0.0
  %595 = vmatprep.subr.mxu0 0.0
  %596 = vmatpush1.xpose.msra.mxu0 0.0
  %597 = vmatprep.subr.mxu0 0.0
  %598 = vmatpush1.xpose.msra.mxu0 0.0
  %599 = vmatprep.subr.mxu0 0.0
  %600 = vmatpush1.xpose.msra.mxu0 0.0
  %601 = vmatprep.subr.mxu0 0.0
  %602 = vmatpush1.xpose.msra.mxu0 0.0
  %603 = vmatprep.subr.mxu0 0.0
  %604 = vmatpush1.xpose.msra.mxu0 0.0
  %605 = vmatprep.subr.mxu0 0.0
  %606 = vmatpush1.xpose.msra.mxu0 0.0
  %607 = vmatprep.subr.mxu0 0.0
  %608 = vmatpush1.xpose.msra.mxu0 0.0
  %609 = vmatprep.subr.mxu0 0.0
  %610 = vmatpush1.xpose.msra.mxu0 0.0
  %611 = vmatprep.subr.mxu0 0.0
  %612 = vmatpush1.xpose.msra.mxu0 0.0
  %613 = vmatprep.subr.mxu0 0.0
  %614 = vmatpush1.xpose.msra.mxu0 0.0
  %615 = vmatprep.subr.mxu0 0.0
  %616 = vmatpush1.xpose.msra.mxu0 0.0
  %617 = vmatprep.subr.mxu0 0.0
  %618 = vmatpush1.xpose.msra.mxu0 0.0
  %619 = vmatprep.subr.mxu0 0.0
  %620 = vmatpush1.xpose.msra.mxu0 0.0
  %621 = vmatprep.subr.mxu0 0.0
  %622 = vmatpush1.xpose.msra.mxu0 0.0
  %623 = vmatprep.subr.mxu0 0.0
  %624 = vmatpush1.xpose.msra.mxu0 0.0
  %625 = vmatprep.subr.mxu0 0.0
  %626 = vmatpush1.xpose.msra.mxu0 0.0
  %627 = vmatprep.subr.mxu0 0.0
  %628 = vmatpush1.xpose.msra.mxu0 0.0
  %629 = vmatprep.subr.mxu0 0.0
  %630 = vmatpush1.xpose.msra.mxu0 0.0
  %631 = vmatprep.subr.mxu0 0.0
  %632 = vmatpush1.xpose.msra.mxu0 0.0
  %633 = vmatprep.subr.mxu0 0.0
  %634 = vmatpush1.xpose.msra.mxu0 0.0
  %635 = vmatprep.mubr.f32.mxu0 0.0
  %636 = vmatmul.mubr.f32.gmra.mrb[0].mxu0 %v567
  %v637 = vpop.f32.mrb[0].mxu0
  %v638 = vadd.f32 0.0, %v637
  %v639 = vpop.f32.mrb[0].mxu0
  %640 = vdwg.mxu0
  %641 = vrot.lane.b32.xlu0 %v229, 120
  %v642 = vpop.permute.xlu0 %641
  %643 = vrot.lane.b32.xlu0 %v229, 88
  %v644 = vpop.permute.xlu0 %643
  %v645 = vsel %vm235, %v642, 0
  %v647 = vsel %vm235, %v644, 0
  %649 = vmatprep.subr.mxu0 0.0
  %650 = vmatpush1.xpose.msra.mxu0 %v647
  %651 = vmatprep.subr.mxu0 0.0
  %652 = vmatpush1.xpose.msra.mxu0 0.0
  %653 = vmatprep.subr.mxu0 0.0
  %654 = vmatpush1.xpose.msra.mxu0 0.0
  %655 = vmatprep.subr.mxu0 0.0
  %656 = vmatpush1.xpose.msra.mxu0 0.0
  %657 = vmatprep.subr.mxu0 0.0
  %658 = vmatpush1.xpose.msra.mxu0 0.0
  %659 = vmatprep.subr.mxu0 0.0
  %660 = vmatpush1.xpose.msra.mxu0 0.0
  %661 = vmatprep.subr.mxu0 0.0
  %662 = vmatpush1.xpose.msra.mxu0 0.0
  %663 = vmatprep.subr.mxu0 0.0
  %664 = vmatpush1.xpose.msra.mxu0 0.0
  %665 = vmatprep.subr.mxu0 0.0
  %666 = vmatpush1.xpose.msra.mxu0 0.0
  %667 = vmatprep.subr.mxu0 0.0
  %668 = vmatpush1.xpose.msra.mxu0 0.0
  %669 = vmatprep.subr.mxu0 0.0
  %670 = vmatpush1.xpose.msra.mxu0 0.0
  %671 = vmatprep.subr.mxu0 0.0
  %672 = vmatpush1.xpose.msra.mxu0 0.0
  %673 = vmatprep.subr.mxu0 0.0
  %674 = vmatpush1.xpose.msra.mxu0 0.0
  %675 = vmatprep.subr.mxu0 0.0
  %676 = vmatpush1.xpose.msra.mxu0 0.0
  %677 = vmatprep.subr.mxu0 0.0
  %678 = vmatpush1.xpose.msra.mxu0 0.0
  %679 = vmatprep.subr.mxu0 0.0
  %680 = vmatpush1.xpose.msra.mxu0 0.0
  %681 = vmatprep.subr.mxu0 0.0
  %682 = vmatpush1.xpose.msra.mxu0 0.0
  %683 = vmatprep.subr.mxu0 0.0
  %684 = vmatpush1.xpose.msra.mxu0 0.0
  %685 = vmatprep.subr.mxu0 0.0
  %686 = vmatpush1.xpose.msra.mxu0 0.0
  %687 = vmatprep.subr.mxu0 0.0
  %688 = vmatpush1.xpose.msra.mxu0 0.0
  %689 = vmatprep.subr.mxu0 0.0
  %690 = vmatpush1.xpose.msra.mxu0 0.0
  %691 = vmatprep.subr.mxu0 0.0
  %692 = vmatpush1.xpose.msra.mxu0 0.0
  %693 = vmatprep.subr.mxu0 0.0
  %694 = vmatpush1.xpose.msra.mxu0 0.0
  %695 = vmatprep.subr.mxu0 0.0
  %696 = vmatpush1.xpose.msra.mxu0 0.0
  %697 = vmatprep.subr.mxu0 0.0
  %698 = vmatpush1.xpose.msra.mxu0 0.0
  %699 = vmatprep.subr.mxu0 0.0
  %700 = vmatpush1.xpose.msra.mxu0 0.0
  %701 = vmatprep.subr.mxu0 0.0
  %702 = vmatpush1.xpose.msra.mxu0 0.0
  %703 = vmatprep.subr.mxu0 0.0
  %704 = vmatpush1.xpose.msra.mxu0 0.0
  %705 = vmatprep.subr.mxu0 0.0
  %706 = vmatpush1.xpose.msra.mxu0 0.0
  %707 = vmatprep.subr.mxu0 0.0
  %708 = vmatpush1.xpose.msra.mxu0 0.0
  %709 = vmatprep.subr.mxu0 0.0
  %710 = vmatpush1.xpose.msra.mxu0 0.0
  %711 = vmatprep.subr.mxu0 0.0
  %712 = vmatpush1.xpose.msra.mxu0 0.0
  %713 = vmatprep.mubr.f32.mxu0 0.0
  %714 = vmatmul.mubr.f32.gmra.mrb[0].mxu0 %v645
  %v715 = vpop.f32.mrb[0].mxu0
  %v716 = vadd.f32 0.0, %v715
  %v717 = vpop.f32.mrb[0].mxu0
  %718 = vdwg.mxu0
  %v719 = vmul.f32 %v638, 0.35355338
  %v720 = vmul.f32 %v716, 0.35355338
  %v721 = vsel %vm235, %v719, -inf
  %722 = vmax.xlane.f32.xlu0 %v721
  %v723 = vpop.xlane.xlu0 %722
  %v724 = vsel %vm235, %v720, -inf
  %725 = vmax.xlane.f32.xlu0 %v724
  %v726 = vpop.xlane.xlu0 %725
  %v727 = vsub.f32 %v719, %v723
  %v728 = vsub.f32 %v720, %v726
  %v729 = vmul.f32 %v727, 1.442695
  %v730 = vpow.pop %v729
  %v731 = vmul.f32 %v728, 1.442695
  %v732 = vpow.pop %v731
  %v733 = vsel %vm235, %v730, 0.0
  %734 = vadd.xlane.f32.xlu0 %v733
  %v735 = vpop.xlane.xlu0 %734
  %v736 = vsel %vm235, %v732, 0.0
  %737 = vadd.xlane.f32.xlu0 %v736
  %v738 = vpop.xlane.xlu0 %737
  %v739 = vrcp.pop %v735
  %v740 = vmul.f32 %v730, %v739
  %v741 = vrcp.pop %v738
  %v742 = vmul.f32 %v732, %v741
  %743 = vrot.lane.b32.xlu0 %v224, 56
  %v744 = vpop.permute.xlu0 %743
  %v747 = vsel %vm235, %v740, 0
  %749 = vmatprep.subr.mxu0 0.0
  %750 = vmatpush1.msra.mxu0 %v744
  %751 = vmatprep.subr.mxu0 0.0
  %752 = vmatpush1.msra.mxu0 0.0
  %753 = vmatprep.subr.mxu0 0.0
  %754 = vmatpush1.msra.mxu0 0.0
  %755 = vmatprep.subr.mxu0 0.0
  %756 = vmatpush1.msra.mxu0 0.0
  %757 = vmatprep.subr.mxu0 0.0
  %758 = vmatpush1.msra.mxu0 0.0
  %759 = vmatprep.subr.mxu0 0.0
  %760 = vmatpush1.msra.mxu0 0.0
  %761 = vmatprep.subr.mxu0 0.0
  %762 = vmatpush1.msra.mxu0 0.0
  %763 = vmatprep.subr.mxu0 0.0
  %764 = vmatpush1.msra.mxu0 0.0
  %765 = vmatprep.subr.mxu0 0.0
  %766 = vmatpush1.msra.mxu0 0.0
  %767 = vmatprep.subr.mxu0 0.0
  %768 = vmatpush1.msra.mxu0 0.0
  %769 = vmatprep.subr.mxu0 0.0
  %770 = vmatpush1.msra.mxu0 0.0
  %771 = vmatprep.subr.mxu0 0.0
  %772 = vmatpush1.msra.mxu0 0.0
  %773 = vmatprep.subr.mxu0 0.0
  %774 = vmatpush1.msra.mxu0 0.0
  %775 = vmatprep.subr.mxu0 0.0
  %776 = vmatpush1.msra.mxu0 0.0
  %777 = vmatprep.subr.mxu0 0.0
  %778 = vmatpush1.msra.mxu0 0.0
  %779 = vmatprep.subr.mxu0 0.0
  %780 = vmatpush1.msra.mxu0 0.0
  %781 = vmatprep.subr.mxu0 0.0
  %782 = vmatpush1.msra.mxu0 0.0
  %783 = vmatprep.subr.mxu0 0.0
  %784 = vmatpush1.msra.mxu0 0.0
  %785 = vmatprep.subr.mxu0 0.0
  %786 = vmatpush1.msra.mxu0 0.0
  %787 = vmatprep.subr.mxu0 0.0
  %788 = vmatpush1.msra.mxu0 0.0
  %789 = vmatprep.subr.mxu0 0.0
  %790 = vmatpush1.msra.mxu0 0.0
  %791 = vmatprep.subr.mxu0 0.0
  %792 = vmatpush1.msra.mxu0 0.0
  %793 = vmatprep.subr.mxu0 0.0
  %794 = vmatpush1.msra.mxu0 0.0
  %795 = vmatprep.subr.mxu0 0.0
  %796 = vmatpush1.msra.mxu0 0.0
  %797 = vmatprep.subr.mxu0 0.0
  %798 = vmatpush1.msra.mxu0 0.0
  %799 = vmatprep.subr.mxu0 0.0
  %800 = vmatpush1.msra.mxu0 0.0
  %801 = vmatprep.subr.mxu0 0.0
  %802 = vmatpush1.msra.mxu0 0.0
  %803 = vmatprep.subr.mxu0 0.0
  %804 = vmatpush1.msra.mxu0 0.0
  %805 = vmatprep.subr.mxu0 0.0
  %806 = vmatpush1.msra.mxu0 0.0
  %807 = vmatprep.subr.mxu0 0.0
  %808 = vmatpush1.msra.mxu0 0.0
  %809 = vmatprep.subr.mxu0 0.0
  %810 = vmatpush1.msra.mxu0 0.0
  %811 = vmatprep.subr.mxu0 0.0
  %812 = vmatpush1.msra.mxu0 0.0
  %813 = vmatprep.mubr.f32.mxu0 0.0
  %814 = vmatmul.mubr.f32.gmra.mrb[0].mxu0 %v747
  %v815 = vpop.f32.mrb[0].mxu0
  %v816 = vadd.f32 0.0, %v815
  %v817 = vpop.f32.mrb[0].mxu0
  %818 = vdwg.mxu0
  %819 = vrot.lane.b32.xlu0 %v229, 56
  %v820 = vpop.permute.xlu0 %819
  %v823 = vsel %vm235, %v742, 0
  %825 = vmatprep.subr.mxu0 0.0
  %826 = vmatpush1.msra.mxu0 %v820
  %827 = vmatprep.subr.mxu0 0.0
  %828 = vmatpush1.msra.mxu0 0.0
  %829 = vmatprep.subr.mxu0 0.0
  %830 = vmatpush1.msra.mxu0 0.0
  %831 = vmatprep.subr.mxu0 0.0
  %832 = vmatpush1.msra.mxu0 0.0
  %833 = vmatprep.subr.mxu0 0.0
  %834 = vmatpush1.msra.mxu0 0.0
  %835 = vmatprep.subr.mxu0 0.0
  %836 = vmatpush1.msra.mxu0 0.0
  %837 = vmatprep.subr.mxu0 0.0
  %838 = vmatpush1.msra.mxu0 0.0
  %839 = vmatprep.subr.mxu0 0.0
  %840 = vmatpush1.msra.mxu0 0.0
  %841 = vmatprep.subr.mxu0 0.0
  %842 = vmatpush1.msra.mxu0 0.0
  %843 = vmatprep.subr.mxu0 0.0
  %844 = vmatpush1.msra.mxu0 0.0
  %845 = vmatprep.subr.mxu0 0.0
  %846 = vmatpush1.msra.mxu0 0.0
  %847 = vmatprep.subr.mxu0 0.0
  %848 = vmatpush1.msra.mxu0 0.0
  %849 = vmatprep.subr.mxu0 0.0
  %850 = vmatpush1.msra.mxu0 0.0
  %851 = vmatprep.subr.mxu0 0.0
  %852 = vmatpush1.msra.mxu0 0.0
  %853 = vmatprep.subr.mxu0 0.0
  %854 = vmatpush1.msra.mxu0 0.0
  %855 = vmatprep.subr.mxu0 0.0
  %856 = vmatpush1.msra.mxu0 0.0
  %857 = vmatprep.subr.mxu0 0.0
  %858 = vmatpush1.msra.mxu0 0.0
  %859 = vmatprep.subr.mxu0 0.0
  %860 = vmatpush1.msra.mxu0 0.0
  %861 = vmatprep.subr.mxu0 0.0
  %862 = vmatpush1.msra.mxu0 0.0
  %863 = vmatprep.subr.mxu0 0.0
  %864 = vmatpush1.msra.mxu0 0.0
  %865 = vmatprep.subr.mxu0 0.0
  %866 = vmatpush1.msra.mxu0 0.0
  %867 = vmatprep.subr.mxu0 0.0
  %868 = vmatpush1.msra.mxu0 0.0
  %869 = vmatprep.subr.mxu0 0.0
  %870 = vmatpush1.msra.mxu0 0.0
  %871 = vmatprep.subr.mxu0 0.0
  %872 = vmatpush1.msra.mxu0 0.0
  %873 = vmatprep.subr.mxu0 0.0
  %874 = vmatpush1.msra.mxu0 0.0
  %875 = vmatprep.subr.mxu0 0.0
  %876 = vmatpush1.msra.mxu0 0.0
  %877 = vmatprep.subr.mxu0 0.0
  %878 = vmatpush1.msra.mxu0 0.0
  %879 = vmatprep.subr.mxu0 0.0
  %880 = vmatpush1.msra.mxu0 0.0
  %881 = vmatprep.subr.mxu0 0.0
  %882 = vmatpush1.msra.mxu0 0.0
  %883 = vmatprep.subr.mxu0 0.0
  %884 = vmatpush1.msra.mxu0 0.0
  %885 = vmatprep.subr.mxu0 0.0
  %886 = vmatpush1.msra.mxu0 0.0
  %887 = vmatprep.subr.mxu0 0.0
  %888 = vmatpush1.msra.mxu0 0.0
  %889 = vmatprep.mubr.f32.mxu0 0.0
  %890 = vmatmul.mubr.f32.gmra.mrb[0].mxu0 %v823
  %v891 = vpop.f32.mrb[0].mxu0
  %v892 = vadd.f32 0.0, %v891
  %v893 = vpop.f32.mrb[0].mxu0
  %894 = vdwg.mxu0
  %895 = vrot.lane.b32.xlu0 %v224, 112
  %v896 = vpop.permute.xlu0 %895
  %897 = vrot.lane.b32.xlu0 %v224, 80
  %v898 = vpop.permute.xlu0 %897
  %v899 = vsel %vm235, %v896, 0
  %v901 = vsel %vm235, %v898, 0
  %903 = vmatprep.subr.mxu0 0.0
  %904 = vmatpush1.xpose.msra.mxu0 %v901
  %905 = vmatprep.subr.mxu0 0.0
  %906 = vmatpush1.xpose.msra.mxu0 0.0
  %907 = vmatprep.subr.mxu0 0.0
  %908 = vmatpush1.xpose.msra.mxu0 0.0
  %909 = vmatprep.subr.mxu0 0.0
  %910 = vmatpush1.xpose.msra.mxu0 0.0
  %911 = vmatprep.subr.mxu0 0.0
  %912 = vmatpush1.xpose.msra.mxu0 0.0
  %913 = vmatprep.subr.mxu0 0.0
  %914 = vmatpush1.xpose.msra.mxu0 0.0
  %915 = vmatprep.subr.mxu0 0.0
  %916 = vmatpush1.xpose.msra.mxu0 0.0
  %917 = vmatprep.subr.mxu0 0.0
  %918 = vmatpush1.xpose.msra.mxu0 0.0
  %919 = vmatprep.subr.mxu0 0.0
  %920 = vmatpush1.xpose.msra.mxu0 0.0
  %921 = vmatprep.subr.mxu0 0.0
  %922 = vmatpush1.xpose.msra.mxu0 0.0
  %923 = vmatprep.subr.mxu0 0.0
  %924 = vmatpush1.xpose.msra.mxu0 0.0
  %925 = vmatprep.subr.mxu0 0.0
  %926 = vmatpush1.xpose.msra.mxu0 0.0
  %927 = vmatprep.subr.mxu0 0.0
  %928 = vmatpush1.xpose.msra.mxu0 0.0
  %929 = vmatprep.subr.mxu0 0.0
  %930 = vmatpush1.xpose.msra.mxu0 0.0
  %931 = vmatprep.subr.mxu0 0.0
  %932 = vmatpush1.xpose.msra.mxu0 0.0
  %933 = vmatprep.subr.mxu0 0.0
  %934 = vmatpush1.xpose.msra.mxu0 0.0
  %935 = vmatprep.subr.mxu0 0.0
  %936 = vmatpush1.xpose.msra.mxu0 0.0
  %937 = vmatprep.subr.mxu0 0.0
  %938 = vmatpush1.xpose.msra.mxu0 0.0
  %939 = vmatprep.subr.mxu0 0.0
  %940 = vmatpush1.xpose.msra.mxu0 0.0
  %941 = vmatprep.subr.mxu0 0.0
  %942 = vmatpush1.xpose.msra.mxu0 0.0
  %943 = vmatprep.subr.mxu0 0.0
  %944 = vmatpush1.xpose.msra.mxu0 0.0
  %945 = vmatprep.subr.mxu0 0.0
  %946 = vmatpush1.xpose.msra.mxu0 0.0
  %947 = vmatprep.subr.mxu0 0.0
  %948 = vmatpush1.xpose.msra.mxu0 0.0
  %949 = vmatprep.subr.mxu0 0.0
  %950 = vmatpush1.xpose.msra.mxu0 0.0
  %951 = vmatprep.subr.mxu0 0.0
  %952 = vmatpush1.xpose.msra.mxu0 0.0
  %953 = vmatprep.subr.mxu0 0.0
  %954 = vmatpush1.xpose.msra.mxu0 0.0
  %955 = vmatprep.subr.mxu0 0.0
  %956 = vmatpush1.xpose.msra.mxu0 0.0
  %957 = vmatprep.subr.mxu0 0.0
  %958 = vmatpush1.xpose.msra.mxu0 0.0
  %959 = vmatprep.subr.mxu0 0.0
  %960 = vmatpush1.xpose.msra.mxu0 0.0
  %961 = vmatprep.subr.mxu0 0.0
  %962 = vmatpush1.xpose.msra.mxu0 0.0
  %963 = vmatprep.subr.mxu0 0.0
  %964 = vmatpush1.xpose.msra.mxu0 0.0
  %965 = vmatprep.subr.mxu0 0.0
  %966 = vmatpush1.xpose.msra.mxu0 0.0
  %967 = vmatprep.mubr.f32.mxu0 0.0
  %968 = vmatmul.mubr.f32.gmra.mrb[0].mxu0 %v899
  %v969 = vpop.f32.mrb[0].mxu0
  %v970 = vadd.f32 0.0, %v969
  %v971 = vpop.f32.mrb[0].mxu0
  %972 = vdwg.mxu0
  %973 = vrot.lane.b32.xlu0 %v229, 112
  %v974 = vpop.permute.xlu0 %973
  %975 = vrot.lane.b32.xlu0 %v229, 80
  %v976 = vpop.permute.xlu0 %975
  %v977 = vsel %vm235, %v974, 0
  %v979 = vsel %vm235, %v976, 0
  %981 = vmatprep.subr.mxu0 0.0
  %982 = vmatpush1.xpose.msra.mxu0 %v979
  %983 = vmatprep.subr.mxu0 0.0
  %984 = vmatpush1.xpose.msra.mxu0 0.0
  %985 = vmatprep.subr.mxu0 0.0
  %986 = vmatpush1.xpose.msra.mxu0 0.0
  %987 = vmatprep.subr.mxu0 0.0
  %988 = vmatpush1.xpose.msra.mxu0 0.0
  %989 = vmatprep.subr.mxu0 0.0
  %990 = vmatpush1.xpose.msra.mxu0 0.0
  %991 = vmatprep.subr.mxu0 0.0
  %992 = vmatpush1.xpose.msra.mxu0 0.0
  %993 = vmatprep.subr.mxu0 0.0
  %994 = vmatpush1.xpose.msra.mxu0 0.0
  %995 = vmatprep.subr.mxu0 0.0
  %996 = vmatpush1.xpose.msra.mxu0 0.0
  %997 = vmatprep.subr.mxu0 0.0
  %998 = vmatpush1.xpose.msra.mxu0 0.0
  %999 = vmatprep.subr.mxu0 0.0
  %1000 = vmatpush1.xpose.msra.mxu0 0.0
  %1001 = vmatprep.subr.mxu0 0.0
  %1002 = vmatpush1.xpose.msra.mxu0 0.0
  %1003 = vmatprep.subr.mxu0 0.0
  %1004 = vmatpush1.xpose.msra.mxu0 0.0
  %1005 = vmatprep.subr.mxu0 0.0
  %1006 = vmatpush1.xpose.msra.mxu0 0.0
  %1007 = vmatprep.subr.mxu0 0.0
  %1008 = vmatpush1.xpose.msra.mxu0 0.0
  %1009 = vmatprep.subr.mxu0 0.0
  %1010 = vmatpush1.xpose.msra.mxu0 0.0
  %1011 = vmatprep.subr.mxu0 0.0
  %1012 = vmatpush1.xpose.msra.mxu0 0.0
  %1013 = vmatprep.subr.mxu0 0.0
  %1014 = vmatpush1.xpose.msra.mxu0 0.0
  %1015 = vmatprep.subr.mxu0 0.0
  %1016 = vmatpush1.xpose.msra.mxu0 0.0
  %1017 = vmatprep.subr.mxu0 0.0
  %1018 = vmatpush1.xpose.msra.mxu0 0.0
  %1019 = vmatprep.subr.mxu0 0.0
  %1020 = vmatpush1.xpose.msra.mxu0 0.0
  %1021 = vmatprep.subr.mxu0 0.0
  %1022 = vmatpush1.xpose.msra.mxu0 0.0
  %1023 = vmatprep.subr.mxu0 0.0
  %1024 = vmatpush1.xpose.msra.mxu0 0.0
  %1025 = vmatprep.subr.mxu0 0.0
  %1026 = vmatpush1.xpose.msra.mxu0 0.0
  %1027 = vmatprep.subr.mxu0 0.0
  %1028 = vmatpush1.xpose.msra.mxu0 0.0
  %1029 = vmatprep.subr.mxu0 0.0
  %1030 = vmatpush1.xpose.msra.mxu0 0.0
  %1031 = vmatprep.subr.mxu0 0.0
  %1032 = vmatpush1.xpose.msra.mxu0 0.0
  %1033 = vmatprep.subr.mxu0 0.0
  %1034 = vmatpush1.xpose.msra.mxu0 0.0
  %1035 = vmatprep.subr.mxu0 0.0
  %1036 = vmatpush1.xpose.msra.mxu0 0.0
  %1037 = vmatprep.subr.mxu0 0.0
  %1038 = vmatpush1.xpose.msra.mxu0 0.0
  %1039 = vmatprep.subr.mxu0 0.0
  %1040 = vmatpush1.xpose.msra.mxu0 0.0
  %1041 = vmatprep.subr.mxu0 0.0
  %1042 = vmatpush1.xpose.msra.mxu0 0.0
  %1043 = vmatprep.subr.mxu0 0.0
  %1044 = vmatpush1.xpose.msra.mxu0 0.0
  %1045 = vmatprep.mubr.f32.mxu0 0.0
  %1046 = vmatmul.mubr.f32.gmra.mrb[0].mxu0 %v977
  %v1047 = vpop.f32.mrb[0].mxu0
  %v1048 = vadd.f32 0.0, %v1047
  %v1049 = vpop.f32.mrb[0].mxu0
  %1050 = vdwg.mxu0
  %v1051 = vmul.f32 %v970, 0.35355338
  %v1052 = vmul.f32 %v1048, 0.35355338
  %v1053 = vsel %vm235, %v1051, -inf
  %1054 = vmax.xlane.f32.xlu0 %v1053
  %v1055 = vpop.xlane.xlu0 %1054
  %v1056 = vsel %vm235, %v1052, -inf
  %1057 = vmax.xlane.f32.xlu0 %v1056
  %v1058 = vpop.xlane.xlu0 %1057
  %v1059 = vsub.f32 %v1051, %v1055
  %v1060 = vsub.f32 %v1052, %v1058
  %v1061 = vmul.f32 %v1059, 1.442695
  %v1062 = vpow.pop %v1061
  %v1063 = vmul.f32 %v1060, 1.442695
  %v1064 = vpow.pop %v1063
  %v1065 = vsel %vm235, %v1062, 0.0
  %1066 = vadd.xlane.f32.xlu0 %v1065
  %v1067 = vpop.xlane.xlu0 %1066
  %v1068 = vsel %vm235, %v1064, 0.0
  %1069 = vadd.xlane.f32.xlu0 %v1068
  %v1070 = vpop.xlane.xlu0 %1069
  %v1071 = vrcp.pop %v1067
  %v1072 = vmul.f32 %v1062, %v1071
  %v1073 = vrcp.pop %v1070
  %v1074 = vmul.f32 %v1064, %v1073
  %1075 = vrot.lane.b32.xlu0 %v224, 48
  %v1076 = vpop.permute.xlu0 %1075
  %v1079 = vsel %vm235, %v1072, 0
  %1081 = vmatprep.subr.mxu0 0.0
  %1082 = vmatpush1.msra.mxu0 %v1076
  %1083 = vmatprep.subr.mxu0 0.0
  %1084 = vmatpush1.msra.mxu0 0.0
  %1085 = vmatprep.subr.mxu0 0.0
  %1086 = vmatpush1.msra.mxu0 0.0
  %1087 = vmatprep.subr.mxu0 0.0
  %1088 = vmatpush1.msra.mxu0 0.0
  %1089 = vmatprep.subr.mxu0 0.0
  %1090 = vmatpush1.msra.mxu0 0.0
  %1091 = vmatprep.subr.mxu0 0.0
  %1092 = vmatpush1.msra.mxu0 0.0
  %1093 = vmatprep.subr.mxu0 0.0
  %1094 = vmatpush1.msra.mxu0 0.0
  %1095 = vmatprep.subr.mxu0 0.0
  %1096 = vmatpush1.msra.mxu0 0.0
  %1097 = vmatprep.subr.mxu0 0.0
  %1098 = vmatpush1.msra.mxu0 0.0
  %1099 = vmatprep.subr.mxu0 0.0
  %1100 = vmatpush1.msra.mxu0 0.0
  %1101 = vmatprep.subr.mxu0 0.0
  %1102 = vmatpush1.msra.mxu0 0.0
  %1103 = vmatprep.subr.mxu0 0.0
  %1104 = vmatpush1.msra.mxu0 0.0
  %1105 = vmatprep.subr.mxu0 0.0
  %1106 = vmatpush1.msra.mxu0 0.0
  %1107 = vmatprep.subr.mxu0 0.0
  %1108 = vmatpush1.msra.mxu0 0.0
  %1109 = vmatprep.subr.mxu0 0.0
  %1110 = vmatpush1.msra.mxu0 0.0
  %1111 = vmatprep.subr.mxu0 0.0
  %1112 = vmatpush1.msra.mxu0 0.0
  %1113 = vmatprep.subr.mxu0 0.0
  %1114 = vmatpush1.msra.mxu0 0.0
  %1115 = vmatprep.subr.mxu0 0.0
  %1116 = vmatpush1.msra.mxu0 0.0
  %1117 = vmatprep.subr.mxu0 0.0
  %1118 = vmatpush1.msra.mxu0 0.0
  %1119 = vmatprep.subr.mxu0 0.0
  %1120 = vmatpush1.msra.mxu0 0.0
  %1121 = vmatprep.subr.mxu0 0.0
  %1122 = vmatpush1.msra.mxu0 0.0
  %1123 = vmatprep.subr.mxu0 0.0
  %1124 = vmatpush1.msra.mxu0 0.0
  %1125 = vmatprep.subr.mxu0 0.0
  %1126 = vmatpush1.msra.mxu0 0.0
  %1127 = vmatprep.subr.mxu0 0.0
  %1128 = vmatpush1.msra.mxu0 0.0
  %1129 = vmatprep.subr.mxu0 0.0
  %1130 = vmatpush1.msra.mxu0 0.0
  %1131 = vmatprep.subr.mxu0 0.0
  %1132 = vmatpush1.msra.mxu0 0.0
  %1133 = vmatprep.subr.mxu0 0.0
  %1134 = vmatpush1.msra.mxu0 0.0
  %1135 = vmatprep.subr.mxu0 0.0
  %1136 = vmatpush1.msra.mxu0 0.0
  %1137 = vmatprep.subr.mxu0 0.0
  %1138 = vmatpush1.msra.mxu0 0.0
  %1139 = vmatprep.subr.mxu0 0.0
  %1140 = vmatpush1.msra.mxu0 0.0
  %1141 = vmatprep.subr.mxu0 0.0
  %1142 = vmatpush1.msra.mxu0 0.0
  %1143 = vmatprep.subr.mxu0 0.0
  %1144 = vmatpush1.msra.mxu0 0.0
  %1145 = vmatprep.mubr.f32.mxu0 0.0
  %1146 = vmatmul.mubr.f32.gmra.mrb[0].mxu0 %v1079
  %v1147 = vpop.f32.mrb[0].mxu0
  %v1148 = vadd.f32 0.0, %v1147
  %v1149 = vpop.f32.mrb[0].mxu0
  %1150 = vdwg.mxu0
  %1151 = vrot.lane.b32.xlu0 %v229, 48
  %v1152 = vpop.permute.xlu0 %1151
  %v1155 = vsel %vm235, %v1074, 0
  %1157 = vmatprep.subr.mxu0 0.0
  %1158 = vmatpush1.msra.mxu0 %v1152
  %1159 = vmatprep.subr.mxu0 0.0
  %1160 = vmatpush1.msra.mxu0 0.0
  %1161 = vmatprep.subr.mxu0 0.0
  %1162 = vmatpush1.msra.mxu0 0.0
  %1163 = vmatprep.subr.mxu0 0.0
  %1164 = vmatpush1.msra.mxu0 0.0
  %1165 = vmatprep.subr.mxu0 0.0
  %1166 = vmatpush1.msra.mxu0 0.0
  %1167 = vmatprep.subr.mxu0 0.0
  %1168 = vmatpush1.msra.mxu0 0.0
  %1169 = vmatprep.subr.mxu0 0.0
  %1170 = vmatpush1.msra.mxu0 0.0
  %1171 = vmatprep.subr.mxu0 0.0
  %1172 = vmatpush1.msra.mxu0 0.0
  %1173 = vmatprep.subr.mxu0 0.0
  %1174 = vmatpush1.msra.mxu0 0.0
  %1175 = vmatprep.subr.mxu0 0.0
  %1176 = vmatpush1.msra.mxu0 0.0
  %1177 = vmatprep.subr.mxu0 0.0
  %1178 = vmatpush1.msra.mxu0 0.0
  %1179 = vmatprep.subr.mxu0 0.0
  %1180 = vmatpush1.msra.mxu0 0.0
  %1181 = vmatprep.subr.mxu0 0.0
  %1182 = vmatpush1.msra.mxu0 0.0
  %1183 = vmatprep.subr.mxu0 0.0
  %1184 = vmatpush1.msra.mxu0 0.0
  %1185 = vmatprep.subr.mxu0 0.0
  %1186 = vmatpush1.msra.mxu0 0.0
  %1187 = vmatprep.subr.mxu0 0.0
  %1188 = vmatpush1.msra.mxu0 0.0
  %1189 = vmatprep.subr.mxu0 0.0
  %1190 = vmatpush1.msra.mxu0 0.0
  %1191 = vmatprep.subr.mxu0 0.0
  %1192 = vmatpush1.msra.mxu0 0.0
  %1193 = vmatprep.subr.mxu0 0.0
  %1194 = vmatpush1.msra.mxu0 0.0
  %1195 = vmatprep.subr.mxu0 0.0
  %1196 = vmatpush1.msra.mxu0 0.0
  %1197 = vmatprep.subr.mxu0 0.0
  %1198 = vmatpush1.msra.mxu0 0.0
  %1199 = vmatprep.subr.mxu0 0.0
  %1200 = vmatpush1.msra.mxu0 0.0
  %1201 = vmatprep.subr.mxu0 0.0
  %1202 = vmatpush1.msra.mxu0 0.0
  %1203 = vmatprep.subr.mxu0 0.0
  %1204 = vmatpush1.msra.mxu0 0.0
  %1205 = vmatprep.subr.mxu0 0.0
  %1206 = vmatpush1.msra.mxu0 0.0
  %1207 = vmatprep.subr.mxu0 0.0
  %1208 = vmatpush1.msra.mxu0 0.0
  %1209 = vmatprep.subr.mxu0 0.0
  %1210 = vmatpush1.msra.mxu0 0.0
  %1211 = vmatprep.subr.mxu0 0.0
  %1212 = vmatpush1.msra.mxu0 0.0
  %1213 = vmatprep.subr.mxu0 0.0
  %1214 = vmatpush1.msra.mxu0 0.0
  %1215 = vmatprep.subr.mxu0 0.0
  %1216 = vmatpush1.msra.mxu0 0.0
  %1217 = vmatprep.subr.mxu0 0.0
  %1218 = vmatpush1.msra.mxu0 0.0
  %1219 = vmatprep.subr.mxu0 0.0
  %1220 = vmatpush1.msra.mxu0 0.0
  %1221 = vmatprep.mubr.f32.mxu0 0.0
  %1222 = vmatmul.mubr.f32.gmra.mrb[0].mxu0 %v1155
  %v1223 = vpop.f32.mrb[0].mxu0
  %v1224 = vadd.f32 0.0, %v1223
  %v1225 = vpop.f32.mrb[0].mxu0
  %1226 = vdwg.mxu0
  %1227 = vrot.lane.b32.xlu0 %v224, 104
  %v1228 = vpop.permute.xlu0 %1227
  %1229 = vrot.lane.b32.xlu0 %v224, 72
  %v1230 = vpop.permute.xlu0 %1229
  %v1231 = vsel %vm235, %v1228, 0
  %v1233 = vsel %vm235, %v1230, 0
  %1235 = vmatprep.subr.mxu0 0.0
  %1236 = vmatpush1.xpose.msra.mxu0 %v1233
  %1237 = vmatprep.subr.mxu0 0.0
  %1238 = vmatpush1.xpose.msra.mxu0 0.0
  %1239 = vmatprep.subr.mxu0 0.0
  %1240 = vmatpush1.xpose.msra.mxu0 0.0
  %1241 = vmatprep.subr.mxu0 0.0
  %1242 = vmatpush1.xpose.msra.mxu0 0.0
  %1243 = vmatprep.subr.mxu0 0.0
  %1244 = vmatpush1.xpose.msra.mxu0 0.0
  %1245 = vmatprep.subr.mxu0 0.0
  %1246 = vmatpush1.xpose.msra.mxu0 0.0
  %1247 = vmatprep.subr.mxu0 0.0
  %1248 = vmatpush1.xpose.msra.mxu0 0.0
  %1249 = vmatprep.subr.mxu0 0.0
  %1250 = vmatpush1.xpose.msra.mxu0 0.0
  %1251 = vmatprep.subr.mxu0 0.0
  %1252 = vmatpush1.xpose.msra.mxu0 0.0
  %1253 = vmatprep.subr.mxu0 0.0
  %1254 = vmatpush1.xpose.msra.mxu0 0.0
  %1255 = vmatprep.subr.mxu0 0.0
  %1256 = vmatpush1.xpose.msra.mxu0 0.0
  %1257 = vmatprep.subr.mxu0 0.0
  %1258 = vmatpush1.xpose.msra.mxu0 0.0
  %1259 = vmatprep.subr.mxu0 0.0
  %1260 = vmatpush1.xpose.msra.mxu0 0.0
  %1261 = vmatprep.subr.mxu0 0.0
  %1262 = vmatpush1.xpose.msra.mxu0 0.0
  %1263 = vmatprep.subr.mxu0 0.0
  %1264 = vmatpush1.xpose.msra.mxu0 0.0
  %1265 = vmatprep.subr.mxu0 0.0
  %1266 = vmatpush1.xpose.msra.mxu0 0.0
  %1267 = vmatprep.subr.mxu0 0.0
  %1268 = vmatpush1.xpose.msra.mxu0 0.0
  %1269 = vmatprep.subr.mxu0 0.0
  %1270 = vmatpush1.xpose.msra.mxu0 0.0
  %1271 = vmatprep.subr.mxu0 0.0
  %1272 = vmatpush1.xpose.msra.mxu0 0.0
  %1273 = vmatprep.subr.mxu0 0.0
  %1274 = vmatpush1.xpose.msra.mxu0 0.0
  %1275 = vmatprep.subr.mxu0 0.0
  %1276 = vmatpush1.xpose.msra.mxu0 0.0
  %1277 = vmatprep.subr.mxu0 0.0
  %1278 = vmatpush1.xpose.msra.mxu0 0.0
  %1279 = vmatprep.subr.mxu0 0.0
  %1280 = vmatpush1.xpose.msra.mxu0 0.0
  %1281 = vmatprep.subr.mxu0 0.0
  %1282 = vmatpush1.xpose.msra.mxu0 0.0
  %1283 = vmatprep.subr.mxu0 0.0
  %1284 = vmatpush1.xpose.msra.mxu0 0.0
  %1285 = vmatprep.subr.mxu0 0.0
  %1286 = vmatpush1.xpose.msra.mxu0 0.0
  %1287 = vmatprep.subr.mxu0 0.0
  %1288 = vmatpush1.xpose.msra.mxu0 0.0
  %1289 = vmatprep.subr.mxu0 0.0
  %1290 = vmatpush1.xpose.msra.mxu0 0.0
  %1291 = vmatprep.subr.mxu0 0.0
  %1292 = vmatpush1.xpose.msra.mxu0 0.0
  %1293 = vmatprep.subr.mxu0 0.0
  %1294 = vmatpush1.xpose.msra.mxu0 0.0
  %1295 = vmatprep.subr.mxu0 0.0
  %1296 = vmatpush1.xpose.msra.mxu0 0.0
  %1297 = vmatprep.subr.mxu0 0.0
  %1298 = vmatpush1.xpose.msra.mxu0 0.0
  %1299 = vmatprep.mubr.f32.mxu0 0.0
  %1300 = vmatmul.mubr.f32.gmra.mrb[0].mxu0 %v1231
  %v1301 = vpop.f32.mrb[0].mxu0
  %v1302 = vadd.f32 0.0, %v1301
  %v1303 = vpop.f32.mrb[0].mxu0
  %1304 = vdwg.mxu0
  %1305 = vrot.lane.b32.xlu0 %v229, 104
  %v1306 = vpop.permute.xlu0 %1305
  %1307 = vrot.lane.b32.xlu0 %v229, 72
  %v1308 = vpop.permute.xlu0 %1307
  %v1309 = vsel %vm235, %v1306, 0
  %v1311 = vsel %vm235, %v1308, 0
  %1313 = vmatprep.subr.mxu0 0.0
  %1314 = vmatpush1.xpose.msra.mxu0 %v1311
  %1315 = vmatprep.subr.mxu0 0.0
  %1316 = vmatpush1.xpose.msra.mxu0 0.0
  %1317 = vmatprep.subr.mxu0 0.0
  %1318 = vmatpush1.xpose.msra.mxu0 0.0
  %1319 = vmatprep.subr.mxu0 0.0
  %1320 = vmatpush1.xpose.msra.mxu0 0.0
  %1321 = vmatprep.subr.mxu0 0.0
  %1322 = vmatpush1.xpose.msra.mxu0 0.0
  %1323 = vmatprep.subr.mxu0 0.0
  %1324 = vmatpush1.xpose.msra.mxu0 0.0
  %1325 = vmatprep.subr.mxu0 0.0
  %1326 = vmatpush1.xpose.msra.mxu0 0.0
  %1327 = vmatprep.subr.mxu0 0.0
  %1328 = vmatpush1.xpose.msra.mxu0 0.0
  %1329 = vmatprep.subr.mxu0 0.0
  %1330 = vmatpush1.xpose.msra.mxu0 0.0
  %1331 = vmatprep.subr.mxu0 0.0
  %1332 = vmatpush1.xpose.msra.mxu0 0.0
  %1333 = vmatprep.subr.mxu0 0.0
  %1334 = vmatpush1.xpose.msra.mxu0 0.0
  %1335 = vmatprep.subr.mxu0 0.0
  %1336 = vmatpush1.xpose.msra.mxu0 0.0
  %1337 = vmatprep.subr.mxu0 0.0
  %1338 = vmatpush1.xpose.msra.mxu0 0.0
  %1339 = vmatprep.subr.mxu0 0.0
  %1340 = vmatpush1.xpose.msra.mxu0 0.0
  %1341 = vmatprep.subr.mxu0 0.0
  %1342 = vmatpush1.xpose.msra.mxu0 0.0
  %1343 = vmatprep.subr.mxu0 0.0
  %1344 = vmatpush1.xpose.msra.mxu0 0.0
  %1345 = vmatprep.subr.mxu0 0.0
  %1346 = vmatpush1.xpose.msra.mxu0 0.0
  %1347 = vmatprep.subr.mxu0 0.0
  %1348 = vmatpush1.xpose.msra.mxu0 0.0
  %1349 = vmatprep.subr.mxu0 0.0
  %1350 = vmatpush1.xpose.msra.mxu0 0.0
  %1351 = vmatprep.subr.mxu0 0.0
  %1352 = vmatpush1.xpose.msra.mxu0 0.0
  %1353 = vmatprep.subr.mxu0 0.0
  %1354 = vmatpush1.xpose.msra.mxu0 0.0
  %1355 = vmatprep.subr.mxu0 0.0
  %1356 = vmatpush1.xpose.msra.mxu0 0.0
  %1357 = vmatprep.subr.mxu0 0.0
  %1358 = vmatpush1.xpose.msra.mxu0 0.0
  %1359 = vmatprep.subr.mxu0 0.0
  %1360 = vmatpush1.xpose.msra.mxu0 0.0
  %1361 = vmatprep.subr.mxu0 0.0
  %1362 = vmatpush1.xpose.msra.mxu0 0.0
  %1363 = vmatprep.subr.mxu0 0.0
  %1364 = vmatpush1.xpose.msra.mxu0 0.0
  %1365 = vmatprep.subr.mxu0 0.0
  %1366 = vmatpush1.xpose.msra.mxu0 0.0
  %1367 = vmatprep.subr.mxu0 0.0
  %1368 = vmatpush1.xpose.msra.mxu0 0.0
  %1369 = vmatprep.subr.mxu0 0.0
  %1370 = vmatpush1.xpose.msra.mxu0 0.0
  %1371 = vmatprep.subr.mxu0 0.0
  %1372 = vmatpush1.xpose.msra.mxu0 0.0
  %1373 = vmatprep.subr.mxu0 0.0
  %1374 = vmatpush1.xpose.msra.mxu0 0.0
  %1375 = vmatprep.subr.mxu0 0.0
  %1376 = vmatpush1.xpose.msra.mxu0 0.0
  %1377 = vmatprep.mubr.f32.mxu0 0.0
  %1378 = vmatmul.mubr.f32.gmra.mrb[0].mxu0 %v1309
  %v1379 = vpop.f32.mrb[0].mxu0
  %v1380 = vadd.f32 0.0, %v1379
  %v1381 = vpop.f32.mrb[0].mxu0
  %1382 = vdwg.mxu0
  %v1383 = vmul.f32 %v1302, 0.35355338
  %v1384 = vmul.f32 %v1380, 0.35355338
  %v1385 = vsel %vm235, %v1383, -inf
  %1386 = vmax.xlane.f32.xlu0 %v1385
  %v1387 = vpop.xlane.xlu0 %1386
  %v1388 = vsel %vm235, %v1384, -inf
  %1389 = vmax.xlane.f32.xlu0 %v1388
  %v1390 = vpop.xlane.xlu0 %1389
  %v1391 = vsub.f32 %v1383, %v1387
  %v1392 = vsub.f32 %v1384, %v1390
  %v1393 = vmul.f32 %v1391, 1.442695
  %v1394 = vpow.pop %v1393
  %v1395 = vmul.f32 %v1392, 1.442695
  %v1396 = vpow.pop %v1395
  %v1397 = vsel %vm235, %v1394, 0.0
  %1398 = vadd.xlane.f32.xlu0 %v1397
  %v1399 = vpop.xlane.xlu0 %1398
  %v1400 = vsel %vm235, %v1396, 0.0
  %1401 = vadd.xlane.f32.xlu0 %v1400
  %v1402 = vpop.xlane.xlu0 %1401
  %v1403 = vrcp.pop %v1399
  %v1404 = vmul.f32 %v1394, %v1403
  %v1405 = vrcp.pop %v1402
  %v1406 = vmul.f32 %v1396, %v1405
  %1407 = vrot.lane.b32.xlu0 %v224, 40
  %v1408 = vpop.permute.xlu0 %1407
  %v1411 = vsel %vm235, %v1404, 0
  %1413 = vmatprep.subr.mxu0 0.0
  %1414 = vmatpush1.msra.mxu0 %v1408
  %1415 = vmatprep.subr.mxu0 0.0
  %1416 = vmatpush1.msra.mxu0 0.0
  %1417 = vmatprep.subr.mxu0 0.0
  %1418 = vmatpush1.msra.mxu0 0.0
  %1419 = vmatprep.subr.mxu0 0.0
  %1420 = vmatpush1.msra.mxu0 0.0
  %1421 = vmatprep.subr.mxu0 0.0
  %1422 = vmatpush1.msra.mxu0 0.0
  %1423 = vmatprep.subr.mxu0 0.0
  %1424 = vmatpush1.msra.mxu0 0.0
  %1425 = vmatprep.subr.mxu0 0.0
  %1426 = vmatpush1.msra.mxu0 0.0
  %1427 = vmatprep.subr.mxu0 0.0
  %1428 = vmatpush1.msra.mxu0 0.0
  %1429 = vmatprep.subr.mxu0 0.0
  %1430 = vmatpush1.msra.mxu0 0.0
  %1431 = vmatprep.subr.mxu0 0.0
  %1432 = vmatpush1.msra.mxu0 0.0
  %1433 = vmatprep.subr.mxu0 0.0
  %1434 = vmatpush1.msra.mxu0 0.0
  %1435 = vmatprep.subr.mxu0 0.0
  %1436 = vmatpush1.msra.mxu0 0.0
  %1437 = vmatprep.subr.mxu0 0.0
  %1438 = vmatpush1.msra.mxu0 0.0
  %1439 = vmatprep.subr.mxu0 0.0
  %1440 = vmatpush1.msra.mxu0 0.0
  %1441 = vmatprep.subr.mxu0 0.0
  %1442 = vmatpush1.msra.mxu0 0.0
  %1443 = vmatprep.subr.mxu0 0.0
  %1444 = vmatpush1.msra.mxu0 0.0
  %1445 = vmatprep.subr.mxu0 0.0
  %1446 = vmatpush1.msra.mxu0 0.0
  %1447 = vmatprep.subr.mxu0 0.0
  %1448 = vmatpush1.msra.mxu0 0.0
  %1449 = vmatprep.subr.mxu0 0.0
  %1450 = vmatpush1.msra.mxu0 0.0
  %1451 = vmatprep.subr.mxu0 0.0
  %1452 = vmatpush1.msra.mxu0 0.0
  %1453 = vmatprep.subr.mxu0 0.0
  %1454 = vmatpush1.msra.mxu0 0.0
  %1455 = vmatprep.subr.mxu0 0.0
  %1456 = vmatpush1.msra.mxu0 0.0
  %1457 = vmatprep.subr.mxu0 0.0
  %1458 = vmatpush1.msra.mxu0 0.0
  %1459 = vmatprep.subr.mxu0 0.0
  %1460 = vmatpush1.msra.mxu0 0.0
  %1461 = vmatprep.subr.mxu0 0.0
  %1462 = vmatpush1.msra.mxu0 0.0
  %1463 = vmatprep.subr.mxu0 0.0
  %1464 = vmatpush1.msra.mxu0 0.0
  %1465 = vmatprep.subr.mxu0 0.0
  %1466 = vmatpush1.msra.mxu0 0.0
  %1467 = vmatprep.subr.mxu0 0.0
  %1468 = vmatpush1.msra.mxu0 0.0
  %1469 = vmatprep.subr.mxu0 0.0
  %1470 = vmatpush1.msra.mxu0 0.0
  %1471 = vmatprep.subr.mxu0 0.0
  %1472 = vmatpush1.msra.mxu0 0.0
  %1473 = vmatprep.subr.mxu0 0.0
  %1474 = vmatpush1.msra.mxu0 0.0
  %1475 = vmatprep.subr.mxu0 0.0
  %1476 = vmatpush1.msra.mxu0 0.0
  %1477 = vmatprep.mubr.f32.mxu0 0.0
  %1478 = vmatmul.mubr.f32.gmra.mrb[0].mxu0 %v1411
  %v1479 = vpop.f32.mrb[0].mxu0
  %v1480 = vadd.f32 0.0, %v1479
  %v1481 = vpop.f32.mrb[0].mxu0
  %1482 = vdwg.mxu0
  %1483 = vrot.lane.b32.xlu0 %v229, 40
  %v1484 = vpop.permute.xlu0 %1483
  %v1487 = vsel %vm235, %v1406, 0
  %1489 = vmatprep.subr.mxu0 0.0
  %1490 = vmatpush1.msra.mxu0 %v1484
  %1491 = vmatprep.subr.mxu0 0.0
  %1492 = vmatpush1.msra.mxu0 0.0
  %1493 = vmatprep.subr.mxu0 0.0
  %1494 = vmatpush1.msra.mxu0 0.0
  %1495 = vmatprep.subr.mxu0 0.0
  %1496 = vmatpush1.msra.mxu0 0.0
  %1497 = vmatprep.subr.mxu0 0.0
  %1498 = vmatpush1.msra.mxu0 0.0
  %1499 = vmatprep.subr.mxu0 0.0
  %1500 = vmatpush1.msra.mxu0 0.0
  %1501 = vmatprep.subr.mxu0 0.0
  %1502 = vmatpush1.msra.mxu0 0.0
  %1503 = vmatprep.subr.mxu0 0.0
  %1504 = vmatpush1.msra.mxu0 0.0
  %1505 = vmatprep.subr.mxu0 0.0
  %1506 = vmatpush1.msra.mxu0 0.0
  %1507 = vmatprep.subr.mxu0 0.0
  %1508 = vmatpush1.msra.mxu0 0.0
  %1509 = vmatprep.subr.mxu0 0.0
  %1510 = vmatpush1.msra.mxu0 0.0
  %1511 = vmatprep.subr.mxu0 0.0
  %1512 = vmatpush1.msra.mxu0 0.0
  %1513 = vmatprep.subr.mxu0 0.0
  %1514 = vmatpush1.msra.mxu0 0.0
  %1515 = vmatprep.subr.mxu0 0.0
  %1516 = vmatpush1.msra.mxu0 0.0
  %1517 = vmatprep.subr.mxu0 0.0
  %1518 = vmatpush1.msra.mxu0 0.0
  %1519 = vmatprep.subr.mxu0 0.0
  %1520 = vmatpush1.msra.mxu0 0.0
  %1521 = vmatprep.subr.mxu0 0.0
  %1522 = vmatpush1.msra.mxu0 0.0
  %1523 = vmatprep.subr.mxu0 0.0
  %1524 = vmatpush1.msra.mxu0 0.0
  %1525 = vmatprep.subr.mxu0 0.0
  %1526 = vmatpush1.msra.mxu0 0.0
  %1527 = vmatprep.subr.mxu0 0.0
  %1528 = vmatpush1.msra.mxu0 0.0
  %1529 = vmatprep.subr.mxu0 0.0
  %1530 = vmatpush1.msra.mxu0 0.0
  %1531 = vmatprep.subr.mxu0 0.0
  %1532 = vmatpush1.msra.mxu0 0.0
  %1533 = vmatprep.subr.mxu0 0.0
  %1534 = vmatpush1.msra.mxu0 0.0
  %1535 = vmatprep.subr.mxu0 0.0
  %1536 = vmatpush1.msra.mxu0 0.0
  %1537 = vmatprep.subr.mxu0 0.0
  %1538 = vmatpush1.msra.mxu0 0.0
  %1539 = vmatprep.subr.mxu0 0.0
  %1540 = vmatpush1.msra.mxu0 0.0
  %1541 = vmatprep.subr.mxu0 0.0
  %1542 = vmatpush1.msra.mxu0 0.0
  %1543 = vmatprep.subr.mxu0 0.0
  %1544 = vmatpush1.msra.mxu0 0.0
  %1545 = vmatprep.subr.mxu0 0.0
  %1546 = vmatpush1.msra.mxu0 0.0
  %1547 = vmatprep.subr.mxu0 0.0
  %1548 = vmatpush1.msra.mxu0 0.0
  %1549 = vmatprep.subr.mxu0 0.0
  %1550 = vmatpush1.msra.mxu0 0.0
  %1551 = vmatprep.subr.mxu0 0.0
  %1552 = vmatpush1.msra.mxu0 0.0
  %1553 = vmatprep.mubr.f32.mxu0 0.0
  %1554 = vmatmul.mubr.f32.gmra.mrb[0].mxu0 %v1487
  %v1555 = vpop.f32.mrb[0].mxu0
  %v1556 = vadd.f32 0.0, %v1555
  %v1557 = vpop.f32.mrb[0].mxu0
  %1558 = vdwg.mxu0
  %1561 = vrot.lane.b32.xlu0 %v816, 8
  %v1562 = vpop.permute.xlu0 %1561
  %1563 = vrot.lane.b32.xlu0 %v892, 8
  %v1564 = vpop.permute.xlu0 %1563
  %1569 = vrot.lane.b32.xlu0 %v1148, 16
  %v1570 = vpop.permute.xlu0 %1569
  %1571 = vrot.lane.b32.xlu0 %v1224, 16
  %v1572 = vpop.permute.xlu0 %1571
  %1577 = vrot.lane.b32.xlu0 %v1480, 24
  %v1578 = vpop.permute.xlu0 %1577
  %1579 = vrot.lane.b32.xlu0 %v1556, 24
  %v1580 = vpop.permute.xlu0 %1579
  %v1583 = vsel %vm235, %v484, %v1562
  %v1584 = vsel %vm235, %v560, %v1564
  %vm1585 = vcmask 130048
  %v1586 = vsel %vm1585, %v1583, %v1570
  %v1587 = vsel %vm1585, %v1584, %v1572
  %vm1588 = vcmask 195584
  %v1589 = vsel %vm1588, %v1586, %v1578
  %v1590 = vsel %vm1588, %v1587, %v1580
  %v1591 = vlaneseq
  %v1592 = vshrl.u32 %v1591, 7
  %v1593 = vsub.s32 0, %v1592
  %v1594 = vrot.slane %v140, %v1593
  %1599 = vrot.lane.b32.xlu0 %v114, 32
  %v1600 = vpop.permute.xlu0 %1599
  %1601 = vrot.lane.b32.xlu0 %v116, 32
  %v1602 = vpop.permute.xlu0 %1601
  %1603 = vrot.lane.b32.xlu0 %v118, 32
  %v1604 = vpop.permute.xlu0 %1603
  %1605 = vrot.lane.b32.xlu0 %v120, 32
  %v1606 = vpop.permute.xlu0 %1605
  %v1612 = vsel %vm150, %v1589, 0
  %v1615 = vsel %vm150, %v1590, 0
  %1617 = vmatprep.subr.mxu0 0.0
  %1618 = vmatpush1.msra.mxu0 %v1600
  %1619 = vmatprep.subr.mxu0 0.0
  %1620 = vmatpush1.msra.mxu0 %v1602
  %1621 = vmatprep.subr.mxu0 0.0
  %1622 = vmatpush1.msra.mxu0 %v1604
  %1623 = vmatprep.subr.mxu0 0.0
  %1624 = vmatpush1.msra.mxu0 %v1606
  %1625 = vmatprep.subr.mxu0 0.0
  %1626 = vmatpush1.msra.mxu0 0.0
  %1627 = vmatprep.subr.mxu0 0.0
  %1628 = vmatpush1.msra.mxu0 0.0
  %1629 = vmatprep.subr.mxu0 0.0
  %1630 = vmatpush1.msra.mxu0 0.0
  %1631 = vmatprep.subr.mxu0 0.0
  %1632 = vmatpush1.msra.mxu0 0.0
  %1633 = vmatprep.subr.mxu0 0.0
  %1634 = vmatpush1.msra.mxu0 0.0
  %1635 = vmatprep.subr.mxu0 0.0
  %1636 = vmatpush1.msra.mxu0 0.0
  %1637 = vmatprep.subr.mxu0 0.0
  %1638 = vmatpush1.msra.mxu0 0.0
  %1639 = vmatprep.subr.mxu0 0.0
  %1640 = vmatpush1.msra.mxu0 0.0
  %1641 = vmatprep.subr.mxu0 0.0
  %1642 = vmatpush1.msra.mxu0 0.0
  %1643 = vmatprep.subr.mxu0 0.0
  %1644 = vmatpush1.msra.mxu0 0.0
  %1645 = vmatprep.subr.mxu0 0.0
  %1646 = vmatpush1.msra.mxu0 0.0
  %1647 = vmatprep.subr.mxu0 0.0
  %1648 = vmatpush1.msra.mxu0 0.0
  %1649 = vmatprep.subr.mxu0 0.0
  %1650 = vmatpush1.msra.mxu0 0.0
  %1651 = vmatprep.subr.mxu0 0.0
  %1652 = vmatpush1.msra.mxu0 0.0
  %1653 = vmatprep.subr.mxu0 0.0
  %1654 = vmatpush1.msra.mxu0 0.0
  %1655 = vmatprep.subr.mxu0 0.0
  %1656 = vmatpush1.msra.mxu0 0.0
  %1657 = vmatprep.subr.mxu0 0.0
  %1658 = vmatpush1.msra.mxu0 0.0
  %1659 = vmatprep.subr.mxu0 0.0
  %1660 = vmatpush1.msra.mxu0 0.0
  %1661 = vmatprep.subr.mxu0 0.0
  %1662 = vmatpush1.msra.mxu0 0.0
  %1663 = vmatprep.subr.mxu0 0.0
  %1664 = vmatpush1.msra.mxu0 0.0
  %1665 = vmatprep.subr.mxu0 0.0
  %1666 = vmatpush1.msra.mxu0 0.0
  %1667 = vmatprep.subr.mxu0 0.0
  %1668 = vmatpush1.msra.mxu0 0.0
  %1669 = vmatprep.subr.mxu0 0.0
  %1670 = vmatpush1.msra.mxu0 0.0
  %1671 = vmatprep.subr.mxu0 0.0
  %1672 = vmatpush1.msra.mxu0 0.0
  %1673 = vmatprep.subr.mxu0 0.0
  %1674 = vmatpush1.msra.mxu0 0.0
  %1675 = vmatprep.subr.mxu0 0.0
  %1676 = vmatpush1.msra.mxu0 0.0
  %1677 = vmatprep.subr.mxu0 0.0
  %1678 = vmatpush1.msra.mxu0 0.0
  %1679 = vmatprep.subr.mxu0 0.0
  %1680 = vmatpush1.msra.mxu0 0.0
  %1681 = vmatprep.mubr.f32.mxu0 0.0
  %1682 = vmatmul.mubr.f32.gmra.mrb[0].mxu0 %v1612
  %v1683 = vpop.f32.mrb[0].mxu0
  %v1684 = vadd.f32 %v1594, %v1683
  %v1685 = vpop.f32.mrb[0].mxu0
  %1686 = vmatprep.mubr.f32.mxu0 0.0
  %1687 = vmatmul.mubr.f32.gmra.mrb[0].mxu0 %v1615
  %v1688 = vpop.f32.mrb[0].mxu0
  %v1689 = vadd.f32 %v1594, %v1688
  %v1690 = vpop.f32.mrb[0].mxu0
  %1691 = vdwg.mxu0
  %v1692 = vadd.f32 %v106, %v1684
  %v1693 = vadd.f32 %v111, %v1689
  %v1694 = vsel %vm150, %v1692, 0.0
  %1695 = vadd.xlane.f32.xlu0 %v1694
  %v1696 = vpop.xlane.xlu0 %1695
  %v1697 = vsel %vm150, %v1693, 0.0
  %1698 = vadd.xlane.f32.xlu0 %v1697
  %v1699 = vpop.xlane.xlu0 %1698
  %v1700 = vrcp.pop 32.0
  %v1701 = vmul.f32 %v1696, %v1700
  %v1702 = vmul.f32 %v1699, %v1700
  %v1703 = vsub.f32 %v1692, %v1701
  %v1704 = vsub.f32 %v1693, %v1702
  %v1705 = vmul.f32 %v1703, %v1703
  %v1706 = vmul.f32 %v1704, %v1704
  %v1707 = vsel %vm150, %v1705, 0.0
  %1708 = vadd.xlane.f32.xlu0 %v1707
  %v1709 = vpop.xlane.xlu0 %1708
  %v1710 = vsel %vm150, %v1706, 0.0
  %1711 = vadd.xlane.f32.xlu0 %v1710
  %v1712 = vpop.xlane.xlu0 %1711
  %v1713 = vmul.f32 %v1709, %v1700
  %v1714 = vmul.f32 %v1712, %v1700
  %v1715 = vadd.f32 %v1713, 1e-05
  %v1716 = vadd.f32 %v1714, 1e-05
  %v1717 = vrsqrt.pop %v1715
  %v1718 = vrsqrt.pop %v1716
  %v1719 = vmul.f32 %v1703, %v1717
  %v1720 = vmul.f32 %v1704, %v1718
  %v1721 = vlaneseq
  %v1722 = vshrl.u32 %v1721, 7
  %v1723 = vsub.s32 0, %v1722
  %v1724 = vrot.slane %v141, %v1723
  %v1725 = vmul.f32 %v1719, %v1724
  %v1726 = vmul.f32 %v1720, %v1724
  %v1727 = vlaneseq
  %v1728 = vshrl.u32 %v1727, 7
  %v1729 = vsub.s32 0, %v1728
  %v1730 = vrot.slane %v142, %v1729
  %v1731 = vadd.f32 %v1725, %v1730
  %v1732 = vadd.f32 %v1726, %v1730
  %v1733 = vlaneseq
  %v1734 = vshrl.u32 %v1733, 7
  %v1735 = vsub.s32 0, %v1734
  %v1736 = vrot.slane %v139, %v1735
  %v1738 = vsel %vm150, %v1731, 0
  %v1741 = vsel %vm150, %v1732, 0
  %1743 = vmatprep.subr.mxu0 0.0
  %1744 = vmatpush1.msra.mxu0 %v115
  %1745 = vmatprep.subr.mxu0 0.0
  %1746 = vmatpush1.msra.mxu0 %v117
  %1747 = vmatprep.subr.mxu0 0.0
  %1748 = vmatpush1.msra.mxu0 %v119
  %1749 = vmatprep.subr.mxu0 0.0
  %1750 = vmatpush1.msra.mxu0 %v121
  %1751 = vmatprep.subr.mxu0 0.0
  %1752 = vmatpush1.msra.mxu0 0.0
  %1753 = vmatprep.subr.mxu0 0.0
  %1754 = vmatpush1.msra.mxu0 0.0
  %1755 = vmatprep.subr.mxu0 0.0
  %1756 = vmatpush1.msra.mxu0 0.0
  %1757 = vmatprep.subr.mxu0 0.0
  %1758 = vmatpush1.msra.mxu0 0.0
  %1759 = vmatprep.subr.mxu0 0.0
  %1760 = vmatpush1.msra.mxu0 0.0
  %1761 = vmatprep.subr.mxu0 0.0
  %1762 = vmatpush1.msra.mxu0 0.0
  %1763 = vmatprep.subr.mxu0 0.0
  %1764 = vmatpush1.msra.mxu0 0.0
  %1765 = vmatprep.subr.mxu0 0.0
  %1766 = vmatpush1.msra.mxu0 0.0
  %1767 = vmatprep.subr.mxu0 0.0
  %1768 = vmatpush1.msra.mxu0 0.0
  %1769 = vmatprep.subr.mxu0 0.0
  %1770 = vmatpush1.msra.mxu0 0.0
  %1771 = vmatprep.subr.mxu0 0.0
  %1772 = vmatpush1.msra.mxu0 0.0
  %1773 = vmatprep.subr.mxu0 0.0
  %1774 = vmatpush1.msra.mxu0 0.0
  %1775 = vmatprep.subr.mxu0 0.0
  %1776 = vmatpush1.msra.mxu0 0.0
  %1777 = vmatprep.subr.mxu0 0.0
  %1778 = vmatpush1.msra.mxu0 0.0
  %1779 = vmatprep.subr.mxu0 0.0
  %1780 = vmatpush1.msra.mxu0 0.0
  %1781 = vmatprep.subr.mxu0 0.0
  %1782 = vmatpush1.msra.mxu0 0.0
  %1783 = vmatprep.subr.mxu0 0.0
  %1784 = vmatpush1.msra.mxu0 0.0
  %1785 = vmatprep.subr.mxu0 0.0
  %1786 = vmatpush1.msra.mxu0 0.0
  %1787 = vmatprep.subr.mxu0 0.0
  %1788 = vmatpush1.msra.mxu0 0.0
  %1789 = vmatprep.subr.mxu0 0.0
  %1790 = vmatpush1.msra.mxu0 0.0
  %1791 = vmatprep.subr.mxu0 0.0
  %1792 = vmatpush1.msra.mxu0 0.0
  %1793 = vmatprep.subr.mxu0 0.0
  %1794 = vmatpush1.msra.mxu0 0.0
  %1795 = vmatprep.subr.mxu0 0.0
  %1796 = vmatpush1.msra.mxu0 0.0
  %1797 = vmatprep.subr.mxu0 0.0
  %1798 = vmatpush1.msra.mxu0 0.0
  %1799 = vmatprep.subr.mxu0 0.0
  %1800 = vmatpush1.msra.mxu0 0.0
  %1801 = vmatprep.subr.mxu0 0.0
  %1802 = vmatpush1.msra.mxu0 0.0
  %1803 = vmatprep.subr.mxu0 0.0
  %1804 = vmatpush1.msra.mxu0 0.0
  %1805 = vmatprep.subr.mxu0 0.0
  %1806 = vmatpush1.msra.mxu0 0.0
  %1807 = vmatprep.mubr.f32.mxu0 0.0
  %1808 = vmatmul.mubr.f32.gmra.mrb[0].mxu0 %v1738
  %v1809 = vpop.f32.mrb[0].mxu0
  %v1810 = vadd.f32 %v1736, %v1809
  %v1811 = vpop.f32.mrb[0].mxu0
  %1812 = vmatprep.mubr.f32.mxu0 0.0
  %1813 = vmatmul.mubr.f32.gmra.mrb[0].mxu0 %v1741
  %v1814 = vpop.f32.mrb[0].mxu0
  %v1815 = vadd.f32 %v1736, %v1814
  %v1816 = vpop.f32.mrb[0].mxu0
  %1817 = vdwg.mxu0
  %v1818 = vmax.f32 %v1810, 0.0
  %v1819 = vmax.f32 %v1815, 0.0
  %v1820 = vlaneseq
  %v1821 = vshrl.u32 %v1820, 7
  %v1822 = vsub.s32 0, %v1821
  %v1823 = vrot.slane %v143, %v1822
  %1824 = vmatprep.subr.mxu0 0.0
  %1825 = vmatpush1.msra.mxu0 %v122
  %1826 = vmatprep.subr.mxu0 0.0
  %1827 = vmatpush1.msra.mxu0 %v123
  %1828 = vmatprep.subr.mxu0 0.0
  %1829 = vmatpush1.msra.mxu0 %v124
  %1830 = vmatprep.subr.mxu0 0.0
  %1831 = vmatpush1.msra.mxu0 %v125
  %1832 = vmatprep.subr.mxu0 0.0
  %1833 = vmatpush1.msra.mxu0 %v126
  %1834 = vmatprep.subr.mxu0 0.0
  %1835 = vmatpush1.msra.mxu0 %v127
  %1836 = vmatprep.subr.mxu0 0.0
  %1837 = vmatpush1.msra.mxu0 %v128
  %1838 = vmatprep.subr.mxu0 0.0
  %1839 = vmatpush1.msra.mxu0 %v129
  %1840 = vmatprep.subr.mxu0 0.0
  %1841 = vmatpush1.msra.mxu0 %v130
  %1842 = vmatprep.subr.mxu0 0.0
  %1843 = vmatpush1.msra.mxu0 %v131
  %1844 = vmatprep.subr.mxu0 0.0
  %1845 = vmatpush1.msra.mxu0 %v132
  %1846 = vmatprep.subr.mxu0 0.0
  %1847 = vmatpush1.msra.mxu0 %v133
  %1848 = vmatprep.subr.mxu0 0.0
  %1849 = vmatpush1.msra.mxu0 %v134
  %1850 = vmatprep.subr.mxu0 0.0
  %1851 = vmatpush1.msra.mxu0 %v135
  %1852 = vmatprep.subr.mxu0 0.0
  %1853 = vmatpush1.msra.mxu0 %v136
  %1854 = vmatprep.subr.mxu0 0.0
  %1855 = vmatpush1.msra.mxu0 %v137
  %1856 = vmatprep.subr.mxu0 0.0
  %1857 = vmatpush1.msra.mxu0 0.0
  %1858 = vmatprep.subr.mxu0 0.0
  %1859 = vmatpush1.msra.mxu0 0.0
  %1860 = vmatprep.subr.mxu0 0.0
  %1861 = vmatpush1.msra.mxu0 0.0
  %1862 = vmatprep.subr.mxu0 0.0
  %1863 = vmatpush1.msra.mxu0 0.0
  %1864 = vmatprep.subr.mxu0 0.0
  %1865 = vmatpush1.msra.mxu0 0.0
  %1866 = vmatprep.subr.mxu0 0.0
  %1867 = vmatpush1.msra.mxu0 0.0
  %1868 = vmatprep.subr.mxu0 0.0
  %1869 = vmatpush1.msra.mxu0 0.0
  %1870 = vmatprep.subr.mxu0 0.0
  %1871 = vmatpush1.msra.mxu0 0.0
  %1872 = vmatprep.subr.mxu0 0.0
  %1873 = vmatpush1.msra.mxu0 0.0
  %1874 = vmatprep.subr.mxu0 0.0
  %1875 = vmatpush1.msra.mxu0 0.0
  %1876 = vmatprep.subr.mxu0 0.0
  %1877 = vmatpush1.msra.mxu0 0.0
  %1878 = vmatprep.subr.mxu0 0.0
  %1879 = vmatpush1.msra.mxu0 0.0
  %1880 = vmatprep.subr.mxu0 0.0
  %1881 = vmatpush1.msra.mxu0 0.0
  %1882 = vmatprep.subr.mxu0 0.0
  %1883 = vmatpush1.msra.mxu0 0.0
  %1884 = vmatprep.subr.mxu0 0.0
  %1885 = vmatpush1.msra.mxu0 0.0
  %1886 = vmatprep.subr.mxu0 0.0
  %1887 = vmatpush1.msra.mxu0 0.0
  %1888 = vmatprep.mubr.f32.mxu0 0.0
  %1889 = vmatmul.mubr.f32.gmra.mrb[0].mxu0 %v1818
  %v1890 = vpop.f32.mrb[0].mxu0
  %v1891 = vadd.f32 %v1823, %v1890
  %v1892 = vpop.f32.mrb[0].mxu0
  %1893 = vmatprep.mubr.f32.mxu0 0.0
  %1894 = vmatmul.mubr.f32.gmra.mrb[0].mxu0 %v1819
  %v1895 = vpop.f32.mrb[0].mxu0
  %v1896 = vadd.f32 %v1823, %v1895
  %v1897 = vpop.f32.mrb[0].mxu0
  %1898 = vdwg.mxu0
  %v1899 = vadd.f32 %v1731, %v1891
  %v1900 = vadd.f32 %v1732, %v1896
  %v1901 = vsel %vm150, %v1899, 0.0
  %1902 = vadd.xlane.f32.xlu0 %v1901
  %v1903 = vpop.xlane.xlu0 %1902
  %v1904 = vsel %vm150, %v1900, 0.0
  %1905 = vadd.xlane.f32.xlu0 %v1904
  %v1906 = vpop.xlane.xlu0 %1905
  %v1907 = vmul.f32 %v1903, %v1700
  %v1908 = vmul.f32 %v1906, %v1700
  %v1909 = vsub.f32 %v1899, %v1907
  %v1910 = vsub.f32 %v1900, %v1908
  %v1911 = vmul.f32 %v1909, %v1909
  %v1912 = vmul.f32 %v1910, %v1910
  %v1913 = vsel %vm150, %v1911, 0.0
  %1914 = vadd.xlane.f32.xlu0 %v1913
  %v1915 = vpop.xlane.xlu0 %1914
  %v1916 = vsel %vm150, %v1912, 0.0
  %1917 = vadd.xlane.f32.xlu0 %v1916
  %v1918 = vpop.xlane.xlu0 %1917
  %v1919 = vmul.f32 %v1915, %v1700
  %v1920 = vmul.f32 %v1918, %v1700
  %v1921 = vadd.f32 %v1919, 1e-05
  %v1922 = vadd.f32 %v1920, 1e-05
  %v1923 = vrsqrt.pop %v1921
  %v1924 = vrsqrt.pop %v1922
  %v1925 = vmul.f32 %v1909, %v1923
  %v1926 = vmul.f32 %v1910, %v1924
  %v1927 = vlaneseq
  %v1928 = vshrl.u32 %v1927, 7
  %v1929 = vsub.s32 0, %v1928
  %v1930 = vrot.slane %v144, %v1929
  %v1931 = vmul.f32 %v1925, %v1930
  %v1932 = vmul.f32 %v1926, %v1930
  %v1933 = vlaneseq
  %v1934 = vshrl.u32 %v1933, 7
  %v1935 = vsub.s32 0, %v1934
  %v1936 = vrot.slane %v145, %v1935
  %v1937 = vadd.f32 %v1931, %v1936
  %v1938 = vadd.f32 %v1932, %v1936
  %s1939 = scalar_lea.vmem %s3, 64
  %v1940 = vld [vmem:[%s1939] sm:$0xff]
  %v1941 = vld [vmem:[%s1939 + $0x8] sm:$0xff]
  %v1942 = vld [vmem:[%s1939 + $0x10] sm:$0xff]
  %v1943 = vld [vmem:[%s1939 + $0x18] sm:$0xff]
  %v1944 = vld [vmem:[%s1939 + $0x20] sm:$0xff]
  %v1945 = vld [vmem:[%s1939 + $0x28] sm:$0xff]
  %v1946 = vld [vmem:[%s1939 + $0x30] sm:$0xff]
  %v1947 = vld [vmem:[%s1939 + $0x38] sm:$0xff]
  %s1948 = scalar_lea.vmem %s4, 128
  %v1949 = vld [vmem:[%s1948] sm:$0xff]
  %v1950 = vld [vmem:[%s1948 + $0x8] sm:$0xff]
  %v1951 = vld [vmem:[%s1948 + $0x10] sm:$0xff]
  %v1952 = vld [vmem:[%s1948 + $0x18] sm:$0xff]
  %v1953 = vld [vmem:[%s1948 + $0x20] sm:$0xff]
  %v1954 = vld [vmem:[%s1948 + $0x28] sm:$0xff]
  %v1955 = vld [vmem:[%s1948 + $0x30] sm:$0xff]
  %v1956 = vld [vmem:[%s1948 + $0x38] sm:$0xff]
  %v1957 = vld [vmem:[%s1948 + $0x40] sm:$0xff]
  %v1958 = vld [vmem:[%s1948 + $0x48] sm:$0xff]
  %v1959 = vld [vmem:[%s1948 + $0x50] sm:$0xff]
  %v1960 = vld [vmem:[%s1948 + $0x58] sm:$0xff]
  %v1961 = vld [vmem:[%s1948 + $0x60] sm:$0xff]
  %v1962 = vld [vmem:[%s1948 + $0x68] sm:$0xff]
  %v1963 = vld [vmem:[%s1948 + $0x70] sm:$0xff]
  %v1964 = vld [vmem:[%s1948 + $0x78] sm:$0xff]
  %v1965 = vld [vmem:[%s5 + $0x8] sm:$0x1]
  %v1966 = vld [vmem:[%s5 + $0x9] sm:$0x1]
  %v1967 = vld [vmem:[%s5 + $0xa] sm:$0x1]
  %v1968 = vld [vmem:[%s5 + $0xb] sm:$0x1]
  %v1969 = vld [vmem:[%s5 + $0xc] sm:$0x1]
  %v1970 = vld [vmem:[%s5 + $0xd] sm:$0x1]
  %v1971 = vld [vmem:[%s5 + $0xe] sm:$0x1]
  %v1972 = vld [vmem:[%s5 + $0xf] sm:$0x1]
  %v1973 = vlaneseq
  %v1974 = vshrl.u32 %v1973, 7
  %v1975 = vsub.s32 0, %v1974
  %v1976 = vrot.slane %v1965, %v1975
  %v1978 = vsel %vm150, %v1937, 0
  %v1981 = vsel %vm150, %v1938, 0
  %1983 = vmatprep.subr.mxu0 0.0
  %1984 = vmatpush1.msra.mxu0 %v1940
  %1985 = vmatprep.subr.mxu0 0.0
  %1986 = vmatpush1.msra.mxu0 %v1942
  %1987 = vmatprep.subr.mxu0 0.0
  %1988 = vmatpush1.msra.mxu0 %v1944
  %1989 = vmatprep.subr.mxu0 0.0
  %1990 = vmatpush1.msra.mxu0 %v1946
  %1991 = vmatprep.subr.mxu0 0.0
  %1992 = vmatpush1.msra.mxu0 0.0
  %1993 = vmatprep.subr.mxu0 0.0
  %1994 = vmatpush1.msra.mxu0 0.0
  %1995 = vmatprep.subr.mxu0 0.0
  %1996 = vmatpush1.msra.mxu0 0.0
  %1997 = vmatprep.subr.mxu0 0.0
  %1998 = vmatpush1.msra.mxu0 0.0
  %1999 = vmatprep.subr.mxu0 0.0
  %2000 = vmatpush1.msra.mxu0 0.0
  %2001 = vmatprep.subr.mxu0 0.0
  %2002 = vmatpush1.msra.mxu0 0.0
  %2003 = vmatprep.subr.mxu0 0.0
  %2004 = vmatpush1.msra.mxu0 0.0
  %2005 = vmatprep.subr.mxu0 0.0
  %2006 = vmatpush1.msra.mxu0 0.0
  %2007 = vmatprep.subr.mxu0 0.0
  %2008 = vmatpush1.msra.mxu0 0.0
  %2009 = vmatprep.subr.mxu0 0.0
  %2010 = vmatpush1.msra.mxu0 0.0
  %2011 = vmatprep.subr.mxu0 0.0
  %2012 = vmatpush1.msra.mxu0 0.0
  %2013 = vmatprep.subr.mxu0 0.0
  %2014 = vmatpush1.msra.mxu0 0.0
  %2015 = vmatprep.subr.mxu0 0.0
  %2016 = vmatpush1.msra.mxu0 0.0
  %2017 = vmatprep.subr.mxu0 0.0
  %2018 = vmatpush1.msra.mxu0 0.0
  %2019 = vmatprep.subr.mxu0 0.0
  %2020 = vmatpush1.msra.mxu0 0.0
  %2021 = vmatprep.subr.mxu0 0.0
  %2022 = vmatpush1.msra.mxu0 0.0
  %2023 = vmatprep.subr.mxu0 0.0
  %2024 = vmatpush1.msra.mxu0 0.0
  %2025 = vmatprep.subr.mxu0 0.0
  %2026 = vmatpush1.msra.mxu0 0.0
  %2027 = vmatprep.subr.mxu0 0.0
  %2028 = vmatpush1.msra.mxu0 0.0
  %2029 = vmatprep.subr.mxu0 0.0
  %2030 = vmatpush1.msra.mxu0 0.0
  %2031 = vmatprep.subr.mxu0 0.0
  %2032 = vmatpush1.msra.mxu0 0.0
  %2033 = vmatprep.subr.mxu0 0.0
  %2034 = vmatpush1.msra.mxu0 0.0
  %2035 = vmatprep.subr.mxu0 0.0
  %2036 = vmatpush1.msra.mxu0 0.0
  %2037 = vmatprep.subr.mxu0 0.0
  %2038 = vmatpush1.msra.mxu0 0.0
  %2039 = vmatprep.subr.mxu0 0.0
  %2040 = vmatpush1.msra.mxu0 0.0
  %2041 = vmatprep.subr.mxu0 0.0
  %2042 = vmatpush1.msra.mxu0 0.0
  %2043 = vmatprep.subr.mxu0 0.0
  %2044 = vmatpush1.msra.mxu0 0.0
  %2045 = vmatprep.subr.mxu0 0.0
  %2046 = vmatpush1.msra.mxu0 0.0
  %2047 = vmatprep.mubr.f32.mxu0 0.0
  %2048 = vmatmul.mubr.f32.gmra.mrb[0].mxu0 %v1978
  %v2049 = vpop.f32.mrb[0].mxu0
  %v2050 = vadd.f32 %v1976, %v2049
  %v2051 = vpop.f32.mrb[0].mxu0
  %2052 = vmatprep.mubr.f32.mxu0 0.0
  %2053 = vmatmul.mubr.f32.gmra.mrb[0].mxu0 %v1981
  %v2054 = vpop.f32.mrb[0].mxu0
  %v2055 = vadd.f32 %v1976, %v2054
  %v2056 = vpop.f32.mrb[0].mxu0
  %2057 = vdwg.mxu0
  %2059 = vrot.lane.b32.xlu0 %v2050, 96
  %v2060 = vpop.permute.xlu0 %2059
  %v2061 = vsel %vm235, %v2050, 0
  %v2063 = vsel %vm235, %v2060, 0
  %2065 = vmatprep.subr.mxu0 0.0
  %2066 = vmatpush1.xpose.msra.mxu0 %v2063
  %2067 = vmatprep.subr.mxu0 0.0
  %2068 = vmatpush1.xpose.msra.mxu0 0.0
  %2069 = vmatprep.subr.mxu0 0.0
  %2070 = vmatpush1.xpose.msra.mxu0 0.0
  %2071 = vmatprep.subr.mxu0 0.0
  %2072 = vmatpush1.xpose.msra.mxu0 0.0
  %2073 = vmatprep.subr.mxu0 0.0
  %2074 = vmatpush1.xpose.msra.mxu0 0.0
  %2075 = vmatprep.subr.mxu0 0.0
  %2076 = vmatpush1.xpose.msra.mxu0 0.0
  %2077 = vmatprep.subr.mxu0 0.0
  %2078 = vmatpush1.xpose.msra.mxu0 0.0
  %2079 = vmatprep.subr.mxu0 0.0
  %2080 = vmatpush1.xpose.msra.mxu0 0.0
  %2081 = vmatprep.subr.mxu0 0.0
  %2082 = vmatpush1.xpose.msra.mxu0 0.0
  %2083 = vmatprep.subr.mxu0 0.0
  %2084 = vmatpush1.xpose.msra.mxu0 0.0
  %2085 = vmatprep.subr.mxu0 0.0
  %2086 = vmatpush1.xpose.msra.mxu0 0.0
  %2087 = vmatprep.subr.mxu0 0.0
  %2088 = vmatpush1.xpose.msra.mxu0 0.0
  %2089 = vmatprep.subr.mxu0 0.0
  %2090 = vmatpush1.xpose.msra.mxu0 0.0
  %2091 = vmatprep.subr.mxu0 0.0
  %2092 = vmatpush1.xpose.msra.mxu0 0.0
  %2093 = vmatprep.subr.mxu0 0.0
  %2094 = vmatpush1.xpose.msra.mxu0 0.0
  %2095 = vmatprep.subr.mxu0 0.0
  %2096 = vmatpush1.xpose.msra.mxu0 0.0
  %2097 = vmatprep.subr.mxu0 0.0
  %2098 = vmatpush1.xpose.msra.mxu0 0.0
  %2099 = vmatprep.subr.mxu0 0.0
  %2100 = vmatpush1.xpose.msra.mxu0 0.0
  %2101 = vmatprep.subr.mxu0 0.0
  %2102 = vmatpush1.xpose.msra.mxu0 0.0
  %2103 = vmatprep.subr.mxu0 0.0
  %2104 = vmatpush1.xpose.msra.mxu0 0.0
  %2105 = vmatprep.subr.mxu0 0.0
  %2106 = vmatpush1.xpose.msra.mxu0 0.0
  %2107 = vmatprep.subr.mxu0 0.0
  %2108 = vmatpush1.xpose.msra.mxu0 0.0
  %2109 = vmatprep.subr.mxu0 0.0
  %2110 = vmatpush1.xpose.msra.mxu0 0.0
  %2111 = vmatprep.subr.mxu0 0.0
  %2112 = vmatpush1.xpose.msra.mxu0 0.0
  %2113 = vmatprep.subr.mxu0 0.0
  %2114 = vmatpush1.xpose.msra.mxu0 0.0
  %2115 = vmatprep.subr.mxu0 0.0
  %2116 = vmatpush1.xpose.msra.mxu0 0.0
  %2117 = vmatprep.subr.mxu0 0.0
  %2118 = vmatpush1.xpose.msra.mxu0 0.0
  %2119 = vmatprep.subr.mxu0 0.0
  %2120 = vmatpush1.xpose.msra.mxu0 0.0
  %2121 = vmatprep.subr.mxu0 0.0
  %2122 = vmatpush1.xpose.msra.mxu0 0.0
  %2123 = vmatprep.subr.mxu0 0.0
  %2124 = vmatpush1.xpose.msra.mxu0 0.0
  %2125 = vmatprep.subr.mxu0 0.0
  %2126 = vmatpush1.xpose.msra.mxu0 0.0
  %2127 = vmatprep.subr.mxu0 0.0
  %2128 = vmatpush1.xpose.msra.mxu0 0.0
  %2129 = vmatprep.mubr.f32.mxu0 0.0
  %2130 = vmatmul.mubr.f32.gmra.mrb[0].mxu0 %v2061
  %v2131 = vpop.f32.mrb[0].mxu0
  %v2132 = vadd.f32 0.0, %v2131
  %v2133 = vpop.f32.mrb[0].mxu0
  %2134 = vdwg.mxu0
  %2136 = vrot.lane.b32.xlu0 %v2055, 96
  %v2137 = vpop.permute.xlu0 %2136
  %v2138 = vsel %vm235, %v2055, 0
  %v2140 = vsel %vm235, %v2137, 0
  %2142 = vmatprep.subr.mxu0 0.0
  %2143 = vmatpush1.xpose.msra.mxu0 %v2140
  %2144 = vmatprep.subr.mxu0 0.0
  %2145 = vmatpush1.xpose.msra.mxu0 0.0
  %2146 = vmatprep.subr.mxu0 0.0
  %2147 = vmatpush1.xpose.msra.mxu0 0.0
  %2148 = vmatprep.subr.mxu0 0.0
  %2149 = vmatpush1.xpose.msra.mxu0 0.0
  %2150 = vmatprep.subr.mxu0 0.0
  %2151 = vmatpush1.xpose.msra.mxu0 0.0
  %2152 = vmatprep.subr.mxu0 0.0
  %2153 = vmatpush1.xpose.msra.mxu0 0.0
  %2154 = vmatprep.subr.mxu0 0.0
  %2155 = vmatpush1.xpose.msra.mxu0 0.0
  %2156 = vmatprep.subr.mxu0 0.0
  %2157 = vmatpush1.xpose.msra.mxu0 0.0
  %2158 = vmatprep.subr.mxu0 0.0
  %2159 = vmatpush1.xpose.msra.mxu0 0.0
  %2160 = vmatprep.subr.mxu0 0.0
  %2161 = vmatpush1.xpose.msra.mxu0 0.0
  %2162 = vmatprep.subr.mxu0 0.0
  %2163 = vmatpush1.xpose.msra.mxu0 0.0
  %2164 = vmatprep.subr.mxu0 0.0
  %2165 = vmatpush1.xpose.msra.mxu0 0.0
  %2166 = vmatprep.subr.mxu0 0.0
  %2167 = vmatpush1.xpose.msra.mxu0 0.0
  %2168 = vmatprep.subr.mxu0 0.0
  %2169 = vmatpush1.xpose.msra.mxu0 0.0
  %2170 = vmatprep.subr.mxu0 0.0
  %2171 = vmatpush1.xpose.msra.mxu0 0.0
  %2172 = vmatprep.subr.mxu0 0.0
  %2173 = vmatpush1.xpose.msra.mxu0 0.0
  %2174 = vmatprep.subr.mxu0 0.0
  %2175 = vmatpush1.xpose.msra.mxu0 0.0
  %2176 = vmatprep.subr.mxu0 0.0
  %2177 = vmatpush1.xpose.msra.mxu0 0.0
  %2178 = vmatprep.subr.mxu0 0.0
  %2179 = vmatpush1.xpose.msra.mxu0 0.0
  %2180 = vmatprep.subr.mxu0 0.0
  %2181 = vmatpush1.xpose.msra.mxu0 0.0
  %2182 = vmatprep.subr.mxu0 0.0
  %2183 = vmatpush1.xpose.msra.mxu0 0.0
  %2184 = vmatprep.subr.mxu0 0.0
  %2185 = vmatpush1.xpose.msra.mxu0 0.0
  %2186 = vmatprep.subr.mxu0 0.0
  %2187 = vmatpush1.xpose.msra.mxu0 0.0
  %2188 = vmatprep.subr.mxu0 0.0
  %2189 = vmatpush1.xpose.msra.mxu0 0.0
  %2190 = vmatprep.subr.mxu0 0.0
  %2191 = vmatpush1.xpose.msra.mxu0 0.0
  %2192 = vmatprep.subr.mxu0 0.0
  %2193 = vmatpush1.xpose.msra.mxu0 0.0
  %2194 = vmatprep.subr.mxu0 0.0
  %2195 = vmatpush1.xpose.msra.mxu0 0.0
  %2196 = vmatprep.subr.mxu0 0.0
  %2197 = vmatpush1.xpose.msra.mxu0 0.0
  %2198 = vmatprep.subr.mxu0 0.0
  %2199 = vmatpush1.xpose.msra.mxu0 0.0
  %2200 = vmatprep.subr.mxu0 0.0
  %2201 = vmatpush1.xpose.msra.mxu0 0.0
  %2202 = vmatprep.subr.mxu0 0.0
  %2203 = vmatpush1.xpose.msra.mxu0 0.0
  %2204 = vmatprep.subr.mxu0 0.0
  %2205 = vmatpush1.xpose.msra.mxu0 0.0
  %2206 = vmatprep.mubr.f32.mxu0 0.0
  %2207 = vmatmul.mubr.f32.gmra.mrb[0].mxu0 %v2138
  %v2208 = vpop.f32.mrb[0].mxu0
  %v2209 = vadd.f32 0.0, %v2208
  %v2210 = vpop.f32.mrb[0].mxu0
  %2211 = vdwg.mxu0
  %v2212 = vmul.f32 %v2132, 0.35355338
  %v2213 = vmul.f32 %v2209, 0.35355338
  %v2214 = vsel %vm235, %v2212, -inf
  %2215 = vmax.xlane.f32.xlu0 %v2214
  %v2216 = vpop.xlane.xlu0 %2215
  %v2217 = vsel %vm235, %v2213, -inf
  %2218 = vmax.xlane.f32.xlu0 %v2217
  %v2219 = vpop.xlane.xlu0 %2218
  %v2220 = vsub.f32 %v2212, %v2216
  %v2221 = vsub.f32 %v2213, %v2219
  %v2222 = vmul.f32 %v2220, 1.442695
  %v2223 = vpow.pop %v2222
  %v2224 = vmul.f32 %v2221, 1.442695
  %v2225 = vpow.pop %v2224
  %v2226 = vsel %vm235, %v2223, 0.0
  %2227 = vadd.xlane.f32.xlu0 %v2226
  %v2228 = vpop.xlane.xlu0 %2227
  %v2229 = vsel %vm235, %v2225, 0.0
  %2230 = vadd.xlane.f32.xlu0 %v2229
  %v2231 = vpop.xlane.xlu0 %2230
  %v2232 = vrcp.pop %v2228
  %v2233 = vmul.f32 %v2223, %v2232
  %v2234 = vrcp.pop %v2231
  %v2235 = vmul.f32 %v2225, %v2234
  %2236 = vrot.lane.b32.xlu0 %v2050, 64
  %v2237 = vpop.permute.xlu0 %2236
  %v2240 = vsel %vm235, %v2233, 0
  %2242 = vmatprep.subr.mxu0 0.0
  %2243 = vmatpush1.msra.mxu0 %v2237
  %2244 = vmatprep.subr.mxu0 0.0
  %2245 = vmatpush1.msra.mxu0 0.0
  %2246 = vmatprep.subr.mxu0 0.0
  %2247 = vmatpush1.msra.mxu0 0.0
  %2248 = vmatprep.subr.mxu0 0.0
  %2249 = vmatpush1.msra.mxu0 0.0
  %2250 = vmatprep.subr.mxu0 0.0
  %2251 = vmatpush1.msra.mxu0 0.0
  %2252 = vmatprep.subr.mxu0 0.0
  %2253 = vmatpush1.msra.mxu0 0.0
  %2254 = vmatprep.subr.mxu0 0.0
  %2255 = vmatpush1.msra.mxu0 0.0
  %2256 = vmatprep.subr.mxu0 0.0
  %2257 = vmatpush1.msra.mxu0 0.0
  %2258 = vmatprep.subr.mxu0 0.0
  %2259 = vmatpush1.msra.mxu0 0.0
  %2260 = vmatprep.subr.mxu0 0.0
  %2261 = vmatpush1.msra.mxu0 0.0
  %2262 = vmatprep.subr.mxu0 0.0
  %2263 = vmatpush1.msra.mxu0 0.0
  %2264 = vmatprep.subr.mxu0 0.0
  %2265 = vmatpush1.msra.mxu0 0.0
  %2266 = vmatprep.subr.mxu0 0.0
  %2267 = vmatpush1.msra.mxu0 0.0
  %2268 = vmatprep.subr.mxu0 0.0
  %2269 = vmatpush1.msra.mxu0 0.0
  %2270 = vmatprep.subr.mxu0 0.0
  %2271 = vmatpush1.msra.mxu0 0.0
  %2272 = vmatprep.subr.mxu0 0.0
  %2273 = vmatpush1.msra.mxu0 0.0
  %2274 = vmatprep.subr.mxu0 0.0
  %2275 = vmatpush1.msra.mxu0 0.0
  %2276 = vmatprep.subr.mxu0 0.0
  %2277 = vmatpush1.msra.mxu0 0.0
  %2278 = vmatprep.subr.mxu0 0.0
  %2279 = vmatpush1.msra.mxu0 0.0
  %2280 = vmatprep.subr.mxu0 0.0
  %2281 = vmatpush1.msra.mxu0 0.0
  %2282 = vmatprep.subr.mxu0 0.0
  %2283 = vmatpush1.msra.mxu0 0.0
  %2284 = vmatprep.subr.mxu0 0.0
  %2285 = vmatpush1.msra.mxu0 0.0
  %2286 = vmatprep.subr.mxu0 0.0
  %2287 = vmatpush1.msra.mxu0 0.0
  %2288 = vmatprep.subr.mxu0 0.0
  %2289 = vmatpush1.msra.mxu0 0.0
  %2290 = vmatprep.subr.mxu0 0.0
  %2291 = vmatpush1.msra.mxu0 0.0
  %2292 = vmatprep.subr.mxu0 0.0
  %2293 = vmatpush1.msra.mxu0 0.0
  %2294 = vmatprep.subr.mxu0 0.0
  %2295 = vmatpush1.msra.mxu0 0.0
  %2296 = vmatprep.subr.mxu0 0.0
  %2297 = vmatpush1.msra.mxu0 0.0
  %2298 = vmatprep.subr.mxu0 0.0
  %2299 = vmatpush1.msra.mxu0 0.0
  %2300 = vmatprep.subr.mxu0 0.0
  %2301 = vmatpush1.msra.mxu0 0.0
  %2302 = vmatprep.subr.mxu0 0.0
  %2303 = vmatpush1.msra.mxu0 0.0
  %2304 = vmatprep.subr.mxu0 0.0
  %2305 = vmatpush1.msra.mxu0 0.0
  %2306 = vmatprep.mubr.f32.mxu0 0.0
  %2307 = vmatmul.mubr.f32.gmra.mrb[0].mxu0 %v2240
  %v2308 = vpop.f32.mrb[0].mxu0
  %v2309 = vadd.f32 0.0, %v2308
  %v2310 = vpop.f32.mrb[0].mxu0
  %2311 = vdwg.mxu0
  %2312 = vrot.lane.b32.xlu0 %v2055, 64
  %v2313 = vpop.permute.xlu0 %2312
  %v2316 = vsel %vm235, %v2235, 0
  %2318 = vmatprep.subr.mxu0 0.0
  %2319 = vmatpush1.msra.mxu0 %v2313
  %2320 = vmatprep.subr.mxu0 0.0
  %2321 = vmatpush1.msra.mxu0 0.0
  %2322 = vmatprep.subr.mxu0 0.0
  %2323 = vmatpush1.msra.mxu0 0.0
  %2324 = vmatprep.subr.mxu0 0.0
  %2325 = vmatpush1.msra.mxu0 0.0
  %2326 = vmatprep.subr.mxu0 0.0
  %2327 = vmatpush1.msra.mxu0 0.0
  %2328 = vmatprep.subr.mxu0 0.0
  %2329 = vmatpush1.msra.mxu0 0.0
  %2330 = vmatprep.subr.mxu0 0.0
  %2331 = vmatpush1.msra.mxu0 0.0
  %2332 = vmatprep.subr.mxu0 0.0
  %2333 = vmatpush1.msra.mxu0 0.0
  %2334 = vmatprep.subr.mxu0 0.0
  %2335 = vmatpush1.msra.mxu0 0.0
  %2336 = vmatprep.subr.mxu0 0.0
  %2337 = vmatpush1.msra.mxu0 0.0
  %2338 = vmatprep.subr.mxu0 0.0
  %2339 = vmatpush1.msra.mxu0 0.0
  %2340 = vmatprep.subr.mxu0 0.0
  %2341 = vmatpush1.msra.mxu0 0.0
  %2342 = vmatprep.subr.mxu0 0.0
  %2343 = vmatpush1.msra.mxu0 0.0
  %2344 = vmatprep.subr.mxu0 0.0
  %2345 = vmatpush1.msra.mxu0 0.0
  %2346 = vmatprep.subr.mxu0 0.0
  %2347 = vmatpush1.msra.mxu0 0.0
  %2348 = vmatprep.subr.mxu0 0.0
  %2349 = vmatpush1.msra.mxu0 0.0
  %2350 = vmatprep.subr.mxu0 0.0
  %2351 = vmatpush1.msra.mxu0 0.0
  %2352 = vmatprep.subr.mxu0 0.0
  %2353 = vmatpush1.msra.mxu0 0.0
  %2354 = vmatprep.subr.mxu0 0.0
  %2355 = vmatpush1.msra.mxu0 0.0
  %2356 = vmatprep.subr.mxu0 0.0
  %2357 = vmatpush1.msra.mxu0 0.0
  %2358 = vmatprep.subr.mxu0 0.0
  %2359 = vmatpush1.msra.mxu0 0.0
  %2360 = vmatprep.subr.mxu0 0.0
  %2361 = vmatpush1.msra.mxu0 0.0
  %2362 = vmatprep.subr.mxu0 0.0
  %2363 = vmatpush1.msra.mxu0 0.0
  %2364 = vmatprep.subr.mxu0 0.0
  %2365 = vmatpush1.msra.mxu0 0.0
  %2366 = vmatprep.subr.mxu0 0.0
  %2367 = vmatpush1.msra.mxu0 0.0
  %2368 = vmatprep.subr.mxu0 0.0
  %2369 = vmatpush1.msra.mxu0 0.0
  %2370 = vmatprep.subr.mxu0 0.0
  %2371 = vmatpush1.msra.mxu0 0.0
  %2372 = vmatprep.subr.mxu0 0.0
  %2373 = vmatpush1.msra.mxu0 0.0
  %2374 = vmatprep.subr.mxu0 0.0
  %2375 = vmatpush1.msra.mxu0 0.0
  %2376 = vmatprep.subr.mxu0 0.0
  %2377 = vmatpush1.msra.mxu0 0.0
  %2378 = vmatprep.subr.mxu0 0.0
  %2379 = vmatpush1.msra.mxu0 0.0
  %2380 = vmatprep.subr.mxu0 0.0
  %2381 = vmatpush1.msra.mxu0 0.0
  %2382 = vmatprep.mubr.f32.mxu0 0.0
  %2383 = vmatmul.mubr.f32.gmra.mrb[0].mxu0 %v2316
  %v2384 = vpop.f32.mrb[0].mxu0
  %v2385 = vadd.f32 0.0, %v2384
  %v2386 = vpop.f32.mrb[0].mxu0
  %2387 = vdwg.mxu0
  %2388 = vrot.lane.b32.xlu0 %v2050, 120
  %v2389 = vpop.permute.xlu0 %2388
  %2390 = vrot.lane.b32.xlu0 %v2050, 88
  %v2391 = vpop.permute.xlu0 %2390
  %v2392 = vsel %vm235, %v2389, 0
  %v2394 = vsel %vm235, %v2391, 0
  %2396 = vmatprep.subr.mxu0 0.0
  %2397 = vmatpush1.xpose.msra.mxu0 %v2394
  %2398 = vmatprep.subr.mxu0 0.0
  %2399 = vmatpush1.xpose.msra.mxu0 0.0
  %2400 = vmatprep.subr.mxu0 0.0
  %2401 = vmatpush1.xpose.msra.mxu0 0.0
  %2402 = vmatprep.subr.mxu0 0.0
  %2403 = vmatpush1.xpose.msra.mxu0 0.0
  %2404 = vmatprep.subr.mxu0 0.0
  %2405 = vmatpush1.xpose.msra.mxu0 0.0
  %2406 = vmatprep.subr.mxu0 0.0
  %2407 = vmatpush1.xpose.msra.mxu0 0.0
  %2408 = vmatprep.subr.mxu0 0.0
  %2409 = vmatpush1.xpose.msra.mxu0 0.0
  %2410 = vmatprep.subr.mxu0 0.0
  %2411 = vmatpush1.xpose.msra.mxu0 0.0
  %2412 = vmatprep.subr.mxu0 0.0
  %2413 = vmatpush1.xpose.msra.mxu0 0.0
  %2414 = vmatprep.subr.mxu0 0.0
  %2415 = vmatpush1.xpose.msra.mxu0 0.0
  %2416 = vmatprep.subr.mxu0 0.0
  %2417 = vmatpush1.xpose.msra.mxu0 0.0
  %2418 = vmatprep.subr.mxu0 0.0
  %2419 = vmatpush1.xpose.msra.mxu0 0.0
  %2420 = vmatprep.subr.mxu0 0.0
  %2421 = vmatpush1.xpose.msra.mxu0 0.0
  %2422 = vmatprep.subr.mxu0 0.0
  %2423 = vmatpush1.xpose.msra.mxu0 0.0
  %2424 = vmatprep.subr.mxu0 0.0
  %2425 = vmatpush1.xpose.msra.mxu0 0.0
  %2426 = vmatprep.subr.mxu0 0.0
  %2427 = vmatpush1.xpose.msra.mxu0 0.0
  %2428 = vmatprep.subr.mxu0 0.0
  %2429 = vmatpush1.xpose.msra.mxu0 0.0
  %2430 = vmatprep.subr.mxu0 0.0
  %2431 = vmatpush1.xpose.msra.mxu0 0.0
  %2432 = vmatprep.subr.mxu0 0.0
  %2433 = vmatpush1.xpose.msra.mxu0 0.0
  %2434 = vmatprep.subr.mxu0 0.0
  %2435 = vmatpush1.xpose.msra.mxu0 0.0
  %2436 = vmatprep.subr.mxu0 0.0
  %2437 = vmatpush1.xpose.msra.mxu0 0.0
  %2438 = vmatprep.subr.mxu0 0.0
  %2439 = vmatpush1.xpose.msra.mxu0 0.0
  %2440 = vmatprep.subr.mxu0 0.0
  %2441 = vmatpush1.xpose.msra.mxu0 0.0
  %2442 = vmatprep.subr.mxu0 0.0
  %2443 = vmatpush1.xpose.msra.mxu0 0.0
  %2444 = vmatprep.subr.mxu0 0.0
  %2445 = vmatpush1.xpose.msra.mxu0 0.0
  %2446 = vmatprep.subr.mxu0 0.0
  %2447 = vmatpush1.xpose.msra.mxu0 0.0
  %2448 = vmatprep.subr.mxu0 0.0
  %2449 = vmatpush1.xpose.msra.mxu0 0.0
  %2450 = vmatprep.subr.mxu0 0.0
  %2451 = vmatpush1.xpose.msra.mxu0 0.0
  %2452 = vmatprep.subr.mxu0 0.0
  %2453 = vmatpush1.xpose.msra.mxu0 0.0
  %2454 = vmatprep.subr.mxu0 0.0
  %2455 = vmatpush1.xpose.msra.mxu0 0.0
  %2456 = vmatprep.subr.mxu0 0.0
  %2457 = vmatpush1.xpose.msra.mxu0 0.0
  %2458 = vmatprep.subr.mxu0 0.0
  %2459 = vmatpush1.xpose.msra.mxu0 0.0
  %2460 = vmatprep.mubr.f32.mxu0 0.0
  %2461 = vmatmul.mubr.f32.gmra.mrb[0].mxu0 %v2392
  %v2462 = vpop.f32.mrb[0].mxu0
  %v2463 = vadd.f32 0.0, %v2462
  %v2464 = vpop.f32.mrb[0].mxu0
  %2465 = vdwg.mxu0
  %2466 = vrot.lane.b32.xlu0 %v2055, 120
  %v2467 = vpop.permute.xlu0 %2466
  %2468 = vrot.lane.b32.xlu0 %v2055, 88
  %v2469 = vpop.permute.xlu0 %2468
  %v2470 = vsel %vm235, %v2467, 0
  %v2472 = vsel %vm235, %v2469, 0
  %2474 = vmatprep.subr.mxu0 0.0
  %2475 = vmatpush1.xpose.msra.mxu0 %v2472
  %2476 = vmatprep.subr.mxu0 0.0
  %2477 = vmatpush1.xpose.msra.mxu0 0.0
  %2478 = vmatprep.subr.mxu0 0.0
  %2479 = vmatpush1.xpose.msra.mxu0 0.0
  %2480 = vmatprep.subr.mxu0 0.0
  %2481 = vmatpush1.xpose.msra.mxu0 0.0
  %2482 = vmatprep.subr.mxu0 0.0
  %2483 = vmatpush1.xpose.msra.mxu0 0.0
  %2484 = vmatprep.subr.mxu0 0.0
  %2485 = vmatpush1.xpose.msra.mxu0 0.0
  %2486 = vmatprep.subr.mxu0 0.0
  %2487 = vmatpush1.xpose.msra.mxu0 0.0
  %2488 = vmatprep.subr.mxu0 0.0
  %2489 = vmatpush1.xpose.msra.mxu0 0.0
  %2490 = vmatprep.subr.mxu0 0.0
  %2491 = vmatpush1.xpose.msra.mxu0 0.0
  %2492 = vmatprep.subr.mxu0 0.0
  %2493 = vmatpush1.xpose.msra.mxu0 0.0
  %2494 = vmatprep.subr.mxu0 0.0
  %2495 = vmatpush1.xpose.msra.mxu0 0.0
  %2496 = vmatprep.subr.mxu0 0.0
  %2497 = vmatpush1.xpose.msra.mxu0 0.0
  %2498 = vmatprep.subr.mxu0 0.0
  %2499 = vmatpush1.xpose.msra.mxu0 0.0
  %2500 = vmatprep.subr.mxu0 0.0
  %2501 = vmatpush1.xpose.msra.mxu0 0.0
  %2502 = vmatprep.subr.mxu0 0.0
  %2503 = vmatpush1.xpose.msra.mxu0 0.0
  %2504 = vmatprep.subr.mxu0 0.0
  %2505 = vmatpush1.xpose.msra.mxu0 0.0
  %2506 = vmatprep.subr.mxu0 0.0
  %2507 = vmatpush1.xpose.msra.mxu0 0.0
  %2508 = vmatprep.subr.mxu0 0.0
  %2509 = vmatpush1.xpose.msra.mxu0 0.0
  %2510 = vmatprep.subr.mxu0 0.0
  %2511 = vmatpush1.xpose.msra.mxu0 0.0
  %2512 = vmatprep.subr.mxu0 0.0
  %2513 = vmatpush1.xpose.msra.mxu0 0.0
  %2514 = vmatprep.subr.mxu0 0.0
  %2515 = vmatpush1.xpose.msra.mxu0 0.0
  %2516 = vmatprep.subr.mxu0 0.0
  %2517 = vmatpush1.xpose.msra.mxu0 0.0
  %2518 = vmatprep.subr.mxu0 0.0
  %2519 = vmatpush1.xpose.msra.mxu0 0.0
  %2520 = vmatprep.subr.mxu0 0.0
  %2521 = vmatpush1.xpose.msra.mxu0 0.0
  %2522 = vmatprep.subr.mxu0 0.0
  %2523 = vmatpush1.xpose.msra.mxu0 0.0
  %2524 = vmatprep.subr.mxu0 0.0
  %2525 = vmatpush1.xpose.msra.mxu0 0.0
  %2526 = vmatprep.subr.mxu0 0.0
  %2527 = vmatpush1.xpose.msra.mxu0 0.0
  %2528 = vmatprep.subr.mxu0 0.0
  %2529 = vmatpush1.xpose.msra.mxu0 0.0
  %2530 = vmatprep.subr.mxu0 0.0
  %2531 = vmatpush1.xpose.msra.mxu0 0.0
  %2532 = vmatprep.subr.mxu0 0.0
  %2533 = vmatpush1.xpose.msra.mxu0 0.0
  %2534 = vmatprep.subr.mxu0 0.0
  %2535 = vmatpush1.xpose.msra.mxu0 0.0
  %2536 = vmatprep.subr.mxu0 0.0
  %2537 = vmatpush1.xpose.msra.mxu0 0.0
  %2538 = vmatprep.mubr.f32.mxu0 0.0
  %2539 = vmatmul.mubr.f32.gmra.mrb[0].mxu0 %v2470
  %v2540 = vpop.f32.mrb[0].mxu0
  %v2541 = vadd.f32 0.0, %v2540
  %v2542 = vpop.f32.mrb[0].mxu0
  %2543 = vdwg.mxu0
  %v2544 = vmul.f32 %v2463, 0.35355338
  %v2545 = vmul.f32 %v2541, 0.35355338
  %v2546 = vsel %vm235, %v2544, -inf
  %2547 = vmax.xlane.f32.xlu0 %v2546
  %v2548 = vpop.xlane.xlu0 %2547
  %v2549 = vsel %vm235, %v2545, -inf
  %2550 = vmax.xlane.f32.xlu0 %v2549
  %v2551 = vpop.xlane.xlu0 %2550
  %v2552 = vsub.f32 %v2544, %v2548
  %v2553 = vsub.f32 %v2545, %v2551
  %v2554 = vmul.f32 %v2552, 1.442695
  %v2555 = vpow.pop %v2554
  %v2556 = vmul.f32 %v2553, 1.442695
  %v2557 = vpow.pop %v2556
  %v2558 = vsel %vm235, %v2555, 0.0
  %2559 = vadd.xlane.f32.xlu0 %v2558
  %v2560 = vpop.xlane.xlu0 %2559
  %v2561 = vsel %vm235, %v2557, 0.0
  %2562 = vadd.xlane.f32.xlu0 %v2561
  %v2563 = vpop.xlane.xlu0 %2562
  %v2564 = vrcp.pop %v2560
  %v2565 = vmul.f32 %v2555, %v2564
  %v2566 = vrcp.pop %v2563
  %v2567 = vmul.f32 %v2557, %v2566
  %2568 = vrot.lane.b32.xlu0 %v2050, 56
  %v2569 = vpop.permute.xlu0 %2568
  %v2572 = vsel %vm235, %v2565, 0
  %2574 = vmatprep.subr.mxu0 0.0
  %2575 = vmatpush1.msra.mxu0 %v2569
  %2576 = vmatprep.subr.mxu0 0.0
  %2577 = vmatpush1.msra.mxu0 0.0
  %2578 = vmatprep.subr.mxu0 0.0
  %2579 = vmatpush1.msra.mxu0 0.0
  %2580 = vmatprep.subr.mxu0 0.0
  %2581 = vmatpush1.msra.mxu0 0.0
  %2582 = vmatprep.subr.mxu0 0.0
  %2583 = vmatpush1.msra.mxu0 0.0
  %2584 = vmatprep.subr.mxu0 0.0
  %2585 = vmatpush1.msra.mxu0 0.0
  %2586 = vmatprep.subr.mxu0 0.0
  %2587 = vmatpush1.msra.mxu0 0.0
  %2588 = vmatprep.subr.mxu0 0.0
  %2589 = vmatpush1.msra.mxu0 0.0
  %2590 = vmatprep.subr.mxu0 0.0
  %2591 = vmatpush1.msra.mxu0 0.0
  %2592 = vmatprep.subr.mxu0 0.0
  %2593 = vmatpush1.msra.mxu0 0.0
  %2594 = vmatprep.subr.mxu0 0.0
  %2595 = vmatpush1.msra.mxu0 0.0
  %2596 = vmatprep.subr.mxu0 0.0
  %2597 = vmatpush1.msra.mxu0 0.0
  %2598 = vmatprep.subr.mxu0 0.0
  %2599 = vmatpush1.msra.mxu0 0.0
  %2600 = vmatprep.subr.mxu0 0.0
  %2601 = vmatpush1.msra.mxu0 0.0
  %2602 = vmatprep.subr.mxu0 0.0
  %2603 = vmatpush1.msra.mxu0 0.0
  %2604 = vmatprep.subr.mxu0 0.0
  %2605 = vmatpush1.msra.mxu0 0.0
  %2606 = vmatprep.subr.mxu0 0.0
  %2607 = vmatpush1.msra.mxu0 0.0
  %2608 = vmatprep.subr.mxu0 0.0
  %2609 = vmatpush1.msra.mxu0 0.0
  %2610 = vmatprep.subr.mxu0 0.0
  %2611 = vmatpush1.msra.mxu0 0.0
  %2612 = vmatprep.subr.mxu0 0.0
  %2613 = vmatpush1.msra.mxu0 0.0
  %2614 = vmatprep.subr.mxu0 0.0
  %2615 = vmatpush1.msra.mxu0 0.0
  %2616 = vmatprep.subr.mxu0 0.0
  %2617 = vmatpush1.msra.mxu0 0.0
  %2618 = vmatprep.subr.mxu0 0.0
  %2619 = vmatpush1.msra.mxu0 0.0
  %2620 = vmatprep.subr.mxu0 0.0
  %2621 = vmatpush1.msra.mxu0 0.0
  %2622 = vmatprep.subr.mxu0 0.0
  %2623 = vmatpush1.msra.mxu0 0.0
  %2624 = vmatprep.subr.mxu0 0.0
  %2625 = vmatpush1.msra.mxu0 0.0
  %2626 = vmatprep.subr.mxu0 0.0
  %2627 = vmatpush1.msra.mxu0 0.0
  %2628 = vmatprep.subr.mxu0 0.0
  %2629 = vmatpush1.msra.mxu0 0.0
  %2630 = vmatprep.subr.mxu0 0.0
  %2631 = vmatpush1.msra.mxu0 0.0
  %2632 = vmatprep.subr.mxu0 0.0
  %2633 = vmatpush1.msra.mxu0 0.0
  %2634 = vmatprep.subr.mxu0 0.0
  %2635 = vmatpush1.msra.mxu0 0.0
  %2636 = vmatprep.subr.mxu0 0.0
  %2637 = vmatpush1.msra.mxu0 0.0
  %2638 = vmatprep.mubr.f32.mxu0 0.0
  %2639 = vmatmul.mubr.f32.gmra.mrb[0].mxu0 %v2572
  %v2640 = vpop.f32.mrb[0].mxu0
  %v2641 = vadd.f32 0.0, %v2640
  %v2642 = vpop.f32.mrb[0].mxu0
  %2643 = vdwg.mxu0
  %2644 = vrot.lane.b32.xlu0 %v2055, 56
  %v2645 = vpop.permute.xlu0 %2644
  %v2648 = vsel %vm235, %v2567, 0
  %2650 = vmatprep.subr.mxu0 0.0
  %2651 = vmatpush1.msra.mxu0 %v2645
  %2652 = vmatprep.subr.mxu0 0.0
  %2653 = vmatpush1.msra.mxu0 0.0
  %2654 = vmatprep.subr.mxu0 0.0
  %2655 = vmatpush1.msra.mxu0 0.0
  %2656 = vmatprep.subr.mxu0 0.0
  %2657 = vmatpush1.msra.mxu0 0.0
  %2658 = vmatprep.subr.mxu0 0.0
  %2659 = vmatpush1.msra.mxu0 0.0
  %2660 = vmatprep.subr.mxu0 0.0
  %2661 = vmatpush1.msra.mxu0 0.0
  %2662 = vmatprep.subr.mxu0 0.0
  %2663 = vmatpush1.msra.mxu0 0.0
  %2664 = vmatprep.subr.mxu0 0.0
  %2665 = vmatpush1.msra.mxu0 0.0
  %2666 = vmatprep.subr.mxu0 0.0
  %2667 = vmatpush1.msra.mxu0 0.0
  %2668 = vmatprep.subr.mxu0 0.0
  %2669 = vmatpush1.msra.mxu0 0.0
  %2670 = vmatprep.subr.mxu0 0.0
  %2671 = vmatpush1.msra.mxu0 0.0
  %2672 = vmatprep.subr.mxu0 0.0
  %2673 = vmatpush1.msra.mxu0 0.0
  %2674 = vmatprep.subr.mxu0 0.0
  %2675 = vmatpush1.msra.mxu0 0.0
  %2676 = vmatprep.subr.mxu0 0.0
  %2677 = vmatpush1.msra.mxu0 0.0
  %2678 = vmatprep.subr.mxu0 0.0
  %2679 = vmatpush1.msra.mxu0 0.0
  %2680 = vmatprep.subr.mxu0 0.0
  %2681 = vmatpush1.msra.mxu0 0.0
  %2682 = vmatprep.subr.mxu0 0.0
  %2683 = vmatpush1.msra.mxu0 0.0
  %2684 = vmatprep.subr.mxu0 0.0
  %2685 = vmatpush1.msra.mxu0 0.0
  %2686 = vmatprep.subr.mxu0 0.0
  %2687 = vmatpush1.msra.mxu0 0.0
  %2688 = vmatprep.subr.mxu0 0.0
  %2689 = vmatpush1.msra.mxu0 0.0
  %2690 = vmatprep.subr.mxu0 0.0
  %2691 = vmatpush1.msra.mxu0 0.0
  %2692 = vmatprep.subr.mxu0 0.0
  %2693 = vmatpush1.msra.mxu0 0.0
  %2694 = vmatprep.subr.mxu0 0.0
  %2695 = vmatpush1.msra.mxu0 0.0
  %2696 = vmatprep.subr.mxu0 0.0
  %2697 = vmatpush1.msra.mxu0 0.0
  %2698 = vmatprep.subr.mxu0 0.0
  %2699 = vmatpush1.msra.mxu0 0.0
  %2700 = vmatprep.subr.mxu0 0.0
  %2701 = vmatpush1.msra.mxu0 0.0
  %2702 = vmatprep.subr.mxu0 0.0
  %2703 = vmatpush1.msra.mxu0 0.0
  %2704 = vmatprep.subr.mxu0 0.0
  %2705 = vmatpush1.msra.mxu0 0.0
  %2706 = vmatprep.subr.mxu0 0.0
  %2707 = vmatpush1.msra.mxu0 0.0
  %2708 = vmatprep.subr.mxu0 0.0
  %2709 = vmatpush1.msra.mxu0 0.0
  %2710 = vmatprep.subr.mxu0 0.0
  %2711 = vmatpush1.msra.mxu0 0.0
  %2712 = vmatprep.subr.mxu0 0.0
  %2713 = vmatpush1.msra.mxu0 0.0
  %2714 = vmatprep.mubr.f32.mxu0 0.0
  %2715 = vmatmul.mubr.f32.gmra.mrb[0].mxu0 %v2648
  %v2716 = vpop.f32.mrb[0].mxu0
  %v2717 = vadd.f32 0.0, %v2716
  %v2718 = vpop.f32.mrb[0].mxu0
  %2719 = vdwg.mxu0
  %2720 = vrot.lane.b32.xlu0 %v2050, 112
  %v2721 = vpop.permute.xlu0 %2720
  %2722 = vrot.lane.b32.xlu0 %v2050, 80
  %v2723 = vpop.permute.xlu0 %2722
  %v2724 = vsel %vm235, %v2721, 0
  %v2726 = vsel %vm235, %v2723, 0
  %2728 = vmatprep.subr.mxu0 0.0
  %2729 = vmatpush1.xpose.msra.mxu0 %v2726
  %2730 = vmatprep.subr.mxu0 0.0
  %2731 = vmatpush1.xpose.msra.mxu0 0.0
  %2732 = vmatprep.subr.mxu0 0.0
  %2733 = vmatpush1.xpose.msra.mxu0 0.0
  %2734 = vmatprep.subr.mxu0 0.0
  %2735 = vmatpush1.xpose.msra.mxu0 0.0
  %2736 = vmatprep.subr.mxu0 0.0
  %2737 = vmatpush1.xpose.msra.mxu0 0.0
  %2738 = vmatprep.subr.mxu0 0.0
  %2739 = vmatpush1.xpose.msra.mxu0 0.0
  %2740 = vmatprep.subr.mxu0 0.0
  %2741 = vmatpush1.xpose.msra.mxu0 0.0
  %2742 = vmatprep.subr.mxu0 0.0
  %2743 = vmatpush1.xpose.msra.mxu0 0.0
  %2744 = vmatprep.subr.mxu0 0.0
  %2745 = vmatpush1.xpose.msra.mxu0 0.0
  %2746 = vmatprep.subr.mxu0 0.0
  %2747 = vmatpush1.xpose.msra.mxu0 0.0
  %2748 = vmatprep.subr.mxu0 0.0
  %2749 = vmatpush1.xpose.msra.mxu0 0.0
  %2750 = vmatprep.subr.mxu0 0.0
  %2751 = vmatpush1.xpose.msra.mxu0 0.0
  %2752 = vmatprep.subr.mxu0 0.0
  %2753 = vmatpush1.xpose.msra.mxu0 0.0
  %2754 = vmatprep.subr.mxu0 0.0
  %2755 = vmatpush1.xpose.msra.mxu0 0.0
  %2756 = vmatprep.subr.mxu0 0.0
  %2757 = vmatpush1.xpose.msra.mxu0 0.0
  %2758 = vmatprep.subr.mxu0 0.0
  %2759 = vmatpush1.xpose.msra.mxu0 0.0
  %2760 = vmatprep.subr.mxu0 0.0
  %2761 = vmatpush1.xpose.msra.mxu0 0.0
  %2762 = vmatprep.subr.mxu0 0.0
  %2763 = vmatpush1.xpose.msra.mxu0 0.0
  %2764 = vmatprep.subr.mxu0 0.0
  %2765 = vmatpush1.xpose.msra.mxu0 0.0
  %2766 = vmatprep.subr.mxu0 0.0
  %2767 = vmatpush1.xpose.msra.mxu0 0.0
  %2768 = vmatprep.subr.mxu0 0.0
  %2769 = vmatpush1.xpose.msra.mxu0 0.0
  %2770 = vmatprep.subr.mxu0 0.0
  %2771 = vmatpush1.xpose.msra.mxu0 0.0
  %2772 = vmatprep.subr.mxu0 0.0
  %2773 = vmatpush1.xpose.msra.mxu0 0.0
  %2774 = vmatprep.subr.mxu0 0.0
  %2775 = vmatpush1.xpose.msra.mxu0 0.0
  %2776 = vmatprep.subr.mxu0 0.0
  %2777 = vmatpush1.xpose.msra.mxu0 0.0
  %2778 = vmatprep.subr.mxu0 0.0
  %2779 = vmatpush1.xpose.msra.mxu0 0.0
  %2780 = vmatprep.subr.mxu0 0.0
  %2781 = vmatpush1.xpose.msra.mxu0 0.0
  %2782 = vmatprep.subr.mxu0 0.0
  %2783 = vmatpush1.xpose.msra.mxu0 0.0
  %2784 = vmatprep.subr.mxu0 0.0
  %2785 = vmatpush1.xpose.msra.mxu0 0.0
  %2786 = vmatprep.subr.mxu0 0.0
  %2787 = vmatpush1.xpose.msra.mxu0 0.0
  %2788 = vmatprep.subr.mxu0 0.0
  %2789 = vmatpush1.xpose.msra.mxu0 0.0
  %2790 = vmatprep.subr.mxu0 0.0
  %2791 = vmatpush1.xpose.msra.mxu0 0.0
  %2792 = vmatprep.mubr.f32.mxu0 0.0
  %2793 = vmatmul.mubr.f32.gmra.mrb[0].mxu0 %v2724
  %v2794 = vpop.f32.mrb[0].mxu0
  %v2795 = vadd.f32 0.0, %v2794
  %v2796 = vpop.f32.mrb[0].mxu0
  %2797 = vdwg.mxu0
  %2798 = vrot.lane.b32.xlu0 %v2055, 112
  %v2799 = vpop.permute.xlu0 %2798
  %2800 = vrot.lane.b32.xlu0 %v2055, 80
  %v2801 = vpop.permute.xlu0 %2800
  %v2802 = vsel %vm235, %v2799, 0
  %v2804 = vsel %vm235, %v2801, 0
  %2806 = vmatprep.subr.mxu0 0.0
  %2807 = vmatpush1.xpose.msra.mxu0 %v2804
  %2808 = vmatprep.subr.mxu0 0.0
  %2809 = vmatpush1.xpose.msra.mxu0 0.0
  %2810 = vmatprep.subr.mxu0 0.0
  %2811 = vmatpush1.xpose.msra.mxu0 0.0
  %2812 = vmatprep.subr.mxu0 0.0
  %2813 = vmatpush1.xpose.msra.mxu0 0.0
  %2814 = vmatprep.subr.mxu0 0.0
  %2815 = vmatpush1.xpose.msra.mxu0 0.0
  %2816 = vmatprep.subr.mxu0 0.0
  %2817 = vmatpush1.xpose.msra.mxu0 0.0
  %2818 = vmatprep.subr.mxu0 0.0
  %2819 = vmatpush1.xpose.msra.mxu0 0.0
  %2820 = vmatprep.subr.mxu0 0.0
  %2821 = vmatpush1.xpose.msra.mxu0 0.0
  %2822 = vmatprep.subr.mxu0 0.0
  %2823 = vmatpush1.xpose.msra.mxu0 0.0
  %2824 = vmatprep.subr.mxu0 0.0
  %2825 = vmatpush1.xpose.msra.mxu0 0.0
  %2826 = vmatprep.subr.mxu0 0.0
  %2827 = vmatpush1.xpose.msra.mxu0 0.0
  %2828 = vmatprep.subr.mxu0 0.0
  %2829 = vmatpush1.xpose.msra.mxu0 0.0
  %2830 = vmatprep.subr.mxu0 0.0
  %2831 = vmatpush1.xpose.msra.mxu0 0.0
  %2832 = vmatprep.subr.mxu0 0.0
  %2833 = vmatpush1.xpose.msra.mxu0 0.0
  %2834 = vmatprep.subr.mxu0 0.0
  %2835 = vmatpush1.xpose.msra.mxu0 0.0
  %2836 = vmatprep.subr.mxu0 0.0
  %2837 = vmatpush1.xpose.msra.mxu0 0.0
  %2838 = vmatprep.subr.mxu0 0.0
  %2839 = vmatpush1.xpose.msra.mxu0 0.0
  %2840 = vmatprep.subr.mxu0 0.0
  %2841 = vmatpush1.xpose.msra.mxu0 0.0
  %2842 = vmatprep.subr.mxu0 0.0
  %2843 = vmatpush1.xpose.msra.mxu0 0.0
  %2844 = vmatprep.subr.mxu0 0.0
  %2845 = vmatpush1.xpose.msra.mxu0 0.0
  %2846 = vmatprep.subr.mxu0 0.0
  %2847 = vmatpush1.xpose.msra.mxu0 0.0
  %2848 = vmatprep.subr.mxu0 0.0
  %2849 = vmatpush1.xpose.msra.mxu0 0.0
  %2850 = vmatprep.subr.mxu0 0.0
  %2851 = vmatpush1.xpose.msra.mxu0 0.0
  %2852 = vmatprep.subr.mxu0 0.0
  %2853 = vmatpush1.xpose.msra.mxu0 0.0
  %2854 = vmatprep.subr.mxu0 0.0
  %2855 = vmatpush1.xpose.msra.mxu0 0.0
  %2856 = vmatprep.subr.mxu0 0.0
  %2857 = vmatpush1.xpose.msra.mxu0 0.0
  %2858 = vmatprep.subr.mxu0 0.0
  %2859 = vmatpush1.xpose.msra.mxu0 0.0
  %2860 = vmatprep.subr.mxu0 0.0
  %2861 = vmatpush1.xpose.msra.mxu0 0.0
  %2862 = vmatprep.subr.mxu0 0.0
  %2863 = vmatpush1.xpose.msra.mxu0 0.0
  %2864 = vmatprep.subr.mxu0 0.0
  %2865 = vmatpush1.xpose.msra.mxu0 0.0
  %2866 = vmatprep.subr.mxu0 0.0
  %2867 = vmatpush1.xpose.msra.mxu0 0.0
  %2868 = vmatprep.subr.mxu0 0.0
  %2869 = vmatpush1.xpose.msra.mxu0 0.0
  %2870 = vmatprep.mubr.f32.mxu0 0.0
  %2871 = vmatmul.mubr.f32.gmra.mrb[0].mxu0 %v2802
  %v2872 = vpop.f32.mrb[0].mxu0
  %v2873 = vadd.f32 0.0, %v2872
  %v2874 = vpop.f32.mrb[0].mxu0
  %2875 = vdwg.mxu0
  %v2876 = vmul.f32 %v2795, 0.35355338
  %v2877 = vmul.f32 %v2873, 0.35355338
  %v2878 = vsel %vm235, %v2876, -inf
  %2879 = vmax.xlane.f32.xlu0 %v2878
  %v2880 = vpop.xlane.xlu0 %2879
  %v2881 = vsel %vm235, %v2877, -inf
  %2882 = vmax.xlane.f32.xlu0 %v2881
  %v2883 = vpop.xlane.xlu0 %2882
  %v2884 = vsub.f32 %v2876, %v2880
  %v2885 = vsub.f32 %v2877, %v2883
  %v2886 = vmul.f32 %v2884, 1.442695
  %v2887 = vpow.pop %v2886
  %v2888 = vmul.f32 %v2885, 1.442695
  %v2889 = vpow.pop %v2888
  %v2890 = vsel %vm235, %v2887, 0.0
  %2891 = vadd.xlane.f32.xlu0 %v2890
  %v2892 = vpop.xlane.xlu0 %2891
  %v2893 = vsel %vm235, %v2889, 0.0
  %2894 = vadd.xlane.f32.xlu0 %v2893
  %v2895 = vpop.xlane.xlu0 %2894
  %v2896 = vrcp.pop %v2892
  %v2897 = vmul.f32 %v2887, %v2896
  %v2898 = vrcp.pop %v2895
  %v2899 = vmul.f32 %v2889, %v2898
  %2900 = vrot.lane.b32.xlu0 %v2050, 48
  %v2901 = vpop.permute.xlu0 %2900
  %v2904 = vsel %vm235, %v2897, 0
  %2906 = vmatprep.subr.mxu0 0.0
  %2907 = vmatpush1.msra.mxu0 %v2901
  %2908 = vmatprep.subr.mxu0 0.0
  %2909 = vmatpush1.msra.mxu0 0.0
  %2910 = vmatprep.subr.mxu0 0.0
  %2911 = vmatpush1.msra.mxu0 0.0
  %2912 = vmatprep.subr.mxu0 0.0
  %2913 = vmatpush1.msra.mxu0 0.0
  %2914 = vmatprep.subr.mxu0 0.0
  %2915 = vmatpush1.msra.mxu0 0.0
  %2916 = vmatprep.subr.mxu0 0.0
  %2917 = vmatpush1.msra.mxu0 0.0
  %2918 = vmatprep.subr.mxu0 0.0
  %2919 = vmatpush1.msra.mxu0 0.0
  %2920 = vmatprep.subr.mxu0 0.0
  %2921 = vmatpush1.msra.mxu0 0.0
  %2922 = vmatprep.subr.mxu0 0.0
  %2923 = vmatpush1.msra.mxu0 0.0
  %2924 = vmatprep.subr.mxu0 0.0
  %2925 = vmatpush1.msra.mxu0 0.0
  %2926 = vmatprep.subr.mxu0 0.0
  %2927 = vmatpush1.msra.mxu0 0.0
  %2928 = vmatprep.subr.mxu0 0.0
  %2929 = vmatpush1.msra.mxu0 0.0
  %2930 = vmatprep.subr.mxu0 0.0
  %2931 = vmatpush1.msra.mxu0 0.0
  %2932 = vmatprep.subr.mxu0 0.0
  %2933 = vmatpush1.msra.mxu0 0.0
  %2934 = vmatprep.subr.mxu0 0.0
  %2935 = vmatpush1.msra.mxu0 0.0
  %2936 = vmatprep.subr.mxu0 0.0
  %2937 = vmatpush1.msra.mxu0 0.0
  %2938 = vmatprep.subr.mxu0 0.0
  %2939 = vmatpush1.msra.mxu0 0.0
  %2940 = vmatprep.subr.mxu0 0.0
  %2941 = vmatpush1.msra.mxu0 0.0
  %2942 = vmatprep.subr.mxu0 0.0
  %2943 = vmatpush1.msra.mxu0 0.0
  %2944 = vmatprep.subr.mxu0 0.0
  %2945 = vmatpush1.msra.mxu0 0.0
  %2946 = vmatprep.subr.mxu0 0.0
  %2947 = vmatpush1.msra.mxu0 0.0
  %2948 = vmatprep.subr.mxu0 0.0
  %2949 = vmatpush1.msra.mxu0 0.0
  %2950 = vmatprep.subr.mxu0 0.0
  %2951 = vmatpush1.msra.mxu0 0.0
  %2952 = vmatprep.subr.mxu0 0.0
  %2953 = vmatpush1.msra.mxu0 0.0
  %2954 = vmatprep.subr.mxu0 0.0
  %2955 = vmatpush1.msra.mxu0 0.0
  %2956 = vmatprep.subr.mxu0 0.0
  %2957 = vmatpush1.msra.mxu0 0.0
  %2958 = vmatprep.subr.mxu0 0.0
  %2959 = vmatpush1.msra.mxu0 0.0
  %2960 = vmatprep.subr.mxu0 0.0
  %2961 = vmatpush1.msra.mxu0 0.0
  %2962 = vmatprep.subr.mxu0 0.0
  %2963 = vmatpush1.msra.mxu0 0.0
  %2964 = vmatprep.subr.mxu0 0.0
  %2965 = vmatpush1.msra.mxu0 0.0
  %2966 = vmatprep.subr.mxu0 0.0
  %2967 = vmatpush1.msra.mxu0 0.0
  %2968 = vmatprep.subr.mxu0 0.0
  %2969 = vmatpush1.msra.mxu0 0.0
  %2970 = vmatprep.mubr.f32.mxu0 0.0
  %2971 = vmatmul.mubr.f32.gmra.mrb[0].mxu0 %v2904
  %v2972 = vpop.f32.mrb[0].mxu0
  %v2973 = vadd.f32 0.0, %v2972
  %v2974 = vpop.f32.mrb[0].mxu0
  %2975 = vdwg.mxu0
  %2976 = vrot.lane.b32.xlu0 %v2055, 48
  %v2977 = vpop.permute.xlu0 %2976
  %v2980 = vsel %vm235, %v2899, 0
  %2982 = vmatprep.subr.mxu0 0.0
  %2983 = vmatpush1.msra.mxu0 %v2977
  %2984 = vmatprep.subr.mxu0 0.0
  %2985 = vmatpush1.msra.mxu0 0.0
  %2986 = vmatprep.subr.mxu0 0.0
  %2987 = vmatpush1.msra.mxu0 0.0
  %2988 = vmatprep.subr.mxu0 0.0
  %2989 = vmatpush1.msra.mxu0 0.0
  %2990 = vmatprep.subr.mxu0 0.0
  %2991 = vmatpush1.msra.mxu0 0.0
  %2992 = vmatprep.subr.mxu0 0.0
  %2993 = vmatpush1.msra.mxu0 0.0
  %2994 = vmatprep.subr.mxu0 0.0
  %2995 = vmatpush1.msra.mxu0 0.0
  %2996 = vmatprep.subr.mxu0 0.0
  %2997 = vmatpush1.msra.mxu0 0.0
  %2998 = vmatprep.subr.mxu0 0.0
  %2999 = vmatpush1.msra.mxu0 0.0
  %3000 = vmatprep.subr.mxu0 0.0
  %3001 = vmatpush1.msra.mxu0 0.0
  %3002 = vmatprep.subr.mxu0 0.0
  %3003 = vmatpush1.msra.mxu0 0.0
  %3004 = vmatprep.subr.mxu0 0.0
  %3005 = vmatpush1.msra.mxu0 0.0
  %3006 = vmatprep.subr.mxu0 0.0
  %3007 = vmatpush1.msra.mxu0 0.0
  %3008 = vmatprep.subr.mxu0 0.0
  %3009 = vmatpush1.msra.mxu0 0.0
  %3010 = vmatprep.subr.mxu0 0.0
  %3011 = vmatpush1.msra.mxu0 0.0
  %3012 = vmatprep.subr.mxu0 0.0
  %3013 = vmatpush1.msra.mxu0 0.0
  %3014 = vmatprep.subr.mxu0 0.0
  %3015 = vmatpush1.msra.mxu0 0.0
  %3016 = vmatprep.subr.mxu0 0.0
  %3017 = vmatpush1.msra.mxu0 0.0
  %3018 = vmatprep.subr.mxu0 0.0
  %3019 = vmatpush1.msra.mxu0 0.0
  %3020 = vmatprep.subr.mxu0 0.0
  %3021 = vmatpush1.msra.mxu0 0.0
  %3022 = vmatprep.subr.mxu0 0.0
  %3023 = vmatpush1.msra.mxu0 0.0
  %3024 = vmatprep.subr.mxu0 0.0
  %3025 = vmatpush1.msra.mxu0 0.0
  %3026 = vmatprep.subr.mxu0 0.0
  %3027 = vmatpush1.msra.mxu0 0.0
  %3028 = vmatprep.subr.mxu0 0.0
  %3029 = vmatpush1.msra.mxu0 0.0
  %3030 = vmatprep.subr.mxu0 0.0
  %3031 = vmatpush1.msra.mxu0 0.0
  %3032 = vmatprep.subr.mxu0 0.0
  %3033 = vmatpush1.msra.mxu0 0.0
  %3034 = vmatprep.subr.mxu0 0.0
  %3035 = vmatpush1.msra.mxu0 0.0
  %3036 = vmatprep.subr.mxu0 0.0
  %3037 = vmatpush1.msra.mxu0 0.0
  %3038 = vmatprep.subr.mxu0 0.0
  %3039 = vmatpush1.msra.mxu0 0.0
  %3040 = vmatprep.subr.mxu0 0.0
  %3041 = vmatpush1.msra.mxu0 0.0
  %3042 = vmatprep.subr.mxu0 0.0
  %3043 = vmatpush1.msra.mxu0 0.0
  %3044 = vmatprep.subr.mxu0 0.0
  %3045 = vmatpush1.msra.mxu0 0.0
  %3046 = vmatprep.mubr.f32.mxu0 0.0
  %3047 = vmatmul.mubr.f32.gmra.mrb[0].mxu0 %v2980
  %v3048 = vpop.f32.mrb[0].mxu0
  %v3049 = vadd.f32 0.0, %v3048
  %v3050 = vpop.f32.mrb[0].mxu0
  %3051 = vdwg.mxu0
  %3052 = vrot.lane.b32.xlu0 %v2050, 104
  %v3053 = vpop.permute.xlu0 %3052
  %3054 = vrot.lane.b32.xlu0 %v2050, 72
  %v3055 = vpop.permute.xlu0 %3054
  %v3056 = vsel %vm235, %v3053, 0
  %v3058 = vsel %vm235, %v3055, 0
  %3060 = vmatprep.subr.mxu0 0.0
  %3061 = vmatpush1.xpose.msra.mxu0 %v3058
  %3062 = vmatprep.subr.mxu0 0.0
  %3063 = vmatpush1.xpose.msra.mxu0 0.0
  %3064 = vmatprep.subr.mxu0 0.0
  %3065 = vmatpush1.xpose.msra.mxu0 0.0
  %3066 = vmatprep.subr.mxu0 0.0
  %3067 = vmatpush1.xpose.msra.mxu0 0.0
  %3068 = vmatprep.subr.mxu0 0.0
  %3069 = vmatpush1.xpose.msra.mxu0 0.0
  %3070 = vmatprep.subr.mxu0 0.0
  %3071 = vmatpush1.xpose.msra.mxu0 0.0
  %3072 = vmatprep.subr.mxu0 0.0
  %3073 = vmatpush1.xpose.msra.mxu0 0.0
  %3074 = vmatprep.subr.mxu0 0.0
  %3075 = vmatpush1.xpose.msra.mxu0 0.0
  %3076 = vmatprep.subr.mxu0 0.0
  %3077 = vmatpush1.xpose.msra.mxu0 0.0
  %3078 = vmatprep.subr.mxu0 0.0
  %3079 = vmatpush1.xpose.msra.mxu0 0.0
  %3080 = vmatprep.subr.mxu0 0.0
  %3081 = vmatpush1.xpose.msra.mxu0 0.0
  %3082 = vmatprep.subr.mxu0 0.0
  %3083 = vmatpush1.xpose.msra.mxu0 0.0
  %3084 = vmatprep.subr.mxu0 0.0
  %3085 = vmatpush1.xpose.msra.mxu0 0.0
  %3086 = vmatprep.subr.mxu0 0.0
  %3087 = vmatpush1.xpose.msra.mxu0 0.0
  %3088 = vmatprep.subr.mxu0 0.0
  %3089 = vmatpush1.xpose.msra.mxu0 0.0
  %3090 = vmatprep.subr.mxu0 0.0
  %3091 = vmatpush1.xpose.msra.mxu0 0.0
  %3092 = vmatprep.subr.mxu0 0.0
  %3093 = vmatpush1.xpose.msra.mxu0 0.0
  %3094 = vmatprep.subr.mxu0 0.0
  %3095 = vmatpush1.xpose.msra.mxu0 0.0
  %3096 = vmatprep.subr.mxu0 0.0
  %3097 = vmatpush1.xpose.msra.mxu0 0.0
  %3098 = vmatprep.subr.mxu0 0.0
  %3099 = vmatpush1.xpose.msra.mxu0 0.0
  %3100 = vmatprep.subr.mxu0 0.0
  %3101 = vmatpush1.xpose.msra.mxu0 0.0
  %3102 = vmatprep.subr.mxu0 0.0
  %3103 = vmatpush1.xpose.msra.mxu0 0.0
  %3104 = vmatprep.subr.mxu0 0.0
  %3105 = vmatpush1.xpose.msra.mxu0 0.0
  %3106 = vmatprep.subr.mxu0 0.0
  %3107 = vmatpush1.xpose.msra.mxu0 0.0
  %3108 = vmatprep.subr.mxu0 0.0
  %3109 = vmatpush1.xpose.msra.mxu0 0.0
  %3110 = vmatprep.subr.mxu0 0.0
  %3111 = vmatpush1.xpose.msra.mxu0 0.0
  %3112 = vmatprep.subr.mxu0 0.0
  %3113 = vmatpush1.xpose.msra.mxu0 0.0
  %3114 = vmatprep.subr.mxu0 0.0
  %3115 = vmatpush1.xpose.msra.mxu0 0.0
  %3116 = vmatprep.subr.mxu0 0.0
  %3117 = vmatpush1.xpose.msra.mxu0 0.0
  %3118 = vmatprep.subr.mxu0 0.0
  %3119 = vmatpush1.xpose.msra.mxu0 0.0
  %3120 = vmatprep.subr.mxu0 0.0
  %3121 = vmatpush1.xpose.msra.mxu0 0.0
  %3122 = vmatprep.subr.mxu0 0.0
  %3123 = vmatpush1.xpose.msra.mxu0 0.0
  %3124 = vmatprep.mubr.f32.mxu0 0.0
  %3125 = vmatmul.mubr.f32.gmra.mrb[0].mxu0 %v3056
  %v3126 = vpop.f32.mrb[0].mxu0
  %v3127 = vadd.f32 0.0, %v3126
  %v3128 = vpop.f32.mrb[0].mxu0
  %3129 = vdwg.mxu0
  %3130 = vrot.lane.b32.xlu0 %v2055, 104
  %v3131 = vpop.permute.xlu0 %3130
  %3132 = vrot.lane.b32.xlu0 %v2055, 72
  %v3133 = vpop.permute.xlu0 %3132
  %v3134 = vsel %vm235, %v3131, 0
  %v3136 = vsel %vm235, %v3133, 0
  %3138 = vmatprep.subr.mxu0 0.0
  %3139 = vmatpush1.xpose.msra.mxu0 %v3136
  %3140 = vmatprep.subr.mxu0 0.0
  %3141 = vmatpush1.xpose.msra.mxu0 0.0
  %3142 = vmatprep.subr.mxu0 0.0
  %3143 = vmatpush1.xpose.msra.mxu0 0.0
  %3144 = vmatprep.subr.mxu0 0.0
  %3145 = vmatpush1.xpose.msra.mxu0 0.0
  %3146 = vmatprep.subr.mxu0 0.0
  %3147 = vmatpush1.xpose.msra.mxu0 0.0
  %3148 = vmatprep.subr.mxu0 0.0
  %3149 = vmatpush1.xpose.msra.mxu0 0.0
  %3150 = vmatprep.subr.mxu0 0.0
  %3151 = vmatpush1.xpose.msra.mxu0 0.0
  %3152 = vmatprep.subr.mxu0 0.0
  %3153 = vmatpush1.xpose.msra.mxu0 0.0
  %3154 = vmatprep.subr.mxu0 0.0
  %3155 = vmatpush1.xpose.msra.mxu0 0.0
  %3156 = vmatprep.subr.mxu0 0.0
  %3157 = vmatpush1.xpose.msra.mxu0 0.0
  %3158 = vmatprep.subr.mxu0 0.0
  %3159 = vmatpush1.xpose.msra.mxu0 0.0
  %3160 = vmatprep.subr.mxu0 0.0
  %3161 = vmatpush1.xpose.msra.mxu0 0.0
  %3162 = vmatprep.subr.mxu0 0.0
  %3163 = vmatpush1.xpose.msra.mxu0 0.0
  %3164 = vmatprep.subr.mxu0 0.0
  %3165 = vmatpush1.xpose.msra.mxu0 0.0
  %3166 = vmatprep.subr.mxu0 0.0
  %3167 = vmatpush1.xpose.msra.mxu0 0.0
  %3168 = vmatprep.subr.mxu0 0.0
  %3169 = vmatpush1.xpose.msra.mxu0 0.0
  %3170 = vmatprep.subr.mxu0 0.0
  %3171 = vmatpush1.xpose.msra.mxu0 0.0
  %3172 = vmatprep.subr.mxu0 0.0
  %3173 = vmatpush1.xpose.msra.mxu0 0.0
  %3174 = vmatprep.subr.mxu0 0.0
  %3175 = vmatpush1.xpose.msra.mxu0 0.0
  %3176 = vmatprep.subr.mxu0 0.0
  %3177 = vmatpush1.xpose.msra.mxu0 0.0
  %3178 = vmatprep.subr.mxu0 0.0
  %3179 = vmatpush1.xpose.msra.mxu0 0.0
  %3180 = vmatprep.subr.mxu0 0.0
  %3181 = vmatpush1.xpose.msra.mxu0 0.0
  %3182 = vmatprep.subr.mxu0 0.0
  %3183 = vmatpush1.xpose.msra.mxu0 0.0
  %3184 = vmatprep.subr.mxu0 0.0
  %3185 = vmatpush1.xpose.msra.mxu0 0.0
  %3186 = vmatprep.subr.mxu0 0.0
  %3187 = vmatpush1.xpose.msra.mxu0 0.0
  %3188 = vmatprep.subr.mxu0 0.0
  %3189 = vmatpush1.xpose.msra.mxu0 0.0
  %3190 = vmatprep.subr.mxu0 0.0
  %3191 = vmatpush1.xpose.msra.mxu0 0.0
  %3192 = vmatprep.subr.mxu0 0.0
  %3193 = vmatpush1.xpose.msra.mxu0 0.0
  %3194 = vmatprep.subr.mxu0 0.0
  %3195 = vmatpush1.xpose.msra.mxu0 0.0
  %3196 = vmatprep.subr.mxu0 0.0
  %3197 = vmatpush1.xpose.msra.mxu0 0.0
  %3198 = vmatprep.subr.mxu0 0.0
  %3199 = vmatpush1.xpose.msra.mxu0 0.0
  %3200 = vmatprep.subr.mxu0 0.0
  %3201 = vmatpush1.xpose.msra.mxu0 0.0
  %3202 = vmatprep.mubr.f32.mxu0 0.0
  %3203 = vmatmul.mubr.f32.gmra.mrb[0].mxu0 %v3134
  %v3204 = vpop.f32.mrb[0].mxu0
  %v3205 = vadd.f32 0.0, %v3204
  %v3206 = vpop.f32.mrb[0].mxu0
  %3207 = vdwg.mxu0
  %v3208 = vmul.f32 %v3127, 0.35355338
  %v3209 = vmul.f32 %v3205, 0.35355338
  %v3210 = vsel %vm235, %v3208, -inf
  %3211 = vmax.xlane.f32.xlu0 %v3210
  %v3212 = vpop.xlane.xlu0 %3211
  %v3213 = vsel %vm235, %v3209, -inf
  %3214 = vmax.xlane.f32.xlu0 %v3213
  %v3215 = vpop.xlane.xlu0 %3214
  %v3216 = vsub.f32 %v3208, %v3212
  %v3217 = vsub.f32 %v3209, %v3215
  %v3218 = vmul.f32 %v3216, 1.442695
  %v3219 = vpow.pop %v3218
  %v3220 = vmul.f32 %v3217, 1.442695
  %v3221 = vpow.pop %v3220
  %v3222 = vsel %vm235, %v3219, 0.0
  %3223 = vadd.xlane.f32.xlu0 %v3222
  %v3224 = vpop.xlane.xlu0 %3223
  %v3225 = vsel %vm235, %v3221, 0.0
  %3226 = vadd.xlane.f32.xlu0 %v3225
  %v3227 = vpop.xlane.xlu0 %3226
  %v3228 = vrcp.pop %v3224
  %v3229 = vmul.f32 %v3219, %v3228
  %v3230 = vrcp.pop %v3227
  %v3231 = vmul.f32 %v3221, %v3230
  %3232 = vrot.lane.b32.xlu0 %v2050, 40
  %v3233 = vpop.permute.xlu0 %3232
  %v3236 = vsel %vm235, %v3229, 0
  %3238 = vmatprep.subr.mxu0 0.0
  %3239 = vmatpush1.msra.mxu0 %v3233
  %3240 = vmatprep.subr.mxu0 0.0
  %3241 = vmatpush1.msra.mxu0 0.0
  %3242 = vmatprep.subr.mxu0 0.0
  %3243 = vmatpush1.msra.mxu0 0.0
  %3244 = vmatprep.subr.mxu0 0.0
  %3245 = vmatpush1.msra.mxu0 0.0
  %3246 = vmatprep.subr.mxu0 0.0
  %3247 = vmatpush1.msra.mxu0 0.0
  %3248 = vmatprep.subr.mxu0 0.0
  %3249 = vmatpush1.msra.mxu0 0.0
  %3250 = vmatprep.subr.mxu0 0.0
  %3251 = vmatpush1.msra.mxu0 0.0
  %3252 = vmatprep.subr.mxu0 0.0
  %3253 = vmatpush1.msra.mxu0 0.0
  %3254 = vmatprep.subr.mxu0 0.0
  %3255 = vmatpush1.msra.mxu0 0.0
  %3256 = vmatprep.subr.mxu0 0.0
  %3257 = vmatpush1.msra.mxu0 0.0
  %3258 = vmatprep.subr.mxu0 0.0
  %3259 = vmatpush1.msra.mxu0 0.0
  %3260 = vmatprep.subr.mxu0 0.0
  %3261 = vmatpush1.msra.mxu0 0.0
  %3262 = vmatprep.subr.mxu0 0.0
  %3263 = vmatpush1.msra.mxu0 0.0
  %3264 = vmatprep.subr.mxu0 0.0
  %3265 = vmatpush1.msra.mxu0 0.0
  %3266 = vmatprep.subr.mxu0 0.0
  %3267 = vmatpush1.msra.mxu0 0.0
  %3268 = vmatprep.subr.mxu0 0.0
  %3269 = vmatpush1.msra.mxu0 0.0
  %3270 = vmatprep.subr.mxu0 0.0
  %3271 = vmatpush1.msra.mxu0 0.0
  %3272 = vmatprep.subr.mxu0 0.0
  %3273 = vmatpush1.msra.mxu0 0.0
  %3274 = vmatprep.subr.mxu0 0.0
  %3275 = vmatpush1.msra.mxu0 0.0
  %3276 = vmatprep.subr.mxu0 0.0
  %3277 = vmatpush1.msra.mxu0 0.0
  %3278 = vmatprep.subr.mxu0 0.0
  %3279 = vmatpush1.msra.mxu0 0.0
  %3280 = vmatprep.subr.mxu0 0.0
  %3281 = vmatpush1.msra.mxu0 0.0
  %3282 = vmatprep.subr.mxu0 0.0
  %3283 = vmatpush1.msra.mxu0 0.0
  %3284 = vmatprep.subr.mxu0 0.0
  %3285 = vmatpush1.msra.mxu0 0.0
  %3286 = vmatprep.subr.mxu0 0.0
  %3287 = vmatpush1.msra.mxu0 0.0
  %3288 = vmatprep.subr.mxu0 0.0
  %3289 = vmatpush1.msra.mxu0 0.0
  %3290 = vmatprep.subr.mxu0 0.0
  %3291 = vmatpush1.msra.mxu0 0.0
  %3292 = vmatprep.subr.mxu0 0.0
  %3293 = vmatpush1.msra.mxu0 0.0
  %3294 = vmatprep.subr.mxu0 0.0
  %3295 = vmatpush1.msra.mxu0 0.0
  %3296 = vmatprep.subr.mxu0 0.0
  %3297 = vmatpush1.msra.mxu0 0.0
  %3298 = vmatprep.subr.mxu0 0.0
  %3299 = vmatpush1.msra.mxu0 0.0
  %3300 = vmatprep.subr.mxu0 0.0
  %3301 = vmatpush1.msra.mxu0 0.0
  %3302 = vmatprep.mubr.f32.mxu0 0.0
  %3303 = vmatmul.mubr.f32.gmra.mrb[0].mxu0 %v3236
  %v3304 = vpop.f32.mrb[0].mxu0
  %v3305 = vadd.f32 0.0, %v3304
  %v3306 = vpop.f32.mrb[0].mxu0
  %3307 = vdwg.mxu0
  %3308 = vrot.lane.b32.xlu0 %v2055, 40
  %v3309 = vpop.permute.xlu0 %3308
  %v3312 = vsel %vm235, %v3231, 0
  %3314 = vmatprep.subr.mxu0 0.0
  %3315 = vmatpush1.msra.mxu0 %v3309
  %3316 = vmatprep.subr.mxu0 0.0
  %3317 = vmatpush1.msra.mxu0 0.0
  %3318 = vmatprep.subr.mxu0 0.0
  %3319 = vmatpush1.msra.mxu0 0.0
  %3320 = vmatprep.subr.mxu0 0.0
  %3321 = vmatpush1.msra.mxu0 0.0
  %3322 = vmatprep.subr.mxu0 0.0
  %3323 = vmatpush1.msra.mxu0 0.0
  %3324 = vmatprep.subr.mxu0 0.0
  %3325 = vmatpush1.msra.mxu0 0.0
  %3326 = vmatprep.subr.mxu0 0.0
  %3327 = vmatpush1.msra.mxu0 0.0
  %3328 = vmatprep.subr.mxu0 0.0
  %3329 = vmatpush1.msra.mxu0 0.0
  %3330 = vmatprep.subr.mxu0 0.0
  %3331 = vmatpush1.msra.mxu0 0.0
  %3332 = vmatprep.subr.mxu0 0.0
  %3333 = vmatpush1.msra.mxu0 0.0
  %3334 = vmatprep.subr.mxu0 0.0
  %3335 = vmatpush1.msra.mxu0 0.0
  %3336 = vmatprep.subr.mxu0 0.0
  %3337 = vmatpush1.msra.mxu0 0.0
  %3338 = vmatprep.subr.mxu0 0.0
  %3339 = vmatpush1.msra.mxu0 0.0
  %3340 = vmatprep.subr.mxu0 0.0
  %3341 = vmatpush1.msra.mxu0 0.0
  %3342 = vmatprep.subr.mxu0 0.0
  %3343 = vmatpush1.msra.mxu0 0.0
  %3344 = vmatprep.subr.mxu0 0.0
  %3345 = vmatpush1.msra.mxu0 0.0
  %3346 = vmatprep.subr.mxu0 0.0
  %3347 = vmatpush1.msra.mxu0 0.0
  %3348 = vmatprep.subr.mxu0 0.0
  %3349 = vmatpush1.msra.mxu0 0.0
  %3350 = vmatprep.subr.mxu0 0.0
  %3351 = vmatpush1.msra.mxu0 0.0
  %3352 = vmatprep.subr.mxu0 0.0
  %3353 = vmatpush1.msra.mxu0 0.0
  %3354 = vmatprep.subr.mxu0 0.0
  %3355 = vmatpush1.msra.mxu0 0.0
  %3356 = vmatprep.subr.mxu0 0.0
  %3357 = vmatpush1.msra.mxu0 0.0
  %3358 = vmatprep.subr.mxu0 0.0
  %3359 = vmatpush1.msra.mxu0 0.0
  %3360 = vmatprep.subr.mxu0 0.0
  %3361 = vmatpush1.msra.mxu0 0.0
  %3362 = vmatprep.subr.mxu0 0.0
  %3363 = vmatpush1.msra.mxu0 0.0
  %3364 = vmatprep.subr.mxu0 0.0
  %3365 = vmatpush1.msra.mxu0 0.0
  %3366 = vmatprep.subr.mxu0 0.0
  %3367 = vmatpush1.msra.mxu0 0.0
  %3368 = vmatprep.subr.mxu0 0.0
  %3369 = vmatpush1.msra.mxu0 0.0
  %3370 = vmatprep.subr.mxu0 0.0
  %3371 = vmatpush1.msra.mxu0 0.0
  %3372 = vmatprep.subr.mxu0 0.0
  %3373 = vmatpush1.msra.mxu0 0.0
  %3374 = vmatprep.subr.mxu0 0.0
  %3375 = vmatpush1.msra.mxu0 0.0
  %3376 = vmatprep.subr.mxu0 0.0
  %3377 = vmatpush1.msra.mxu0 0.0
  %3378 = vmatprep.mubr.f32.mxu0 0.0
  %3379 = vmatmul.mubr.f32.gmra.mrb[0].mxu0 %v3312
  %v3380 = vpop.f32.mrb[0].mxu0
  %v3381 = vadd.f32 0.0, %v3380
  %v3382 = vpop.f32.mrb[0].mxu0
  %3383 = vdwg.mxu0
  %3386 = vrot.lane.b32.xlu0 %v2641, 8
  %v3387 = vpop.permute.xlu0 %3386
  %3388 = vrot.lane.b32.xlu0 %v2717, 8
  %v3389 = vpop.permute.xlu0 %3388
  %3394 = vrot.lane.b32.xlu0 %v2973, 16
  %v3395 = vpop.permute.xlu0 %3394
  %3396 = vrot.lane.b32.xlu0 %v3049, 16
  %v3397 = vpop.permute.xlu0 %3396
  %3402 = vrot.lane.b32.xlu0 %v3305, 24
  %v3403 = vpop.permute.xlu0 %3402
  %3404 = vrot.lane.b32.xlu0 %v3381, 24
  %v3405 = vpop.permute.xlu0 %3404
  %v3408 = vsel %vm235, %v2309, %v3387
  %v3409 = vsel %vm235, %v2385, %v3389
  %v3410 = vsel %vm1585, %v3408, %v3395
  %v3411 = vsel %vm1585, %v3409, %v3397
  %v3412 = vsel %vm1588, %v3410, %v3403
  %v3413 = vsel %vm1588, %v3411, %v3405
  %v3414 = vlaneseq
  %v3415 = vshrl.u32 %v3414, 7
  %v3416 = vsub.s32 0, %v3415
  %v3417 = vrot.slane %v1967, %v3416
  %3422 = vrot.lane.b32.xlu0 %v1940, 32
  %v3423 = vpop.permute.xlu0 %3422
  %3424 = vrot.lane.b32.xlu0 %v1942, 32
  %v3425 = vpop.permute.xlu0 %3424
  %3426 = vrot.lane.b32.xlu0 %v1944, 32
  %v3427 = vpop.permute.xlu0 %3426
  %3428 = vrot.lane.b32.xlu0 %v1946, 32
  %v3429 = vpop.permute.xlu0 %3428
  %v3435 = vsel %vm150, %v3412, 0
  %v3438 = vsel %vm150, %v3413, 0
  %3440 = vmatprep.subr.mxu0 0.0
  %3441 = vmatpush1.msra.mxu0 %v3423
  %3442 = vmatprep.subr.mxu0 0.0
  %3443 = vmatpush1.msra.mxu0 %v3425
  %3444 = vmatprep.subr.mxu0 0.0
  %3445 = vmatpush1.msra.mxu0 %v3427
  %3446 = vmatprep.subr.mxu0 0.0
  %3447 = vmatpush1.msra.mxu0 %v3429
  %3448 = vmatprep.subr.mxu0 0.0
  %3449 = vmatpush1.msra.mxu0 0.0
  %3450 = vmatprep.subr.mxu0 0.0
  %3451 = vmatpush1.msra.mxu0 0.0
  %3452 = vmatprep.subr.mxu0 0.0
  %3453 = vmatpush1.msra.mxu0 0.0
  %3454 = vmatprep.subr.mxu0 0.0
  %3455 = vmatpush1.msra.mxu0 0.0
  %3456 = vmatprep.subr.mxu0 0.0
  %3457 = vmatpush1.msra.mxu0 0.0
  %3458 = vmatprep.subr.mxu0 0.0
  %3459 = vmatpush1.msra.mxu0 0.0
  %3460 = vmatprep.subr.mxu0 0.0
  %3461 = vmatpush1.msra.mxu0 0.0
  %3462 = vmatprep.subr.mxu0 0.0
  %3463 = vmatpush1.msra.mxu0 0.0
  %3464 = vmatprep.subr.mxu0 0.0
  %3465 = vmatpush1.msra.mxu0 0.0
  %3466 = vmatprep.subr.mxu0 0.0
  %3467 = vmatpush1.msra.mxu0 0.0
  %3468 = vmatprep.subr.mxu0 0.0
  %3469 = vmatpush1.msra.mxu0 0.0
  %3470 = vmatprep.subr.mxu0 0.0
  %3471 = vmatpush1.msra.mxu0 0.0
  %3472 = vmatprep.subr.mxu0 0.0
  %3473 = vmatpush1.msra.mxu0 0.0
  %3474 = vmatprep.subr.mxu0 0.0
  %3475 = vmatpush1.msra.mxu0 0.0
  %3476 = vmatprep.subr.mxu0 0.0
  %3477 = vmatpush1.msra.mxu0 0.0
  %3478 = vmatprep.subr.mxu0 0.0
  %3479 = vmatpush1.msra.mxu0 0.0
  %3480 = vmatprep.subr.mxu0 0.0
  %3481 = vmatpush1.msra.mxu0 0.0
  %3482 = vmatprep.subr.mxu0 0.0
  %3483 = vmatpush1.msra.mxu0 0.0
  %3484 = vmatprep.subr.mxu0 0.0
  %3485 = vmatpush1.msra.mxu0 0.0
  %3486 = vmatprep.subr.mxu0 0.0
  %3487 = vmatpush1.msra.mxu0 0.0
  %3488 = vmatprep.subr.mxu0 0.0
  %3489 = vmatpush1.msra.mxu0 0.0
  %3490 = vmatprep.subr.mxu0 0.0
  %3491 = vmatpush1.msra.mxu0 0.0
  %3492 = vmatprep.subr.mxu0 0.0
  %3493 = vmatpush1.msra.mxu0 0.0
  %3494 = vmatprep.subr.mxu0 0.0
  %3495 = vmatpush1.msra.mxu0 0.0
  %3496 = vmatprep.subr.mxu0 0.0
  %3497 = vmatpush1.msra.mxu0 0.0
  %3498 = vmatprep.subr.mxu0 0.0
  %3499 = vmatpush1.msra.mxu0 0.0
  %3500 = vmatprep.subr.mxu0 0.0
  %3501 = vmatpush1.msra.mxu0 0.0
  %3502 = vmatprep.subr.mxu0 0.0
  %3503 = vmatpush1.msra.mxu0 0.0
  %3504 = vmatprep.mubr.f32.mxu0 0.0
  %3505 = vmatmul.mubr.f32.gmra.mrb[0].mxu0 %v3435
  %v3506 = vpop.f32.mrb[0].mxu0
  %v3507 = vadd.f32 %v3417, %v3506
  %v3508 = vpop.f32.mrb[0].mxu0
  %3509 = vmatprep.mubr.f32.mxu0 0.0
  %3510 = vmatmul.mubr.f32.gmra.mrb[0].mxu0 %v3438
  %v3511 = vpop.f32.mrb[0].mxu0
  %v3512 = vadd.f32 %v3417, %v3511
  %v3513 = vpop.f32.mrb[0].mxu0
  %3514 = vdwg.mxu0
  %v3515 = vadd.f32 %v1937, %v3507
  %v3516 = vadd.f32 %v1938, %v3512
  %v3517 = vsel %vm150, %v3515, 0.0
  %3518 = vadd.xlane.f32.xlu0 %v3517
  %v3519 = vpop.xlane.xlu0 %3518
  %v3520 = vsel %vm150, %v3516, 0.0
  %3521 = vadd.xlane.f32.xlu0 %v3520
  %v3522 = vpop.xlane.xlu0 %3521
  %v3523 = vmul.f32 %v3519, %v1700
  %v3524 = vmul.f32 %v3522, %v1700
  %v3525 = vsub.f32 %v3515, %v3523
  %v3526 = vsub.f32 %v3516, %v3524
  %v3527 = vmul.f32 %v3525, %v3525
  %v3528 = vmul.f32 %v3526, %v3526
  %v3529 = vsel %vm150, %v3527, 0.0
  %3530 = vadd.xlane.f32.xlu0 %v3529
  %v3531 = vpop.xlane.xlu0 %3530
  %v3532 = vsel %vm150, %v3528, 0.0
  %3533 = vadd.xlane.f32.xlu0 %v3532
  %v3534 = vpop.xlane.xlu0 %3533
  %v3535 = vmul.f32 %v3531, %v1700
  %v3536 = vmul.f32 %v3534, %v1700
  %v3537 = vadd.f32 %v3535, 1e-05
  %v3538 = vadd.f32 %v3536, 1e-05
  %v3539 = vrsqrt.pop %v3537
  %v3540 = vrsqrt.pop %v3538
  %v3541 = vmul.f32 %v3525, %v3539
  %v3542 = vmul.f32 %v3526, %v3540
  %v3543 = vlaneseq
  %v3544 = vshrl.u32 %v3543, 7
  %v3545 = vsub.s32 0, %v3544
  %v3546 = vrot.slane %v1968, %v3545
  %v3547 = vmul.f32 %v3541, %v3546
  %v3548 = vmul.f32 %v3542, %v3546
  %v3549 = vlaneseq
  %v3550 = vshrl.u32 %v3549, 7
  %v3551 = vsub.s32 0, %v3550
  %v3552 = vrot.slane %v1969, %v3551
  %v3553 = vadd.f32 %v3547, %v3552
  %v3554 = vadd.f32 %v3548, %v3552
  %v3555 = vlaneseq
  %v3556 = vshrl.u32 %v3555, 7
  %v3557 = vsub.s32 0, %v3556
  %v3558 = vrot.slane %v1966, %v3557
  %v3560 = vsel %vm150, %v3553, 0
  %v3563 = vsel %vm150, %v3554, 0
  %3565 = vmatprep.subr.mxu0 0.0
  %3566 = vmatpush1.msra.mxu0 %v1941
  %3567 = vmatprep.subr.mxu0 0.0
  %3568 = vmatpush1.msra.mxu0 %v1943
  %3569 = vmatprep.subr.mxu0 0.0
  %3570 = vmatpush1.msra.mxu0 %v1945
  %3571 = vmatprep.subr.mxu0 0.0
  %3572 = vmatpush1.msra.mxu0 %v1947
  %3573 = vmatprep.subr.mxu0 0.0
  %3574 = vmatpush1.msra.mxu0 0.0
  %3575 = vmatprep.subr.mxu0 0.0
  %3576 = vmatpush1.msra.mxu0 0.0
  %3577 = vmatprep.subr.mxu0 0.0
  %3578 = vmatpush1.msra.mxu0 0.0
  %3579 = vmatprep.subr.mxu0 0.0
  %3580 = vmatpush1.msra.mxu0 0.0
  %3581 = vmatprep.subr.mxu0 0.0
  %3582 = vmatpush1.msra.mxu0 0.0
  %3583 = vmatprep.subr.mxu0 0.0
  %3584 = vmatpush1.msra.mxu0 0.0
  %3585 = vmatprep.subr.mxu0 0.0
  %3586 = vmatpush1.msra.mxu0 0.0
  %3587 = vmatprep.subr.mxu0 0.0
  %3588 = vmatpush1.msra.mxu0 0.0
  %3589 = vmatprep.subr.mxu0 0.0
  %3590 = vmatpush1.msra.mxu0 0.0
  %3591 = vmatprep.subr.mxu0 0.0
  %3592 = vmatpush1.msra.mxu0 0.0
  %3593 = vmatprep.subr.mxu0 0.0
  %3594 = vmatpush1.msra.mxu0 0.0
  %3595 = vmatprep.subr.mxu0 0.0
  %3596 = vmatpush1.msra.mxu0 0.0
  %3597 = vmatprep.subr.mxu0 0.0
  %3598 = vmatpush1.msra.mxu0 0.0
  %3599 = vmatprep.subr.mxu0 0.0
  %3600 = vmatpush1.msra.mxu0 0.0
  %3601 = vmatprep.subr.mxu0 0.0
  %3602 = vmatpush1.msra.mxu0 0.0
  %3603 = vmatprep.subr.mxu0 0.0
  %3604 = vmatpush1.msra.mxu0 0.0
  %3605 = vmatprep.subr.mxu0 0.0
  %3606 = vmatpush1.msra.mxu0 0.0
  %3607 = vmatprep.subr.mxu0 0.0
  %3608 = vmatpush1.msra.mxu0 0.0
  %3609 = vmatprep.subr.mxu0 0.0
  %3610 = vmatpush1.msra.mxu0 0.0
  %3611 = vmatprep.subr.mxu0 0.0
  %3612 = vmatpush1.msra.mxu0 0.0
  %3613 = vmatprep.subr.mxu0 0.0
  %3614 = vmatpush1.msra.mxu0 0.0
  %3615 = vmatprep.subr.mxu0 0.0
  %3616 = vmatpush1.msra.mxu0 0.0
  %3617 = vmatprep.subr.mxu0 0.0
  %3618 = vmatpush1.msra.mxu0 0.0
  %3619 = vmatprep.subr.mxu0 0.0
  %3620 = vmatpush1.msra.mxu0 0.0
  %3621 = vmatprep.subr.mxu0 0.0
  %3622 = vmatpush1.msra.mxu0 0.0
  %3623 = vmatprep.subr.mxu0 0.0
  %3624 = vmatpush1.msra.mxu0 0.0
  %3625 = vmatprep.subr.mxu0 0.0
  %3626 = vmatpush1.msra.mxu0 0.0
  %3627 = vmatprep.subr.mxu0 0.0
  %3628 = vmatpush1.msra.mxu0 0.0
  %3629 = vmatprep.mubr.f32.mxu0 0.0
  %3630 = vmatmul.mubr.f32.gmra.mrb[0].mxu0 %v3560
  %v3631 = vpop.f32.mrb[0].mxu0
  %v3632 = vadd.f32 %v3558, %v3631
  %v3633 = vpop.f32.mrb[0].mxu0
  %3634 = vmatprep.mubr.f32.mxu0 0.0
  %3635 = vmatmul.mubr.f32.gmra.mrb[0].mxu0 %v3563
  %v3636 = vpop.f32.mrb[0].mxu0
  %v3637 = vadd.f32 %v3558, %v3636
  %v3638 = vpop.f32.mrb[0].mxu0
  %3639 = vdwg.mxu0
  %v3640 = vmax.f32 %v3632, 0.0
  %v3641 = vmax.f32 %v3637, 0.0
  %v3642 = vlaneseq
  %v3643 = vshrl.u32 %v3642, 7
  %v3644 = vsub.s32 0, %v3643
  %v3645 = vrot.slane %v1970, %v3644
  %3646 = vmatprep.subr.mxu0 0.0
  %3647 = vmatpush1.msra.mxu0 %v1949
  %3648 = vmatprep.subr.mxu0 0.0
  %3649 = vmatpush1.msra.mxu0 %v1950
  %3650 = vmatprep.subr.mxu0 0.0
  %3651 = vmatpush1.msra.mxu0 %v1951
  %3652 = vmatprep.subr.mxu0 0.0
  %3653 = vmatpush1.msra.mxu0 %v1952
  %3654 = vmatprep.subr.mxu0 0.0
  %3655 = vmatpush1.msra.mxu0 %v1953
  %3656 = vmatprep.subr.mxu0 0.0
  %3657 = vmatpush1.msra.mxu0 %v1954
  %3658 = vmatprep.subr.mxu0 0.0
  %3659 = vmatpush1.msra.mxu0 %v1955
  %3660 = vmatprep.subr.mxu0 0.0
  %3661 = vmatpush1.msra.mxu0 %v1956
  %3662 = vmatprep.subr.mxu0 0.0
  %3663 = vmatpush1.msra.mxu0 %v1957
  %3664 = vmatprep.subr.mxu0 0.0
  %3665 = vmatpush1.msra.mxu0 %v1958
  %3666 = vmatprep.subr.mxu0 0.0
  %3667 = vmatpush1.msra.mxu0 %v1959
  %3668 = vmatprep.subr.mxu0 0.0
  %3669 = vmatpush1.msra.mxu0 %v1960
  %3670 = vmatprep.subr.mxu0 0.0
  %3671 = vmatpush1.msra.mxu0 %v1961
  %3672 = vmatprep.subr.mxu0 0.0
  %3673 = vmatpush1.msra.mxu0 %v1962
  %3674 = vmatprep.subr.mxu0 0.0
  %3675 = vmatpush1.msra.mxu0 %v1963
  %3676 = vmatprep.subr.mxu0 0.0
  %3677 = vmatpush1.msra.mxu0 %v1964
  %3678 = vmatprep.subr.mxu0 0.0
  %3679 = vmatpush1.msra.mxu0 0.0
  %3680 = vmatprep.subr.mxu0 0.0
  %3681 = vmatpush1.msra.mxu0 0.0
  %3682 = vmatprep.subr.mxu0 0.0
  %3683 = vmatpush1.msra.mxu0 0.0
  %3684 = vmatprep.subr.mxu0 0.0
  %3685 = vmatpush1.msra.mxu0 0.0
  %3686 = vmatprep.subr.mxu0 0.0
  %3687 = vmatpush1.msra.mxu0 0.0
  %3688 = vmatprep.subr.mxu0 0.0
  %3689 = vmatpush1.msra.mxu0 0.0
  %3690 = vmatprep.subr.mxu0 0.0
  %3691 = vmatpush1.msra.mxu0 0.0
  %3692 = vmatprep.subr.mxu0 0.0
  %3693 = vmatpush1.msra.mxu0 0.0
  %3694 = vmatprep.subr.mxu0 0.0
  %3695 = vmatpush1.msra.mxu0 0.0
  %3696 = vmatprep.subr.mxu0 0.0
  %3697 = vmatpush1.msra.mxu0 0.0
  %3698 = vmatprep.subr.mxu0 0.0
  %3699 = vmatpush1.msra.mxu0 0.0
  %3700 = vmatprep.subr.mxu0 0.0
  %3701 = vmatpush1.msra.mxu0 0.0
  %3702 = vmatprep.subr.mxu0 0.0
  %3703 = vmatpush1.msra.mxu0 0.0
  %3704 = vmatprep.subr.mxu0 0.0
  %3705 = vmatpush1.msra.mxu0 0.0
  %3706 = vmatprep.subr.mxu0 0.0
  %3707 = vmatpush1.msra.mxu0 0.0
  %3708 = vmatprep.subr.mxu0 0.0
  %3709 = vmatpush1.msra.mxu0 0.0
  %3710 = vmatprep.mubr.f32.mxu0 0.0
  %3711 = vmatmul.mubr.f32.gmra.mrb[0].mxu0 %v3640
  %v3712 = vpop.f32.mrb[0].mxu0
  %v3713 = vadd.f32 %v3645, %v3712
  %v3714 = vpop.f32.mrb[0].mxu0
  %3715 = vmatprep.mubr.f32.mxu0 0.0
  %3716 = vmatmul.mubr.f32.gmra.mrb[0].mxu0 %v3641
  %v3717 = vpop.f32.mrb[0].mxu0
  %v3718 = vadd.f32 %v3645, %v3717
  %v3719 = vpop.f32.mrb[0].mxu0
  %3720 = vdwg.mxu0
  %v3721 = vadd.f32 %v3553, %v3713
  %v3722 = vadd.f32 %v3554, %v3718
  %v3723 = vsel %vm150, %v3721, 0.0
  %3724 = vadd.xlane.f32.xlu0 %v3723
  %v3725 = vpop.xlane.xlu0 %3724
  %v3726 = vsel %vm150, %v3722, 0.0
  %3727 = vadd.xlane.f32.xlu0 %v3726
  %v3728 = vpop.xlane.xlu0 %3727
  %v3729 = vmul.f32 %v3725, %v1700
  %v3730 = vmul.f32 %v3728, %v1700
  %v3731 = vsub.f32 %v3721, %v3729
  %v3732 = vsub.f32 %v3722, %v3730
  %v3733 = vmul.f32 %v3731, %v3731
  %v3734 = vmul.f32 %v3732, %v3732
  %v3735 = vsel %vm150, %v3733, 0.0
  %3736 = vadd.xlane.f32.xlu0 %v3735
  %v3737 = vpop.xlane.xlu0 %3736
  %v3738 = vsel %vm150, %v3734, 0.0
  %3739 = vadd.xlane.f32.xlu0 %v3738
  %v3740 = vpop.xlane.xlu0 %3739
  %v3741 = vmul.f32 %v3737, %v1700
  %v3742 = vmul.f32 %v3740, %v1700
  %v3743 = vadd.f32 %v3741, 1e-05
  %v3744 = vadd.f32 %v3742, 1e-05
  %v3745 = vrsqrt.pop %v3743
  %v3746 = vrsqrt.pop %v3744
  %v3747 = vmul.f32 %v3731, %v3745
  %v3748 = vmul.f32 %v3732, %v3746
  %v3749 = vlaneseq
  %v3750 = vshrl.u32 %v3749, 7
  %v3751 = vsub.s32 0, %v3750
  %v3752 = vrot.slane %v1971, %v3751
  %v3753 = vmul.f32 %v3747, %v3752
  %v3754 = vmul.f32 %v3748, %v3752
  %v3755 = vlaneseq
  %v3756 = vshrl.u32 %v3755, 7
  %v3757 = vsub.s32 0, %v3756
  %v3758 = vrot.slane %v1972, %v3757
  %v3759 = vadd.f32 %v3753, %v3758
  %v3760 = vadd.f32 %v3754, %v3758
  %v3762 = vrot.slane %v3759, 7
  %v3765 = vrot.slane %v3760, 6
  %vm3767 = vcmask 1040384
  %v3768 = vsel %vm3767, %v3762, %v3765
  %v3769 = vld [vmem:[%s5 + $0x10] sm:$0x1]
  %v3770 = vld [vmem:[%s5 + $0x11] sm:$0x1]
  %v3771 = vlaneseq
  %v3772 = vshrl.u32 %v3771, 7
  %v3773 = vsub.s32 0, %v3772
  %v3774 = vrot.slane %v3769, %v3773
  %v3775 = vmul.f32 %v3768, %v3774
  %vm3776 = vcmask 254976
  %v3777 = vsel %vm3776, %v3775, 0.0
  %3778 = vadd.xlane.f32.xlu0 %v3777
  %v3779 = vpop.xlane.xlu0 %3778
  %v3780 = vlaneseq
  %v3781 = vshrl.u32 %v3780, 7
  %v3782 = vsub.s32 0, %v3781
  %v3783 = vrot.slane %v3770, %v3782
  %v3784 = vadd.f32 %v3779, %v3783
  %vm3785 = vcmask 1024
  %3786 = vst.msk [vmem:[%s6] sm:$0x3] %vm3785, %v3784
  // Predicated region
  $region26: #{transformer_forward.1} parent=0 // pred_check
    _
  $region27: #{transformer_forward.1} parent=0 // pred_check_branch
    %3788 = sbr.rel (0) target = $region29
  $region28: #{transformer_forward.1} parent=0 // pred_region
    _
  $region29: #{transformer_forward.1} parent=0 // pred_fallthru
    _
  // Predicated region
  $region30: #{transformer_forward.1} parent=0 // pred_check
    _
  $region31: #{transformer_forward.1} parent=0 // pred_check_branch
    %3790 = sbr.rel (0) target = $region33
  $region32: #{transformer_forward.1} parent=0 // pred_region
    _
  $region33: #{transformer_forward.1} parent=0 // pred_fallthru
    _

</llo_original>
